<compile_context>
chip_gen: v7x
topology: tpu7x:2x2x1
jax: 0.10.0
libtpu: 0.0.40
codegen_flags: <defaults>
</compile_context>

<pallas_src>
import functools

import jax
import jax.numpy as jnp
from jax.experimental import pallas as pl
from jax.experimental.pallas import tpu as pltpu


# ----------------------- weight packing (wrapper-side) ----------------------

def _pack_gru_layer(units, in_dims, H):
    """Pack U per-unit GRU layers into one interleaved layer.

    units  : list of (w_ih (D_u,3H), w_hh (H,3H), b_ih (3H,), b_hh (3H,)),
             gate column order (r, z, n) like torch.nn.GRU.
    in_dims: per-unit input widths; unit u reads rows [off_u, off_u+D_u) of the
             lane-concatenated layer input.
    Returns (W_ih (sum D_u, 3*U*H), W_hh (U*H, 3*U*H), b_ih (1, 3*U*H),
             b_hn (1, U*H)).  Combined gate layout is [r_all | z_all | n_all]
    with H-wide unit blocks inside each gate.  The r/z parts of b_hh are folded
    into b_ih; only the n-gate hidden bias stays separate (GRU semantics).
    """
    U = len(units)
    UH = U * H
    offs = [0]
    for d in in_dims:
        offs.append(offs[-1] + d)
    w_ih = jnp.zeros((offs[-1], 3 * UH), jnp.float32)
    w_hh = jnp.zeros((UH, 3 * UH), jnp.float32)
    b_ih = jnp.zeros((3 * UH,), jnp.float32)
    b_hn = jnp.zeros((UH,), jnp.float32)
    for u, (wih_u, whh_u, bih_u, bhh_u) in enumerate(units):
        r0, du = offs[u], in_dims[u]
        for g in range(3):
            cs = g * UH + u * H
            w_ih = w_ih.at[r0:r0 + du, cs:cs + H].set(wih_u[:, g * H:(g + 1) * H])
            w_hh = w_hh.at[u * H:(u + 1) * H, cs:cs + H].set(whh_u[:, g * H:(g + 1) * H])
            bg = bih_u[g * H:(g + 1) * H]
            if g < 2:                       # fold b_hr / b_hz into the input bias
                bg = bg + bhh_u[g * H:(g + 1) * H]
            b_ih = b_ih.at[cs:cs + H].set(bg)
        b_hn = b_hn.at[u * H:(u + 1) * H].set(bhh_u[2 * H:3 * H])
    return w_ih, w_hh, b_ih.reshape(1, 3 * UH), b_hn.reshape(1, UH)


# ------------------------------ fused kernel --------------------------------

def _kenhance_kernel(raw_ref, fciw_ref, fcib_ref,
                     wih0_ref, wihr_ref, whh_ref, bih_ref, bhn_ref,
                     aw1_ref, ab1_ref, aw2_ref,
                     wcat_ref, bhead_ref, brel_ref,
                     rel_ref, sel_ref, fcw_ref, fcb_ref,
                     o_ref, seq_ref,
                     *, T, N, H, L, HEADS, Din):
    f32 = jnp.float32
    U = 1 + HEADS
    UH = U * H

    # ---- fc_in + tanh; lane-concat [net | raw x HEADS] for the joint layer-0 ----
    raw = raw_ref[...]                                            # (T*N, Din)
    net = jnp.tanh(jnp.dot(raw, fciw_ref[...],
                           preferred_element_type=f32) + fcib_ref[...])
    x0 = jnp.concatenate([net] + [raw] * HEADS, axis=1)           # (T*N, H+HEADS*Din)

    # ---- interleaved GRU stack: base + all heads in one recurrence ----
    h = jnp.zeros((N, UH), f32)
    for l in range(L):                                            # static L
        src = x0 if l == 0 else seq_ref[...]
        wih = wih0_ref[...] if l == 0 else wihr_ref[l - 1]
        # Hoisted input projection: one matmul per layer for all units/steps.
        xg_all = jnp.dot(src, wih, preferred_element_type=f32) + bih_ref[l]
        whh = whh_ref[l]
        bhn = jnp.broadcast_to(bhn_ref[l], (N, UH))               # hoisted once
        h = jnp.zeros((N, UH), f32)
        for t in range(T):                                        # static T -> unrolled
            xg = xg_all[t * N:(t + 1) * N, :]
            hg = jnp.dot(h, whh, preferred_element_type=f32)      # (N, 3UH)
            r = jax.nn.sigmoid(xg[:, :UH] + hg[:, :UH])
            z = jax.nn.sigmoid(xg[:, UH:2 * UH] + hg[:, UH:2 * UH])
            n = jnp.tanh(xg[:, 2 * UH:] + r * (hg[:, 2 * UH:] + bhn))
            h = (1.0 - z) * n + z * h
            seq_ref[t * N:(t + 1) * N, :] = h

    xh = h[:, :H]                                                 # x_hidden[:, -1, :]

    # ---- ALSTM time attention on the base top-layer sequence ----
    seqv = seq_ref[...]                                           # (T*N, UH)
    flat_base = seqv[:, :H]                                       # (T*N, H)
    h1 = jnp.tanh(jnp.dot(flat_base, aw1_ref[...],
                          preferred_element_type=f32) + ab1_ref[...])
    logits = jnp.dot(h1, aw2_ref[...], preferred_element_type=f32)  # (T*N, 1)
    lg = [logits[t * N:(t + 1) * N, :] for t in range(T)]
    m = lg[0]
    for t in range(1, T):
        m = jnp.maximum(m, lg[t])
    es = [jnp.exp(v - m) for v in lg]
    den = es[0]
    for t in range(1, T):
        den = den + es[t]
    inv = 1.0 / den                                               # exact division
    al = (es[0] * inv) * flat_base[0:N, :]
    for t in range(1, T):
        al = al + (es[t] * inv) * flat_base[t * N:(t + 1) * N, :]

    # ---- all (x . W) projections for graph + relation attention, one matmul ----
    ac = jnp.dot(xh, wcat_ref[...], preferred_element_type=f32)   # (N, 2*HEADS+2)
    bh = bhead_ref[...]                                           # (1, HEADS)

    rows = jax.lax.broadcasted_iota(jnp.int32, (N, N), 0)
    cols = jax.lax.broadcasted_iota(jnp.int32, (N, N), 1)
    eye = (rows == cols).astype(f32)

    head_outs = []
    for hd in range(HEADS):
        f = h[:, (1 + hd) * H:(2 + hd) * H]                       # head last hidden
        fn = jnp.sqrt(jnp.sum(f * f, axis=1, keepdims=True))
        f_norm = f / jnp.maximum(fn, 1e-6)                        # torch eps=1e-6
        g = jnp.einsum("ik,jk->ij", f_norm, f_norm,
                       preferred_element_type=f32) - eye
        wgt = (ac[:, 2 * hd:2 * hd + 1]
               + jnp.transpose(ac[:, 2 * hd + 1:2 * hd + 2], (1, 0))
               + bh[0:1, hd:hd + 1])
        wgt = jnp.where(wgt > 0, wgt, 0.01 * wgt)                 # LeakyReLU
        vw = jnp.where(g == 0.0, -1e10, g * wgt)                  # faithful to torch
        mx = jnp.max(vw, axis=1, keepdims=True)
        e = jnp.exp(vw - mx)
        sm = e / jnp.sum(e, axis=1, keepdims=True)
        head_outs.append(jnp.dot(sm, xh, preferred_element_type=f32))
    heads_cat = jnp.concatenate(head_outs, axis=1)                # (N, HEADS*H)

    # ---- relation attention; rel reduction as one MXU matmul ----
    rt = jnp.dot(rel_ref[...], sel_ref[...], preferred_element_type=f32)  # (N, 2N)
    rel_term = rt[:, :N]                                          # sum_r rel*W_rel
    rowsum = rt[:, N:]                                            # sum_r rel
    wgt = (ac[:, 2 * HEADS:2 * HEADS + 1]
           + jnp.transpose(ac[:, 2 * HEADS + 1:2 * HEADS + 2], (1, 0))
           + rel_term + brel_ref[...])
    wgt = jnp.where(wgt > 0, wgt, 0.01 * wgt)                     # LeakyReLU
    mask = (rowsum != 0.0).astype(f32)
    temp = mask * wgt
    temp = jnp.where(temp == 0.0, -100000.0, temp)                # faithful to torch
    mx = jnp.max(temp, axis=1, keepdims=True)
    e = jnp.exp(temp - mx)
    sm = (e / jnp.sum(e, axis=1, keepdims=True)) * mask
    rel_hidden = jnp.dot(sm, xh, preferred_element_type=f32)

    # ---- final fc over the concat, one K=(3+HEADS)*H matmul ----
    hv = jnp.concatenate([xh, al, heads_cat, rel_hidden], axis=1)  # (N, (3+HEADS)*H)
    o_ref[...] = jnp.dot(hv, fcw_ref[...], preferred_element_type=f32) + fcb_ref[...]


# ------------------------------- parameters ---------------------------------

def init_params(key, d_feat, hidden, num_layers, head_num, num_relation):
    H = hidden
    keys = iter(jax.random.split(key, 512))

    def nrm(shape, scale=0.1):
        return jax.random.normal(next(keys), shape, dtype=jnp.float32) * scale

    def gru_params(in_dim):
        layers, d = [], in_dim
        for _ in range(num_layers):
            layers.append((nrm((d, 3 * H)), nrm((H, 3 * H)),
                           nrm((3 * H,)), nrm((3 * H,))))
            d = H
        return layers

    params = {
        "fc_in_w": nrm((d_feat, H)), "fc_in_b": nrm((H,)),
        "rnn": gru_params(H),
        "att_w1": nrm((H, H // 2)), "att_b1": nrm((H // 2,)),
        "att_w2": nrm((H // 2, 1)),
        "heads": [{"rnn": gru_params(d_feat),
                   "W": nrm((2 * H, 1)),
                   "b": jnp.zeros((), jnp.float32)} for _ in range(head_num)],
        "W": nrm((2 * H + num_relation, 1)), "b": jnp.zeros((), jnp.float32),
        "fc_w": nrm((H * (3 + head_num), 1)), "fc_b": nrm((1,)),
    }
    return params


# -------------------------------- forward -----------------------------------

def kenhance_forward(params, x, relation_matrix, *, d_feat, hidden):
    N = x.shape[0]
    T = x.shape[1] // d_feat
    H = hidden
    L = len(params["rnn"])
    HEADS = len(params["heads"])
    U = 1 + HEADS
    UH = U * H
    R = relation_matrix.shape[-1]
    Din = d_feat
    f32 = jnp.float32

    # (N, d_feat*T) -> time-major flat (T*N, d_feat); row t*N+n = item n, step t.
    raw_flat = jnp.transpose(x.reshape(N, d_feat, T), (2, 0, 1)).reshape(T * N, d_feat)

    # ---- pack base + head GRUs into one interleaved recurrence per layer ----
    heads = params["heads"]
    wih0 = None
    wihr_l, whh_l, bih_l, bhn_l = [], [], [], []
    for l in range(L):
        units = [params["rnn"][l]] + [hp["rnn"][l] for hp in heads]
        in_dims = ([H] + [Din] * HEADS) if l == 0 else [H] * U
        wih, whh, bih, bhn = _pack_gru_layer(units, in_dims, H)
        if l == 0:
            wih0 = wih
        else:
            wihr_l.append(wih)
        whh_l.append(whh); bih_l.append(bih); bhn_l.append(bhn)
    whh = jnp.stack(whh_l)                                  # (L, UH, 3UH)
    bih = jnp.stack(bih_l)                                  # (L, 1, 3UH)
    bhn = jnp.stack(bhn_l)                                  # (L, 1, UH)
    wihr = (jnp.stack(wihr_l) if wihr_l
            else jnp.zeros((1, UH, 3 * UH), f32))           # dummy when L == 1

    # ---- per-head + relation (x . W) projections packed into one matrix ----
    wcat_cols = []
    for hp in heads:
        wcat_cols += [hp["W"][:H, :], hp["W"][H:, :]]
    wcat_cols += [params["W"][:H, :], params["W"][H:2 * H, :]]
    wcat = jnp.concatenate(wcat_cols, axis=1)               # (H, 2*HEADS+2)
    bhead = jnp.stack([hp["b"] for hp in heads]).reshape(1, HEADS)

    # ---- relation reduction as a single MXU matmul: rel(N, N*R) @ sel(N*R, 2N)
    # column block 0 = sum_r rel*W_rel, column block 1 = sum_r rel (nonzero mask).
    # TODO(synk): at production N, row-tile the tail with a grid and switch to the
    # (N*N,R)@(R,2) formulation; the block-diag sel matrix does not scale.
    wr = params["W"][2 * H:, 0]                             # (R,)
    eye_n = jnp.eye(N, dtype=f32)
    sel = jnp.concatenate([jnp.kron(eye_n, wr.reshape(R, 1)),
                           jnp.kron(eye_n, jnp.ones((R, 1), f32))], axis=1)
    rel2d = relation_matrix.reshape(N, N * R).astype(f32)

    pred = pl.pallas_call(
        functools.partial(_kenhance_kernel, T=T, N=N, H=H, L=L,
                          HEADS=HEADS, Din=Din),
        out_shape=jax.ShapeDtypeStruct((N, 1), f32),
        scratch_shapes=[pltpu.VMEM((T * N, UH), f32)],
        compiler_params=pltpu.CompilerParams(vmem_limit_bytes=32 * 1024 * 1024),
    )(raw_flat, params["fc_in_w"], params["fc_in_b"].reshape(1, H),
      wih0, wihr, whh, bih, bhn,
      params["att_w1"], params["att_b1"].reshape(1, H // 2), params["att_w2"],
      wcat, bhead, params["b"].reshape(1, 1),
      rel2d, sel, params["fc_w"], params["fc_b"].reshape(1, 1))
    return pred[:, 0]


# --------------------------------- main --------------------------------------

if __name__ == "__main__":
    d_feat, hidden, num_layers = 6, 32, 2
    head_num, num_relation = 3, 5           # (1+heads)*hidden = 128 lanes
    N, T = 8, 4

    key = jax.random.PRNGKey(0)
    kp, kx, kr = jax.random.split(key, 3)
    params = init_params(kp, d_feat, hidden, num_layers, head_num, num_relation)

    x = jax.random.normal(kx, (N, d_feat * T), dtype=jnp.float32)
    relation_matrix = (jax.random.uniform(kr, (N, N, num_relation)) > 0.7).astype(jnp.float32)

    fwd = jax.jit(functools.partial(kenhance_forward, d_feat=d_feat, hidden=hidden))
    pred = fwd(params, x, relation_matrix)
    jax.block_until_ready(pred)
    assert pred.shape == (N,)
    print("KERNEL_OK")
</pallas_src>

<mosaic_0001>
module attributes {stable_mosaic.version = 11 : i64} {
  func.func @_kenhance_kernel(%arg0: memref<32x6xf32, #tpu.memory_space<vmem>>, %arg1: memref<6x32xf32, #tpu.memory_space<vmem>>, %arg2: memref<1x32xf32, #tpu.memory_space<vmem>>, %arg3: memref<50x384xf32, #tpu.memory_space<vmem>>, %arg4: memref<1x128x384xf32, #tpu.memory_space<vmem>>, %arg5: memref<2x128x384xf32, #tpu.memory_space<vmem>>, %arg6: memref<2x1x384xf32, #tpu.memory_space<vmem>>, %arg7: memref<2x1x128xf32, #tpu.memory_space<vmem>>, %arg8: memref<32x16xf32, #tpu.memory_space<vmem>>, %arg9: memref<1x16xf32, #tpu.memory_space<vmem>>, %arg10: memref<16x1xf32, #tpu.memory_space<vmem>>, %arg11: memref<32x8xf32, #tpu.memory_space<vmem>>, %arg12: memref<1x3xf32, #tpu.memory_space<vmem>>, %arg13: memref<1x1xf32, #tpu.memory_space<vmem>>, %arg14: memref<8x40xf32, #tpu.memory_space<vmem>>, %arg15: memref<40x16xf32, #tpu.memory_space<vmem>>, %arg16: memref<192x1xf32, #tpu.memory_space<vmem>>, %arg17: memref<1x1xf32, #tpu.memory_space<vmem>>, %arg18: memref<8x1xf32, #tpu.memory_space<vmem>>, %arg19: memref<32x128xf32, #tpu.memory_space<vmem>>) attributes {dimension_semantics = [], scalar_prefetch = 0 : i64, scratch_operands = 1 : i64, tpu.core_type = #tpu.core_type<tc>} {
    %c0 = arith.constant 0 : index
    %c0_0 = arith.constant 0 : index
    %0 = vector.load %arg0[%c0, %c0_0] : memref<32x6xf32, #tpu.memory_space<vmem>>, vector<32x6xf32>
    %c0_1 = arith.constant 0 : index
    %c0_2 = arith.constant 0 : index
    %1 = vector.load %arg1[%c0_1, %c0_2] : memref<6x32xf32, #tpu.memory_space<vmem>>, vector<6x32xf32>
    %cst = arith.constant dense<0.000000e+00> : vector<32x32xf32>
    %2 = tpu.matmul %0, %1, %cst {dimension_numbers = #tpu.dot_dimension_numbers<[1], [0], [0], [1], [0, 0, 1, 1], [], []>} : vector<32x6xf32>, vector<6x32xf32>, vector<32x32xf32> -> vector<32x32xf32>
    %c0_3 = arith.constant 0 : index
    %c0_4 = arith.constant 0 : index
    %3 = vector.load %arg2[%c0_3, %c0_4] : memref<1x32xf32, #tpu.memory_space<vmem>>, vector<1x32xf32>
    %4 = vector.broadcast %3 : vector<1x32xf32> to vector<32x32xf32>
    %5 = arith.addf %2, %4 : vector<32x32xf32>
    %6 = math.tanh %5 : vector<32x32xf32>
    %7 = tpu.concatenate %6, %0, %0, %0 in 1 : vector<32x32xf32>, vector<32x6xf32>, vector<32x6xf32>, vector<32x6xf32> -> vector<32x50xf32>
    %c0_5 = arith.constant 0 : index
    %c0_6 = arith.constant 0 : index
    %8 = vector.load %arg3[%c0_5, %c0_6] : memref<50x384xf32, #tpu.memory_space<vmem>>, vector<50x384xf32>
    %cst_7 = arith.constant dense<0.000000e+00> : vector<32x384xf32>
    %9 = tpu.matmul %7, %8, %cst_7 {dimension_numbers = #tpu.dot_dimension_numbers<[1], [0], [0], [1], [0, 0, 1, 1], [], []>} : vector<32x50xf32>, vector<50x384xf32>, vector<32x384xf32> -> vector<32x384xf32>
    %c0_8 = arith.constant 0 : index
    %c0_9 = arith.constant 0 : index
    %c0_10 = arith.constant 0 : index
    %10 = vector.load %arg6[%c0_8, %c0_9, %c0_10] : memref<2x1x384xf32, #tpu.memory_space<vmem>>, vector<1x1x384xf32>
    %11 = vector.shape_cast %10 : vector<1x1x384xf32> to vector<1x384xf32>
    %12 = vector.broadcast %11 : vector<1x384xf32> to vector<32x384xf32>
    %13 = arith.addf %9, %12 : vector<32x384xf32>
    %c0_11 = arith.constant 0 : index
    %c0_12 = arith.constant 0 : index
    %c0_13 = arith.constant 0 : index
    %14 = vector.load %arg5[%c0_11, %c0_12, %c0_13] : memref<2x128x384xf32, #tpu.memory_space<vmem>>, vector<1x128x384xf32>
    %15 = vector.shape_cast %14 : vector<1x128x384xf32> to vector<128x384xf32>
    %c0_14 = arith.constant 0 : index
    %c0_15 = arith.constant 0 : index
    %c0_16 = arith.constant 0 : index
    %16 = vector.load %arg7[%c0_14, %c0_15, %c0_16] : memref<2x1x128xf32, #tpu.memory_space<vmem>>, vector<1x1x128xf32>
    %17 = vector.shape_cast %16 : vector<1x1x128xf32> to vector<1x128xf32>
    %18 = vector.shape_cast %17 : vector<1x128xf32> to vector<1x128xf32>
    %19 = vector.broadcast %18 : vector<1x128xf32> to vector<8x128xf32>
    %cst_17 = arith.constant 0.000000e+00 : f32
    %20 = vector.broadcast %cst_17 : f32 to vector<8x128xf32>
    %21 = vector.extract_strided_slice %13 {offsets = [0, 0], sizes = [8, 384], strides = [1, 1]} : vector<32x384xf32> to vector<8x384xf32>
    %cst_18 = arith.constant dense<0.000000e+00> : vector<8x384xf32>
    %22 = tpu.matmul %20, %15, %cst_18 {dimension_numbers = #tpu.dot_dimension_numbers<[1], [0], [0], [1], [0, 0, 1, 1], [], []>} : vector<8x128xf32>, vector<128x384xf32>, vector<8x384xf32> -> vector<8x384xf32>
    %23 = vector.extract_strided_slice %21 {offsets = [0, 0], sizes = [8, 128], strides = [1, 1]} : vector<8x384xf32> to vector<8x128xf32>
    %24 = vector.extract_strided_slice %22 {offsets = [0, 0], sizes = [8, 128], strides = [1, 1]} : vector<8x384xf32> to vector<8x128xf32>
    %25 = arith.addf %23, %24 : vector<8x128xf32>
    %26 = arith.negf %25 : vector<8x128xf32>
    %27 = math.exp %26 : vector<8x128xf32>
    %cst_19 = arith.constant 1.000000e+00 : f32
    %28 = vector.broadcast %cst_19 : f32 to vector<8x128xf32>
    %29 = arith.addf %28, %27 : vector<8x128xf32>
    %30 = arith.divf %28, %29 : vector<8x128xf32>
    %31 = vector.extract_strided_slice %21 {offsets = [0, 128], sizes = [8, 128], strides = [1, 1]} : vector<8x384xf32> to vector<8x128xf32>
    %32 = vector.extract_strided_slice %22 {offsets = [0, 128], sizes = [8, 128], strides = [1, 1]} : vector<8x384xf32> to vector<8x128xf32>
    %33 = arith.addf %31, %32 : vector<8x128xf32>
    %34 = arith.negf %33 : vector<8x128xf32>
    %35 = math.exp %34 : vector<8x128xf32>
    %cst_20 = arith.constant 1.000000e+00 : f32
    %36 = vector.broadcast %cst_20 : f32 to vector<8x128xf32>
    %37 = arith.addf %36, %35 : vector<8x128xf32>
    %38 = arith.divf %36, %37 : vector<8x128xf32>
    %39 = vector.extract_strided_slice %21 {offsets = [0, 256], sizes = [8, 128], strides = [1, 1]} : vector<8x384xf32> to vector<8x128xf32>
    %40 = vector.extract_strided_slice %22 {offsets = [0, 256], sizes = [8, 128], strides = [1, 1]} : vector<8x384xf32> to vector<8x128xf32>
    %41 = arith.addf %40, %19 : vector<8x128xf32>
    %42 = arith.mulf %30, %41 : vector<8x128xf32>
    %43 = arith.addf %39, %42 : vector<8x128xf32>
    %44 = math.tanh %43 : vector<8x128xf32>
    %cst_21 = arith.constant 1.000000e+00 : f32
    %45 = vector.broadcast %cst_21 : f32 to vector<8x128xf32>
    %46 = arith.subf %45, %38 : vector<8x128xf32>
    %47 = arith.mulf %46, %44 : vector<8x128xf32>
    %48 = arith.mulf %38, %20 : vector<8x128xf32>
    %49 = arith.addf %47, %48 : vector<8x128xf32>
    %c0_22 = arith.constant 0 : index
    %c0_23 = arith.constant 0 : index
    %50 = vector.load %arg19[%c0_22, %c0_23] : memref<32x128xf32, #tpu.memory_space<vmem>>, vector<8x128xf32>
    tpu.vector_store %arg19[%c0_22, %c0_23], %49 {strides = array<i32>} : memref<32x128xf32, #tpu.memory_space<vmem>>, vector<8x128xf32>,
    %51 = vector.extract_strided_slice %13 {offsets = [8, 0], sizes = [8, 384], strides = [1, 1]} : vector<32x384xf32> to vector<8x384xf32>
    %cst_24 = arith.constant dense<0.000000e+00> : vector<8x384xf32>
    %52 = tpu.matmul %49, %15, %cst_24 {dimension_numbers = #tpu.dot_dimension_numbers<[1], [0], [0], [1], [0, 0, 1, 1], [], []>} : vector<8x128xf32>, vector<128x384xf32>, vector<8x384xf32> -> vector<8x384xf32>
    %53 = vector.extract_strided_slice %51 {offsets = [0, 0], sizes = [8, 128], strides = [1, 1]} : vector<8x384xf32> to vector<8x128xf32>
    %54 = vector.extract_strided_slice %52 {offsets = [0, 0], sizes = [8, 128], strides = [1, 1]} : vector<8x384xf32> to vector<8x128xf32>
    %55 = arith.addf %53, %54 : vector<8x128xf32>
    %56 = arith.negf %55 : vector<8x128xf32>
    %57 = math.exp %56 : vector<8x128xf32>
    %cst_25 = arith.constant 1.000000e+00 : f32
    %58 = vector.broadcast %cst_25 : f32 to vector<8x128xf32>
    %59 = arith.addf %58, %57 : vector<8x128xf32>
    %60 = arith.divf %58, %59 : vector<8x128xf32>
    %61 = vector.extract_strided_slice %51 {offsets = [0, 128], sizes = [8, 128], strides = [1, 1]} : vector<8x384xf32> to vector<8x128xf32>
    %62 = vector.extract_strided_slice %52 {offsets = [0, 128], sizes = [8, 128], strides = [1, 1]} : vector<8x384xf32> to vector<8x128xf32>
    %63 = arith.addf %61, %62 : vector<8x128xf32>
    %64 = arith.negf %63 : vector<8x128xf32>
    %65 = math.exp %64 : vector<8x128xf32>
    %cst_26 = arith.constant 1.000000e+00 : f32
    %66 = vector.broadcast %cst_26 : f32 to vector<8x128xf32>
    %67 = arith.addf %66, %65 : vector<8x128xf32>
    %68 = arith.divf %66, %67 : vector<8x128xf32>
    %69 = vector.extract_strided_slice %51 {offsets = [0, 256], sizes = [8, 128], strides = [1, 1]} : vector<8x384xf32> to vector<8x128xf32>
    %70 = vector.extract_strided_slice %52 {offsets = [0, 256], sizes = [8, 128], strides = [1, 1]} : vector<8x384xf32> to vector<8x128xf32>
    %71 = arith.addf %70, %19 : vector<8x128xf32>
    %72 = arith.mulf %60, %71 : vector<8x128xf32>
    %73 = arith.addf %69, %72 : vector<8x128xf32>
    %74 = math.tanh %73 : vector<8x128xf32>
    %cst_27 = arith.constant 1.000000e+00 : f32
    %75 = vector.broadcast %cst_27 : f32 to vector<8x128xf32>
    %76 = arith.subf %75, %68 : vector<8x128xf32>
    %77 = arith.mulf %76, %74 : vector<8x128xf32>
    %78 = arith.mulf %68, %49 : vector<8x128xf32>
    %79 = arith.addf %77, %78 : vector<8x128xf32>
    %c8 = arith.constant 8 : index
    %c0_28 = arith.constant 0 : index
    %80 = vector.load %arg19[%c8, %c0_28] : memref<32x128xf32, #tpu.memory_space<vmem>>, vector<8x128xf32>
    tpu.vector_store %arg19[%c8, %c0_28], %79 {strides = array<i32>} : memref<32x128xf32, #tpu.memory_space<vmem>>, vector<8x128xf32>,
    %81 = vector.extract_strided_slice %13 {offsets = [16, 0], sizes = [8, 384], strides = [1, 1]} : vector<32x384xf32> to vector<8x384xf32>
    %cst_29 = arith.constant dense<0.000000e+00> : vector<8x384xf32>
    %82 = tpu.matmul %79, %15, %cst_29 {dimension_numbers = #tpu.dot_dimension_numbers<[1], [0], [0], [1], [0, 0, 1, 1], [], []>} : vector<8x128xf32>, vector<128x384xf32>, vector<8x384xf32> -> vector<8x384xf32>
    %83 = vector.extract_strided_slice %81 {offsets = [0, 0], sizes = [8, 128], strides = [1, 1]} : vector<8x384xf32> to vector<8x128xf32>
    %84 = vector.extract_strided_slice %82 {offsets = [0, 0], sizes = [8, 128], strides = [1, 1]} : vector<8x384xf32> to vector<8x128xf32>
    %85 = arith.addf %83, %84 : vector<8x128xf32>
    %86 = arith.negf %85 : vector<8x128xf32>
    %87 = math.exp %86 : vector<8x128xf32>
    %cst_30 = arith.constant 1.000000e+00 : f32
    %88 = vector.broadcast %cst_30 : f32 to vector<8x128xf32>
    %89 = arith.addf %88, %87 : vector<8x128xf32>
    %90 = arith.divf %88, %89 : vector<8x128xf32>
    %91 = vector.extract_strided_slice %81 {offsets = [0, 128], sizes = [8, 128], strides = [1, 1]} : vector<8x384xf32> to vector<8x128xf32>
    %92 = vector.extract_strided_slice %82 {offsets = [0, 128], sizes = [8, 128], strides = [1, 1]} : vector<8x384xf32> to vector<8x128xf32>
    %93 = arith.addf %91, %92 : vector<8x128xf32>
    %94 = arith.negf %93 : vector<8x128xf32>
    %95 = math.exp %94 : vector<8x128xf32>
    %cst_31 = arith.constant 1.000000e+00 : f32
    %96 = vector.broadcast %cst_31 : f32 to vector<8x128xf32>
    %97 = arith.addf %96, %95 : vector<8x128xf32>
    %98 = arith.divf %96, %97 : vector<8x128xf32>
    %99 = vector.extract_strided_slice %81 {offsets = [0, 256], sizes = [8, 128], strides = [1, 1]} : vector<8x384xf32> to vector<8x128xf32>
    %100 = vector.extract_strided_slice %82 {offsets = [0, 256], sizes = [8, 128], strides = [1, 1]} : vector<8x384xf32> to vector<8x128xf32>
    %101 = arith.addf %100, %19 : vector<8x128xf32>
    %102 = arith.mulf %90, %101 : vector<8x128xf32>
    %103 = arith.addf %99, %102 : vector<8x128xf32>
    %104 = math.tanh %103 : vector<8x128xf32>
    %cst_32 = arith.constant 1.000000e+00 : f32
    %105 = vector.broadcast %cst_32 : f32 to vector<8x128xf32>
    %106 = arith.subf %105, %98 : vector<8x128xf32>
    %107 = arith.mulf %106, %104 : vector<8x128xf32>
    %108 = arith.mulf %98, %79 : vector<8x128xf32>
    %109 = arith.addf %107, %108 : vector<8x128xf32>
    %c16 = arith.constant 16 : index
    %c0_33 = arith.constant 0 : index
    %110 = vector.load %arg19[%c16, %c0_33] : memref<32x128xf32, #tpu.memory_space<vmem>>, vector<8x128xf32>
    tpu.vector_store %arg19[%c16, %c0_33], %109 {strides = array<i32>} : memref<32x128xf32, #tpu.memory_space<vmem>>, vector<8x128xf32>,
    %111 = vector.extract_strided_slice %13 {offsets = [24, 0], sizes = [8, 384], strides = [1, 1]} : vector<32x384xf32> to vector<8x384xf32>
    %cst_34 = arith.constant dense<0.000000e+00> : vector<8x384xf32>
    %112 = tpu.matmul %109, %15, %cst_34 {dimension_numbers = #tpu.dot_dimension_numbers<[1], [0], [0], [1], [0, 0, 1, 1], [], []>} : vector<8x128xf32>, vector<128x384xf32>, vector<8x384xf32> -> vector<8x384xf32>
    %113 = vector.extract_strided_slice %111 {offsets = [0, 0], sizes = [8, 128], strides = [1, 1]} : vector<8x384xf32> to vector<8x128xf32>
    %114 = vector.extract_strided_slice %112 {offsets = [0, 0], sizes = [8, 128], strides = [1, 1]} : vector<8x384xf32> to vector<8x128xf32>
    %115 = arith.addf %113, %114 : vector<8x128xf32>
    %116 = arith.negf %115 : vector<8x128xf32>
    %117 = math.exp %116 : vector<8x128xf32>
    %cst_35 = arith.constant 1.000000e+00 : f32
    %118 = vector.broadcast %cst_35 : f32 to vector<8x128xf32>
    %119 = arith.addf %118, %117 : vector<8x128xf32>
    %120 = arith.divf %118, %119 : vector<8x128xf32>
    %121 = vector.extract_strided_slice %111 {offsets = [0, 128], sizes = [8, 128], strides = [1, 1]} : vector<8x384xf32> to vector<8x128xf32>
    %122 = vector.extract_strided_slice %112 {offsets = [0, 128], sizes = [8, 128], strides = [1, 1]} : vector<8x384xf32> to vector<8x128xf32>
    %123 = arith.addf %121, %122 : vector<8x128xf32>
    %124 = arith.negf %123 : vector<8x128xf32>
    %125 = math.exp %124 : vector<8x128xf32>
    %cst_36 = arith.constant 1.000000e+00 : f32
    %126 = vector.broadcast %cst_36 : f32 to vector<8x128xf32>
    %127 = arith.addf %126, %125 : vector<8x128xf32>
    %128 = arith.divf %126, %127 : vector<8x128xf32>
    %129 = vector.extract_strided_slice %111 {offsets = [0, 256], sizes = [8, 128], strides = [1, 1]} : vector<8x384xf32> to vector<8x128xf32>
    %130 = vector.extract_strided_slice %112 {offsets = [0, 256], sizes = [8, 128], strides = [1, 1]} : vector<8x384xf32> to vector<8x128xf32>
    %131 = arith.addf %130, %19 : vector<8x128xf32>
    %132 = arith.mulf %120, %131 : vector<8x128xf32>
    %133 = arith.addf %129, %132 : vector<8x128xf32>
    %134 = math.tanh %133 : vector<8x128xf32>
    %cst_37 = arith.constant 1.000000e+00 : f32
    %135 = vector.broadcast %cst_37 : f32 to vector<8x128xf32>
    %136 = arith.subf %135, %128 : vector<8x128xf32>
    %137 = arith.mulf %136, %134 : vector<8x128xf32>
    %138 = arith.mulf %128, %109 : vector<8x128xf32>
    %139 = arith.addf %137, %138 : vector<8x128xf32>
    %c24 = arith.constant 24 : index
    %c0_38 = arith.constant 0 : index
    %140 = vector.load %arg19[%c24, %c0_38] : memref<32x128xf32, #tpu.memory_space<vmem>>, vector<8x128xf32>
    tpu.vector_store %arg19[%c24, %c0_38], %139 {strides = array<i32>} : memref<32x128xf32, #tpu.memory_space<vmem>>, vector<8x128xf32>,
    %c0_39 = arith.constant 0 : index
    %c0_40 = arith.constant 0 : index
    %141 = vector.load %arg19[%c0_39, %c0_40] : memref<32x128xf32, #tpu.memory_space<vmem>>, vector<32x128xf32>
    %c0_41 = arith.constant 0 : index
    %c0_42 = arith.constant 0 : index
    %c0_43 = arith.constant 0 : index
    %142 = vector.load %arg4[%c0_41, %c0_42, %c0_43] : memref<1x128x384xf32, #tpu.memory_space<vmem>>, vector<1x128x384xf32>
    %143 = vector.shape_cast %142 : vector<1x128x384xf32> to vector<128x384xf32>
    %cst_44 = arith.constant dense<0.000000e+00> : vector<32x384xf32>
    %144 = tpu.matmul %141, %143, %cst_44 {dimension_numbers = #tpu.dot_dimension_numbers<[1], [0], [0], [1], [0, 0, 1, 1], [], []>} : vector<32x128xf32>, vector<128x384xf32>, vector<32x384xf32> -> vector<32x384xf32>
    %c1 = arith.constant 1 : index
    %c0_45 = arith.constant 0 : index
    %c0_46 = arith.constant 0 : index
    %145 = vector.load %arg6[%c1, %c0_45, %c0_46] : memref<2x1x384xf32, #tpu.memory_space<vmem>>, vector<1x1x384xf32>
    %146 = vector.shape_cast %145 : vector<1x1x384xf32> to vector<1x384xf32>
    %147 = vector.broadcast %146 : vector<1x384xf32> to vector<32x384xf32>
    %148 = arith.addf %144, %147 : vector<32x384xf32>
    %c1_47 = arith.constant 1 : index
    %c0_48 = arith.constant 0 : index
    %c0_49 = arith.constant 0 : index
    %149 = vector.load %arg5[%c1_47, %c0_48, %c0_49] : memref<2x128x384xf32, #tpu.memory_space<vmem>>, vector<1x128x384xf32>
    %150 = vector.shape_cast %149 : vector<1x128x384xf32> to vector<128x384xf32>
    %c1_50 = arith.constant 1 : index
    %c0_51 = arith.constant 0 : index
    %c0_52 = arith.constant 0 : index
    %151 = vector.load %arg7[%c1_50, %c0_51, %c0_52] : memref<2x1x128xf32, #tpu.memory_space<vmem>>, vector<1x1x128xf32>
    %152 = vector.shape_cast %151 : vector<1x1x128xf32> to vector<1x128xf32>
    %153 = vector.shape_cast %152 : vector<1x128xf32> to vector<1x128xf32>
    %154 = vector.broadcast %153 : vector<1x128xf32> to vector<8x128xf32>
    %cst_53 = arith.constant 0.000000e+00 : f32
    %155 = vector.broadcast %cst_53 : f32 to vector<8x128xf32>
    %156 = vector.extract_strided_slice %148 {offsets = [0, 0], sizes = [8, 384], strides = [1, 1]} : vector<32x384xf32> to vector<8x384xf32>
    %cst_54 = arith.constant dense<0.000000e+00> : vector<8x384xf32>
    %157 = tpu.matmul %155, %150, %cst_54 {dimension_numbers = #tpu.dot_dimension_numbers<[1], [0], [0], [1], [0, 0, 1, 1], [], []>} : vector<8x128xf32>, vector<128x384xf32>, vector<8x384xf32> -> vector<8x384xf32>
    %158 = vector.extract_strided_slice %156 {offsets = [0, 0], sizes = [8, 128], strides = [1, 1]} : vector<8x384xf32> to vector<8x128xf32>
    %159 = vector.extract_strided_slice %157 {offsets = [0, 0], sizes = [8, 128], strides = [1, 1]} : vector<8x384xf32> to vector<8x128xf32>
    %160 = arith.addf %158, %159 : vector<8x128xf32>
    %161 = arith.negf %160 : vector<8x128xf32>
    %162 = math.exp %161 : vector<8x128xf32>
    %cst_55 = arith.constant 1.000000e+00 : f32
    %163 = vector.broadcast %cst_55 : f32 to vector<8x128xf32>
    %164 = arith.addf %163, %162 : vector<8x128xf32>
    %165 = arith.divf %163, %164 : vector<8x128xf32>
    %166 = vector.extract_strided_slice %156 {offsets = [0, 128], sizes = [8, 128], strides = [1, 1]} : vector<8x384xf32> to vector<8x128xf32>
    %167 = vector.extract_strided_slice %157 {offsets = [0, 128], sizes = [8, 128], strides = [1, 1]} : vector<8x384xf32> to vector<8x128xf32>
    %168 = arith.addf %166, %167 : vector<8x128xf32>
    %169 = arith.negf %168 : vector<8x128xf32>
    %170 = math.exp %169 : vector<8x128xf32>
    %cst_56 = arith.constant 1.000000e+00 : f32
    %171 = vector.broadcast %cst_56 : f32 to vector<8x128xf32>
    %172 = arith.addf %171, %170 : vector<8x128xf32>
    %173 = arith.divf %171, %172 : vector<8x128xf32>
    %174 = vector.extract_strided_slice %156 {offsets = [0, 256], sizes = [8, 128], strides = [1, 1]} : vector<8x384xf32> to vector<8x128xf32>
    %175 = vector.extract_strided_slice %157 {offsets = [0, 256], sizes = [8, 128], strides = [1, 1]} : vector<8x384xf32> to vector<8x128xf32>
    %176 = arith.addf %175, %154 : vector<8x128xf32>
    %177 = arith.mulf %165, %176 : vector<8x128xf32>
    %178 = arith.addf %174, %177 : vector<8x128xf32>
    %179 = math.tanh %178 : vector<8x128xf32>
    %cst_57 = arith.constant 1.000000e+00 : f32
    %180 = vector.broadcast %cst_57 : f32 to vector<8x128xf32>
    %181 = arith.subf %180, %173 : vector<8x128xf32>
    %182 = arith.mulf %181, %179 : vector<8x128xf32>
    %183 = arith.mulf %173, %155 : vector<8x128xf32>
    %184 = arith.addf %182, %183 : vector<8x128xf32>
    %c0_58 = arith.constant 0 : index
    %c0_59 = arith.constant 0 : index
    %185 = vector.load %arg19[%c0_58, %c0_59] : memref<32x128xf32, #tpu.memory_space<vmem>>, vector<8x128xf32>
    tpu.vector_store %arg19[%c0_58, %c0_59], %184 {strides = array<i32>} : memref<32x128xf32, #tpu.memory_space<vmem>>, vector<8x128xf32>,
    %186 = vector.extract_strided_slice %148 {offsets = [8, 0], sizes = [8, 384], strides = [1, 1]} : vector<32x384xf32> to vector<8x384xf32>
    %cst_60 = arith.constant dense<0.000000e+00> : vector<8x384xf32>
    %187 = tpu.matmul %184, %150, %cst_60 {dimension_numbers = #tpu.dot_dimension_numbers<[1], [0], [0], [1], [0, 0, 1, 1], [], []>} : vector<8x128xf32>, vector<128x384xf32>, vector<8x384xf32> -> vector<8x384xf32>
    %188 = vector.extract_strided_slice %186 {offsets = [0, 0], sizes = [8, 128], strides = [1, 1]} : vector<8x384xf32> to vector<8x128xf32>
    %189 = vector.extract_strided_slice %187 {offsets = [0, 0], sizes = [8, 128], strides = [1, 1]} : vector<8x384xf32> to vector<8x128xf32>
    %190 = arith.addf %188, %189 : vector<8x128xf32>
    %191 = arith.negf %190 : vector<8x128xf32>
    %192 = math.exp %191 : vector<8x128xf32>
    %cst_61 = arith.constant 1.000000e+00 : f32
    %193 = vector.broadcast %cst_61 : f32 to vector<8x128xf32>
    %194 = arith.addf %193, %192 : vector<8x128xf32>
    %195 = arith.divf %193, %194 : vector<8x128xf32>
    %196 = vector.extract_strided_slice %186 {offsets = [0, 128], sizes = [8, 128], strides = [1, 1]} : vector<8x384xf32> to vector<8x128xf32>
    %197 = vector.extract_strided_slice %187 {offsets = [0, 128], sizes = [8, 128], strides = [1, 1]} : vector<8x384xf32> to vector<8x128xf32>
    %198 = arith.addf %196, %197 : vector<8x128xf32>
    %199 = arith.negf %198 : vector<8x128xf32>
    %200 = math.exp %199 : vector<8x128xf32>
    %cst_62 = arith.constant 1.000000e+00 : f32
    %201 = vector.broadcast %cst_62 : f32 to vector<8x128xf32>
    %202 = arith.addf %201, %200 : vector<8x128xf32>
    %203 = arith.divf %201, %202 : vector<8x128xf32>
    %204 = vector.extract_strided_slice %186 {offsets = [0, 256], sizes = [8, 128], strides = [1, 1]} : vector<8x384xf32> to vector<8x128xf32>
    %205 = vector.extract_strided_slice %187 {offsets = [0, 256], sizes = [8, 128], strides = [1, 1]} : vector<8x384xf32> to vector<8x128xf32>
    %206 = arith.addf %205, %154 : vector<8x128xf32>
    %207 = arith.mulf %195, %206 : vector<8x128xf32>
    %208 = arith.addf %204, %207 : vector<8x128xf32>
    %209 = math.tanh %208 : vector<8x128xf32>
    %cst_63 = arith.constant 1.000000e+00 : f32
    %210 = vector.broadcast %cst_63 : f32 to vector<8x128xf32>
    %211 = arith.subf %210, %203 : vector<8x128xf32>
    %212 = arith.mulf %211, %209 : vector<8x128xf32>
    %213 = arith.mulf %203, %184 : vector<8x128xf32>
    %214 = arith.addf %212, %213 : vector<8x128xf32>
    %c8_64 = arith.constant 8 : index
    %c0_65 = arith.constant 0 : index
    %215 = vector.load %arg19[%c8_64, %c0_65] : memref<32x128xf32, #tpu.memory_space<vmem>>, vector<8x128xf32>
    tpu.vector_store %arg19[%c8_64, %c0_65], %214 {strides = array<i32>} : memref<32x128xf32, #tpu.memory_space<vmem>>, vector<8x128xf32>,
    %216 = vector.extract_strided_slice %148 {offsets = [16, 0], sizes = [8, 384], strides = [1, 1]} : vector<32x384xf32> to vector<8x384xf32>
    %cst_66 = arith.constant dense<0.000000e+00> : vector<8x384xf32>
    %217 = tpu.matmul %214, %150, %cst_66 {dimension_numbers = #tpu.dot_dimension_numbers<[1], [0], [0], [1], [0, 0, 1, 1], [], []>} : vector<8x128xf32>, vector<128x384xf32>, vector<8x384xf32> -> vector<8x384xf32>
    %218 = vector.extract_strided_slice %216 {offsets = [0, 0], sizes = [8, 128], strides = [1, 1]} : vector<8x384xf32> to vector<8x128xf32>
    %219 = vector.extract_strided_slice %217 {offsets = [0, 0], sizes = [8, 128], strides = [1, 1]} : vector<8x384xf32> to vector<8x128xf32>
    %220 = arith.addf %218, %219 : vector<8x128xf32>
    %221 = arith.negf %220 : vector<8x128xf32>
    %222 = math.exp %221 : vector<8x128xf32>
    %cst_67 = arith.constant 1.000000e+00 : f32
    %223 = vector.broadcast %cst_67 : f32 to vector<8x128xf32>
    %224 = arith.addf %223, %222 : vector<8x128xf32>
    %225 = arith.divf %223, %224 : vector<8x128xf32>
    %226 = vector.extract_strided_slice %216 {offsets = [0, 128], sizes = [8, 128], strides = [1, 1]} : vector<8x384xf32> to vector<8x128xf32>
    %227 = vector.extract_strided_slice %217 {offsets = [0, 128], sizes = [8, 128], strides = [1, 1]} : vector<8x384xf32> to vector<8x128xf32>
    %228 = arith.addf %226, %227 : vector<8x128xf32>
    %229 = arith.negf %228 : vector<8x128xf32>
    %230 = math.exp %229 : vector<8x128xf32>
    %cst_68 = arith.constant 1.000000e+00 : f32
    %231 = vector.broadcast %cst_68 : f32 to vector<8x128xf32>
    %232 = arith.addf %231, %230 : vector<8x128xf32>
    %233 = arith.divf %231, %232 : vector<8x128xf32>
    %234 = vector.extract_strided_slice %216 {offsets = [0, 256], sizes = [8, 128], strides = [1, 1]} : vector<8x384xf32> to vector<8x128xf32>
    %235 = vector.extract_strided_slice %217 {offsets = [0, 256], sizes = [8, 128], strides = [1, 1]} : vector<8x384xf32> to vector<8x128xf32>
    %236 = arith.addf %235, %154 : vector<8x128xf32>
    %237 = arith.mulf %225, %236 : vector<8x128xf32>
    %238 = arith.addf %234, %237 : vector<8x128xf32>
    %239 = math.tanh %238 : vector<8x128xf32>
    %cst_69 = arith.constant 1.000000e+00 : f32
    %240 = vector.broadcast %cst_69 : f32 to vector<8x128xf32>
    %241 = arith.subf %240, %233 : vector<8x128xf32>
    %242 = arith.mulf %241, %239 : vector<8x128xf32>
    %243 = arith.mulf %233, %214 : vector<8x128xf32>
    %244 = arith.addf %242, %243 : vector<8x128xf32>
    %c16_70 = arith.constant 16 : index
    %c0_71 = arith.constant 0 : index
    %245 = vector.load %arg19[%c16_70, %c0_71] : memref<32x128xf32, #tpu.memory_space<vmem>>, vector<8x128xf32>
    tpu.vector_store %arg19[%c16_70, %c0_71], %244 {strides = array<i32>} : memref<32x128xf32, #tpu.memory_space<vmem>>, vector<8x128xf32>,
    %246 = vector.extract_strided_slice %148 {offsets = [24, 0], sizes = [8, 384], strides = [1, 1]} : vector<32x384xf32> to vector<8x384xf32>
    %cst_72 = arith.constant dense<0.000000e+00> : vector<8x384xf32>
    %247 = tpu.matmul %244, %150, %cst_72 {dimension_numbers = #tpu.dot_dimension_numbers<[1], [0], [0], [1], [0, 0, 1, 1], [], []>} : vector<8x128xf32>, vector<128x384xf32>, vector<8x384xf32> -> vector<8x384xf32>
    %248 = vector.extract_strided_slice %246 {offsets = [0, 0], sizes = [8, 128], strides = [1, 1]} : vector<8x384xf32> to vector<8x128xf32>
    %249 = vector.extract_strided_slice %247 {offsets = [0, 0], sizes = [8, 128], strides = [1, 1]} : vector<8x384xf32> to vector<8x128xf32>
    %250 = arith.addf %248, %249 : vector<8x128xf32>
    %251 = arith.negf %250 : vector<8x128xf32>
    %252 = math.exp %251 : vector<8x128xf32>
    %cst_73 = arith.constant 1.000000e+00 : f32
    %253 = vector.broadcast %cst_73 : f32 to vector<8x128xf32>
    %254 = arith.addf %253, %252 : vector<8x128xf32>
    %255 = arith.divf %253, %254 : vector<8x128xf32>
    %256 = vector.extract_strided_slice %246 {offsets = [0, 128], sizes = [8, 128], strides = [1, 1]} : vector<8x384xf32> to vector<8x128xf32>
    %257 = vector.extract_strided_slice %247 {offsets = [0, 128], sizes = [8, 128], strides = [1, 1]} : vector<8x384xf32> to vector<8x128xf32>
    %258 = arith.addf %256, %257 : vector<8x128xf32>
    %259 = arith.negf %258 : vector<8x128xf32>
    %260 = math.exp %259 : vector<8x128xf32>
    %cst_74 = arith.constant 1.000000e+00 : f32
    %261 = vector.broadcast %cst_74 : f32 to vector<8x128xf32>
    %262 = arith.addf %261, %260 : vector<8x128xf32>
    %263 = arith.divf %261, %262 : vector<8x128xf32>
    %264 = vector.extract_strided_slice %246 {offsets = [0, 256], sizes = [8, 128], strides = [1, 1]} : vector<8x384xf32> to vector<8x128xf32>
    %265 = vector.extract_strided_slice %247 {offsets = [0, 256], sizes = [8, 128], strides = [1, 1]} : vector<8x384xf32> to vector<8x128xf32>
    %266 = arith.addf %265, %154 : vector<8x128xf32>
    %267 = arith.mulf %255, %266 : vector<8x128xf32>
    %268 = arith.addf %264, %267 : vector<8x128xf32>
    %269 = math.tanh %268 : vector<8x128xf32>
    %cst_75 = arith.constant 1.000000e+00 : f32
    %270 = vector.broadcast %cst_75 : f32 to vector<8x128xf32>
    %271 = arith.subf %270, %263 : vector<8x128xf32>
    %272 = arith.mulf %271, %269 : vector<8x128xf32>
    %273 = arith.mulf %263, %244 : vector<8x128xf32>
    %274 = arith.addf %272, %273 : vector<8x128xf32>
    %c24_76 = arith.constant 24 : index
    %c0_77 = arith.constant 0 : index
    %275 = vector.load %arg19[%c24_76, %c0_77] : memref<32x128xf32, #tpu.memory_space<vmem>>, vector<8x128xf32>
    tpu.vector_store %arg19[%c24_76, %c0_77], %274 {strides = array<i32>} : memref<32x128xf32, #tpu.memory_space<vmem>>, vector<8x128xf32>,
    %276 = vector.extract_strided_slice %274 {offsets = [0, 0], sizes = [8, 32], strides = [1, 1]} : vector<8x128xf32> to vector<8x32xf32>
    %c0_78 = arith.constant 0 : index
    %c0_79 = arith.constant 0 : index
    %277 = vector.load %arg19[%c0_78, %c0_79] : memref<32x128xf32, #tpu.memory_space<vmem>>, vector<32x128xf32>
    %278 = vector.extract_strided_slice %277 {offsets = [0, 0], sizes = [32, 32], strides = [1, 1]} : vector<32x128xf32> to vector<32x32xf32>
    %c0_80 = arith.constant 0 : index
    %c0_81 = arith.constant 0 : index
    %279 = vector.load %arg8[%c0_80, %c0_81] : memref<32x16xf32, #tpu.memory_space<vmem>>, vector<32x16xf32>
    %cst_82 = arith.constant dense<0.000000e+00> : vector<32x16xf32>
    %280 = tpu.matmul %278, %279, %cst_82 {dimension_numbers = #tpu.dot_dimension_numbers<[1], [0], [0], [1], [0, 0, 1, 1], [], []>} : vector<32x32xf32>, vector<32x16xf32>, vector<32x16xf32> -> vector<32x16xf32>
    %c0_83 = arith.constant 0 : index
    %c0_84 = arith.constant 0 : index
    %281 = vector.load %arg9[%c0_83, %c0_84] : memref<1x16xf32, #tpu.memory_space<vmem>>, vector<1x16xf32>
    %282 = vector.broadcast %281 : vector<1x16xf32> to vector<32x16xf32>
    %283 = arith.addf %280, %282 : vector<32x16xf32>
    %284 = math.tanh %283 : vector<32x16xf32>
    %c0_85 = arith.constant 0 : index
    %c0_86 = arith.constant 0 : index
    %285 = vector.load %arg10[%c0_85, %c0_86] : memref<16x1xf32, #tpu.memory_space<vmem>>, vector<16x1xf32>
    %cst_87 = arith.constant dense<0.000000e+00> : vector<32x1xf32>
    %286 = tpu.matmul %284, %285, %cst_87 {dimension_numbers = #tpu.dot_dimension_numbers<[1], [0], [0], [1], [0, 0, 1, 1], [], []>} : vector<32x16xf32>, vector<16x1xf32>, vector<32x1xf32> -> vector<32x1xf32>
    %287 = vector.extract_strided_slice %286 {offsets = [0, 0], sizes = [8, 1], strides = [1, 1]} : vector<32x1xf32> to vector<8x1xf32>
    %288 = vector.extract_strided_slice %286 {offsets = [8, 0], sizes = [8, 1], strides = [1, 1]} : vector<32x1xf32> to vector<8x1xf32>
    %289 = vector.extract_strided_slice %286 {offsets = [16, 0], sizes = [8, 1], strides = [1, 1]} : vector<32x1xf32> to vector<8x1xf32>
    %290 = vector.extract_strided_slice %286 {offsets = [24, 0], sizes = [8, 1], strides = [1, 1]} : vector<32x1xf32> to vector<8x1xf32>
    %291 = arith.maximumf %287, %288 : vector<8x1xf32>
    %292 = arith.maximumf %291, %289 : vector<8x1xf32>
    %293 = arith.maximumf %292, %290 : vector<8x1xf32>
    %294 = arith.subf %287, %293 : vector<8x1xf32>
    %295 = math.exp %294 : vector<8x1xf32>
    %296 = arith.subf %288, %293 : vector<8x1xf32>
    %297 = math.exp %296 : vector<8x1xf32>
    %298 = arith.subf %289, %293 : vector<8x1xf32>
    %299 = math.exp %298 : vector<8x1xf32>
    %300 = arith.subf %290, %293 : vector<8x1xf32>
    %301 = math.exp %300 : vector<8x1xf32>
    %302 = arith.addf %295, %297 : vector<8x1xf32>
    %303 = arith.addf %302, %299 : vector<8x1xf32>
    %304 = arith.addf %303, %301 : vector<8x1xf32>
    %cst_88 = arith.constant 1.000000e+00 : f32
    %305 = vector.broadcast %cst_88 : f32 to vector<8x1xf32>
    %306 = arith.divf %305, %304 : vector<8x1xf32>
    %307 = arith.mulf %295, %306 : vector<8x1xf32>
    %308 = vector.extract_strided_slice %278 {offsets = [0, 0], sizes = [8, 32], strides = [1, 1]} : vector<32x32xf32> to vector<8x32xf32>
    %309 = vector.broadcast %307 : vector<8x1xf32> to vector<8x32xf32>
    %310 = arith.mulf %309, %308 : vector<8x32xf32>
    %311 = arith.mulf %297, %306 : vector<8x1xf32>
    %312 = vector.extract_strided_slice %278 {offsets = [8, 0], sizes = [8, 32], strides = [1, 1]} : vector<32x32xf32> to vector<8x32xf32>
    %313 = vector.broadcast %311 : vector<8x1xf32> to vector<8x32xf32>
    %314 = arith.mulf %313, %312 : vector<8x32xf32>
    %315 = arith.addf %310, %314 : vector<8x32xf32>
    %316 = arith.mulf %299, %306 : vector<8x1xf32>
    %317 = vector.extract_strided_slice %278 {offsets = [16, 0], sizes = [8, 32], strides = [1, 1]} : vector<32x32xf32> to vector<8x32xf32>
    %318 = vector.broadcast %316 : vector<8x1xf32> to vector<8x32xf32>
    %319 = arith.mulf %318, %317 : vector<8x32xf32>
    %320 = arith.addf %315, %319 : vector<8x32xf32>
    %321 = arith.mulf %301, %306 : vector<8x1xf32>
    %322 = vector.extract_strided_slice %278 {offsets = [24, 0], sizes = [8, 32], strides = [1, 1]} : vector<32x32xf32> to vector<8x32xf32>
    %323 = vector.broadcast %321 : vector<8x1xf32> to vector<8x32xf32>
    %324 = arith.mulf %323, %322 : vector<8x32xf32>
    %325 = arith.addf %320, %324 : vector<8x32xf32>
    %c0_89 = arith.constant 0 : index
    %c0_90 = arith.constant 0 : index
    %326 = vector.load %arg11[%c0_89, %c0_90] : memref<32x8xf32, #tpu.memory_space<vmem>>, vector<32x8xf32>
    %cst_91 = arith.constant dense<0.000000e+00> : vector<8x8xf32>
    %327 = tpu.matmul %276, %326, %cst_91 {dimension_numbers = #tpu.dot_dimension_numbers<[1], [0], [0], [1], [0, 0, 1, 1], [], []>} : vector<8x32xf32>, vector<32x8xf32>, vector<8x8xf32> -> vector<8x8xf32>
    %c0_92 = arith.constant 0 : index
    %c0_93 = arith.constant 0 : index
    %328 = vector.load %arg12[%c0_92, %c0_93] : memref<1x3xf32, #tpu.memory_space<vmem>>, vector<1x3xf32>
    %329 = tpu.iota {dimensions = array<i32: 0>} : vector<8x8xi32>
    %330 = tpu.iota {dimensions = array<i32: 1>} : vector<8x8xi32>
    %331 = arith.cmpi eq, %329, %330 : vector<8x8xi32>
    %332 = arith.extui %331 : vector<8x8xi1> to vector<8x8xi32>
    %333 = arith.sitofp %332 : vector<8x8xi32> to vector<8x8xf32>
    %334 = vector.extract_strided_slice %274 {offsets = [0, 32], sizes = [8, 32], strides = [1, 1]} : vector<8x128xf32> to vector<8x32xf32>
    %335 = arith.mulf %334, %334 : vector<8x32xf32>
    %cst_94 = arith.constant dense<0.000000e+00> : vector<8xf32>
    %336 = vector.multi_reduction <add>, %335, %cst_94 [1] : vector<8x32xf32> to vector<8xf32>
    %337 = vector.shape_cast %336 : vector<8xf32> to vector<8x1xf32>
    %338 = math.sqrt %337 : vector<8x1xf32>
    %cst_95 = arith.constant 9.99999997E-7 : f32
    %339 = vector.broadcast %cst_95 : f32 to vector<8x1xf32>
    %340 = arith.maximumf %338, %339 : vector<8x1xf32>
    %341 = vector.broadcast %340 : vector<8x1xf32> to vector<8x32xf32>
    %342 = arith.divf %334, %341 : vector<8x32xf32>
    "tpu.trace_start"() <{level = 10 : i32, message = "ik,jk->ij"}> : () -> ()
    %cst_96 = arith.constant dense<0.000000e+00> : vector<8x8xf32>
    %343 = tpu.matmul %342, %342, %cst_96 {dimension_numbers = #tpu.dot_dimension_numbers<[1], [1], [0], [0], [0, 0, 1, 0], [], []>} : vector<8x32xf32>, vector<8x32xf32>, vector<8x8xf32> -> vector<8x8xf32>
    "tpu.trace_stop"() : () -> ()
    %344 = arith.subf %343, %333 : vector<8x8xf32>
    %345 = vector.extract_strided_slice %327 {offsets = [0, 0], sizes = [8, 1], strides = [1, 1]} : vector<8x8xf32> to vector<8x1xf32>
    %346 = vector.extract_strided_slice %327 {offsets = [0, 1], sizes = [8, 1], strides = [1, 1]} : vector<8x8xf32> to vector<8x1xf32>
    %347 = tpu.transpose %346, [1, 0] : vector<8x1xf32> -> vector<1x8xf32>
    %348 = vector.broadcast %345 : vector<8x1xf32> to vector<8x8xf32>
    %349 = vector.broadcast %347 : vector<1x8xf32> to vector<8x8xf32>
    %350 = arith.addf %348, %349 : vector<8x8xf32>
    %351 = vector.extract_strided_slice %328 {offsets = [0, 0], sizes = [1, 1], strides = [1, 1]} : vector<1x3xf32> to vector<1x1xf32>
    %352 = vector.broadcast %351 : vector<1x1xf32> to vector<8x8xf32>
    %353 = arith.addf %350, %352 : vector<8x8xf32>
    %cst_97 = arith.constant 0.000000e+00 : f32
    %354 = vector.broadcast %cst_97 : f32 to vector<8x8xf32>
    %355 = arith.cmpf ogt, %353, %354 : vector<8x8xf32>
    %cst_98 = arith.constant 0.00999999977 : f32
    %356 = vector.broadcast %cst_98 : f32 to vector<8x8xf32>
    %357 = arith.mulf %356, %353 : vector<8x8xf32>
    %358 = arith.select %355, %353, %357 : vector<8x8xi1>, vector<8x8xf32>
    %cst_99 = arith.constant 0.000000e+00 : f32
    %359 = vector.broadcast %cst_99 : f32 to vector<8x8xf32>
    %360 = arith.cmpf oeq, %344, %359 : vector<8x8xf32>
    %361 = arith.mulf %344, %358 : vector<8x8xf32>
    %cst_100 = arith.constant -1.000000e+10 : f32
    %362 = vector.broadcast %cst_100 : f32 to vector<8x8xf32>
    %363 = arith.select %360, %362, %361 : vector<8x8xi1>, vector<8x8xf32>
    %cst_101 = arith.constant dense<0xFF800000> : vector<8xf32>
    %364 = vector.multi_reduction <maximumf>, %363, %cst_101 [1] : vector<8x8xf32> to vector<8xf32>
    %365 = vector.shape_cast %364 : vector<8xf32> to vector<8x1xf32>
    %366 = vector.broadcast %365 : vector<8x1xf32> to vector<8x8xf32>
    %367 = arith.subf %363, %366 : vector<8x8xf32>
    %368 = math.exp %367 : vector<8x8xf32>
    %cst_102 = arith.constant dense<0.000000e+00> : vector<8xf32>
    %369 = vector.multi_reduction <add>, %368, %cst_102 [1] : vector<8x8xf32> to vector<8xf32>
    %370 = vector.shape_cast %369 : vector<8xf32> to vector<8x1xf32>
    %371 = vector.broadcast %370 : vector<8x1xf32> to vector<8x8xf32>
    %372 = arith.divf %368, %371 : vector<8x8xf32>
    %cst_103 = arith.constant dense<0.000000e+00> : vector<8x32xf32>
    %373 = tpu.matmul %372, %276, %cst_103 {dimension_numbers = #tpu.dot_dimension_numbers<[1], [0], [0], [1], [0, 0, 1, 1], [], []>} : vector<8x8xf32>, vector<8x32xf32>, vector<8x32xf32> -> vector<8x32xf32>
    %374 = vector.extract_strided_slice %274 {offsets = [0, 64], sizes = [8, 32], strides = [1, 1]} : vector<8x128xf32> to vector<8x32xf32>
    %375 = arith.mulf %374, %374 : vector<8x32xf32>
    %cst_104 = arith.constant dense<0.000000e+00> : vector<8xf32>
    %376 = vector.multi_reduction <add>, %375, %cst_104 [1] : vector<8x32xf32> to vector<8xf32>
    %377 = vector.shape_cast %376 : vector<8xf32> to vector<8x1xf32>
    %378 = math.sqrt %377 : vector<8x1xf32>
    %cst_105 = arith.constant 9.99999997E-7 : f32
    %379 = vector.broadcast %cst_105 : f32 to vector<8x1xf32>
    %380 = arith.maximumf %378, %379 : vector<8x1xf32>
    %381 = vector.broadcast %380 : vector<8x1xf32> to vector<8x32xf32>
    %382 = arith.divf %374, %381 : vector<8x32xf32>
    "tpu.trace_start"() <{level = 10 : i32, message = "ik,jk->ij"}> : () -> ()
    %cst_106 = arith.constant dense<0.000000e+00> : vector<8x8xf32>
    %383 = tpu.matmul %382, %382, %cst_106 {dimension_numbers = #tpu.dot_dimension_numbers<[1], [1], [0], [0], [0, 0, 1, 0], [], []>} : vector<8x32xf32>, vector<8x32xf32>, vector<8x8xf32> -> vector<8x8xf32>
    "tpu.trace_stop"() : () -> ()
    %384 = arith.subf %383, %333 : vector<8x8xf32>
    %385 = vector.extract_strided_slice %327 {offsets = [0, 2], sizes = [8, 1], strides = [1, 1]} : vector<8x8xf32> to vector<8x1xf32>
    %386 = vector.extract_strided_slice %327 {offsets = [0, 3], sizes = [8, 1], strides = [1, 1]} : vector<8x8xf32> to vector<8x1xf32>
    %387 = tpu.transpose %386, [1, 0] : vector<8x1xf32> -> vector<1x8xf32>
    %388 = vector.broadcast %385 : vector<8x1xf32> to vector<8x8xf32>
    %389 = vector.broadcast %387 : vector<1x8xf32> to vector<8x8xf32>
    %390 = arith.addf %388, %389 : vector<8x8xf32>
    %391 = vector.extract_strided_slice %328 {offsets = [0, 1], sizes = [1, 1], strides = [1, 1]} : vector<1x3xf32> to vector<1x1xf32>
    %392 = vector.broadcast %391 : vector<1x1xf32> to vector<8x8xf32>
    %393 = arith.addf %390, %392 : vector<8x8xf32>
    %cst_107 = arith.constant 0.000000e+00 : f32
    %394 = vector.broadcast %cst_107 : f32 to vector<8x8xf32>
    %395 = arith.cmpf ogt, %393, %394 : vector<8x8xf32>
    %cst_108 = arith.constant 0.00999999977 : f32
    %396 = vector.broadcast %cst_108 : f32 to vector<8x8xf32>
    %397 = arith.mulf %396, %393 : vector<8x8xf32>
    %398 = arith.select %395, %393, %397 : vector<8x8xi1>, vector<8x8xf32>
    %cst_109 = arith.constant 0.000000e+00 : f32
    %399 = vector.broadcast %cst_109 : f32 to vector<8x8xf32>
    %400 = arith.cmpf oeq, %384, %399 : vector<8x8xf32>
    %401 = arith.mulf %384, %398 : vector<8x8xf32>
    %cst_110 = arith.constant -1.000000e+10 : f32
    %402 = vector.broadcast %cst_110 : f32 to vector<8x8xf32>
    %403 = arith.select %400, %402, %401 : vector<8x8xi1>, vector<8x8xf32>
    %cst_111 = arith.constant dense<0xFF800000> : vector<8xf32>
    %404 = vector.multi_reduction <maximumf>, %403, %cst_111 [1] : vector<8x8xf32> to vector<8xf32>
    %405 = vector.shape_cast %404 : vector<8xf32> to vector<8x1xf32>
    %406 = vector.broadcast %405 : vector<8x1xf32> to vector<8x8xf32>
    %407 = arith.subf %403, %406 : vector<8x8xf32>
    %408 = math.exp %407 : vector<8x8xf32>
    %cst_112 = arith.constant dense<0.000000e+00> : vector<8xf32>
    %409 = vector.multi_reduction <add>, %408, %cst_112 [1] : vector<8x8xf32> to vector<8xf32>
    %410 = vector.shape_cast %409 : vector<8xf32> to vector<8x1xf32>
    %411 = vector.broadcast %410 : vector<8x1xf32> to vector<8x8xf32>
    %412 = arith.divf %408, %411 : vector<8x8xf32>
    %cst_113 = arith.constant dense<0.000000e+00> : vector<8x32xf32>
    %413 = tpu.matmul %412, %276, %cst_113 {dimension_numbers = #tpu.dot_dimension_numbers<[1], [0], [0], [1], [0, 0, 1, 1], [], []>} : vector<8x8xf32>, vector<8x32xf32>, vector<8x32xf32> -> vector<8x32xf32>
    %414 = vector.extract_strided_slice %274 {offsets = [0, 96], sizes = [8, 32], strides = [1, 1]} : vector<8x128xf32> to vector<8x32xf32>
    %415 = arith.mulf %414, %414 : vector<8x32xf32>
    %cst_114 = arith.constant dense<0.000000e+00> : vector<8xf32>
    %416 = vector.multi_reduction <add>, %415, %cst_114 [1] : vector<8x32xf32> to vector<8xf32>
    %417 = vector.shape_cast %416 : vector<8xf32> to vector<8x1xf32>
    %418 = math.sqrt %417 : vector<8x1xf32>
    %cst_115 = arith.constant 9.99999997E-7 : f32
    %419 = vector.broadcast %cst_115 : f32 to vector<8x1xf32>
    %420 = arith.maximumf %418, %419 : vector<8x1xf32>
    %421 = vector.broadcast %420 : vector<8x1xf32> to vector<8x32xf32>
    %422 = arith.divf %414, %421 : vector<8x32xf32>
    "tpu.trace_start"() <{level = 10 : i32, message = "ik,jk->ij"}> : () -> ()
    %cst_116 = arith.constant dense<0.000000e+00> : vector<8x8xf32>
    %423 = tpu.matmul %422, %422, %cst_116 {dimension_numbers = #tpu.dot_dimension_numbers<[1], [1], [0], [0], [0, 0, 1, 0], [], []>} : vector<8x32xf32>, vector<8x32xf32>, vector<8x8xf32> -> vector<8x8xf32>
    "tpu.trace_stop"() : () -> ()
    %424 = arith.subf %423, %333 : vector<8x8xf32>
    %425 = vector.extract_strided_slice %327 {offsets = [0, 4], sizes = [8, 1], strides = [1, 1]} : vector<8x8xf32> to vector<8x1xf32>
    %426 = vector.extract_strided_slice %327 {offsets = [0, 5], sizes = [8, 1], strides = [1, 1]} : vector<8x8xf32> to vector<8x1xf32>
    %427 = tpu.transpose %426, [1, 0] : vector<8x1xf32> -> vector<1x8xf32>
    %428 = vector.broadcast %425 : vector<8x1xf32> to vector<8x8xf32>
    %429 = vector.broadcast %427 : vector<1x8xf32> to vector<8x8xf32>
    %430 = arith.addf %428, %429 : vector<8x8xf32>
    %431 = vector.extract_strided_slice %328 {offsets = [0, 2], sizes = [1, 1], strides = [1, 1]} : vector<1x3xf32> to vector<1x1xf32>
    %432 = vector.broadcast %431 : vector<1x1xf32> to vector<8x8xf32>
    %433 = arith.addf %430, %432 : vector<8x8xf32>
    %cst_117 = arith.constant 0.000000e+00 : f32
    %434 = vector.broadcast %cst_117 : f32 to vector<8x8xf32>
    %435 = arith.cmpf ogt, %433, %434 : vector<8x8xf32>
    %cst_118 = arith.constant 0.00999999977 : f32
    %436 = vector.broadcast %cst_118 : f32 to vector<8x8xf32>
    %437 = arith.mulf %436, %433 : vector<8x8xf32>
    %438 = arith.select %435, %433, %437 : vector<8x8xi1>, vector<8x8xf32>
    %cst_119 = arith.constant 0.000000e+00 : f32
    %439 = vector.broadcast %cst_119 : f32 to vector<8x8xf32>
    %440 = arith.cmpf oeq, %424, %439 : vector<8x8xf32>
    %441 = arith.mulf %424, %438 : vector<8x8xf32>
    %cst_120 = arith.constant -1.000000e+10 : f32
    %442 = vector.broadcast %cst_120 : f32 to vector<8x8xf32>
    %443 = arith.select %440, %442, %441 : vector<8x8xi1>, vector<8x8xf32>
    %cst_121 = arith.constant dense<0xFF800000> : vector<8xf32>
    %444 = vector.multi_reduction <maximumf>, %443, %cst_121 [1] : vector<8x8xf32> to vector<8xf32>
    %445 = vector.shape_cast %444 : vector<8xf32> to vector<8x1xf32>
    %446 = vector.broadcast %445 : vector<8x1xf32> to vector<8x8xf32>
    %447 = arith.subf %443, %446 : vector<8x8xf32>
    %448 = math.exp %447 : vector<8x8xf32>
    %cst_122 = arith.constant dense<0.000000e+00> : vector<8xf32>
    %449 = vector.multi_reduction <add>, %448, %cst_122 [1] : vector<8x8xf32> to vector<8xf32>
    %450 = vector.shape_cast %449 : vector<8xf32> to vector<8x1xf32>
    %451 = vector.broadcast %450 : vector<8x1xf32> to vector<8x8xf32>
    %452 = arith.divf %448, %451 : vector<8x8xf32>
    %cst_123 = arith.constant dense<0.000000e+00> : vector<8x32xf32>
    %453 = tpu.matmul %452, %276, %cst_123 {dimension_numbers = #tpu.dot_dimension_numbers<[1], [0], [0], [1], [0, 0, 1, 1], [], []>} : vector<8x8xf32>, vector<8x32xf32>, vector<8x32xf32> -> vector<8x32xf32>
    %454 = tpu.concatenate %373, %413, %453 in 1 : vector<8x32xf32>, vector<8x32xf32>, vector<8x32xf32> -> vector<8x96xf32>
    %c0_124 = arith.constant 0 : index
    %c0_125 = arith.constant 0 : index
    %455 = vector.load %arg14[%c0_124, %c0_125] : memref<8x40xf32, #tpu.memory_space<vmem>>, vector<8x40xf32>
    %c0_126 = arith.constant 0 : index
    %c0_127 = arith.constant 0 : index
    %456 = vector.load %arg15[%c0_126, %c0_127] : memref<40x16xf32, #tpu.memory_space<vmem>>, vector<40x16xf32>
    %cst_128 = arith.constant dense<0.000000e+00> : vector<8x16xf32>
    %457 = tpu.matmul %455, %456, %cst_128 {dimension_numbers = #tpu.dot_dimension_numbers<[1], [0], [0], [1], [0, 0, 1, 1], [], []>} : vector<8x40xf32>, vector<40x16xf32>, vector<8x16xf32> -> vector<8x16xf32>
    %458 = vector.extract_strided_slice %457 {offsets = [0, 0], sizes = [8, 8], strides = [1, 1]} : vector<8x16xf32> to vector<8x8xf32>
    %459 = vector.extract_strided_slice %457 {offsets = [0, 8], sizes = [8, 8], strides = [1, 1]} : vector<8x16xf32> to vector<8x8xf32>
    %460 = vector.extract_strided_slice %327 {offsets = [0, 6], sizes = [8, 1], strides = [1, 1]} : vector<8x8xf32> to vector<8x1xf32>
    %461 = vector.extract_strided_slice %327 {offsets = [0, 7], sizes = [8, 1], strides = [1, 1]} : vector<8x8xf32> to vector<8x1xf32>
    %462 = tpu.transpose %461, [1, 0] : vector<8x1xf32> -> vector<1x8xf32>
    %463 = vector.broadcast %460 : vector<8x1xf32> to vector<8x8xf32>
    %464 = vector.broadcast %462 : vector<1x8xf32> to vector<8x8xf32>
    %465 = arith.addf %463, %464 : vector<8x8xf32>
    %466 = arith.addf %465, %458 : vector<8x8xf32>
    %c0_129 = arith.constant 0 : index
    %c0_130 = arith.constant 0 : index
    %467 = vector.load %arg13[%c0_129, %c0_130] : memref<1x1xf32, #tpu.memory_space<vmem>>, vector<1x1xf32>
    %468 = vector.broadcast %467 : vector<1x1xf32> to vector<8x8xf32>
    %469 = arith.addf %466, %468 : vector<8x8xf32>
    %cst_131 = arith.constant 0.000000e+00 : f32
    %470 = vector.broadcast %cst_131 : f32 to vector<8x8xf32>
    %471 = arith.cmpf ogt, %469, %470 : vector<8x8xf32>
    %cst_132 = arith.constant 0.00999999977 : f32
    %472 = vector.broadcast %cst_132 : f32 to vector<8x8xf32>
    %473 = arith.mulf %472, %469 : vector<8x8xf32>
    %474 = arith.select %471, %469, %473 : vector<8x8xi1>, vector<8x8xf32>
    %cst_133 = arith.constant 0.000000e+00 : f32
    %475 = vector.broadcast %cst_133 : f32 to vector<8x8xf32>
    %476 = arith.cmpf one, %459, %475 : vector<8x8xf32>
    %477 = arith.extui %476 : vector<8x8xi1> to vector<8x8xi32>
    %478 = arith.sitofp %477 : vector<8x8xi32> to vector<8x8xf32>
    %479 = arith.mulf %478, %474 : vector<8x8xf32>
    %cst_134 = arith.constant 0.000000e+00 : f32
    %480 = vector.broadcast %cst_134 : f32 to vector<8x8xf32>
    %481 = arith.cmpf oeq, %479, %480 : vector<8x8xf32>
    %cst_135 = arith.constant -1.000000e+05 : f32
    %482 = vector.broadcast %cst_135 : f32 to vector<8x8xf32>
    %483 = arith.select %481, %482, %479 : vector<8x8xi1>, vector<8x8xf32>
    %cst_136 = arith.constant dense<0xFF800000> : vector<8xf32>
    %484 = vector.multi_reduction <maximumf>, %483, %cst_136 [1] : vector<8x8xf32> to vector<8xf32>
    %485 = vector.shape_cast %484 : vector<8xf32> to vector<8x1xf32>
    %486 = vector.broadcast %485 : vector<8x1xf32> to vector<8x8xf32>
    %487 = arith.subf %483, %486 : vector<8x8xf32>
    %488 = math.exp %487 : vector<8x8xf32>
    %cst_137 = arith.constant dense<0.000000e+00> : vector<8xf32>
    %489 = vector.multi_reduction <add>, %488, %cst_137 [1] : vector<8x8xf32> to vector<8xf32>
    %490 = vector.shape_cast %489 : vector<8xf32> to vector<8x1xf32>
    %491 = vector.broadcast %490 : vector<8x1xf32> to vector<8x8xf32>
    %492 = arith.divf %488, %491 : vector<8x8xf32>
    %493 = arith.mulf %492, %478 : vector<8x8xf32>
    %cst_138 = arith.constant dense<0.000000e+00> : vector<8x32xf32>
    %494 = tpu.matmul %493, %276, %cst_138 {dimension_numbers = #tpu.dot_dimension_numbers<[1], [0], [0], [1], [0, 0, 1, 1], [], []>} : vector<8x8xf32>, vector<8x32xf32>, vector<8x32xf32> -> vector<8x32xf32>
    %495 = tpu.concatenate %276, %325, %454, %494 in 1 : vector<8x32xf32>, vector<8x32xf32>, vector<8x96xf32>, vector<8x32xf32> -> vector<8x192xf32>
    %c0_139 = arith.constant 0 : index
    %c0_140 = arith.constant 0 : index
    %496 = vector.load %arg16[%c0_139, %c0_140] : memref<192x1xf32, #tpu.memory_space<vmem>>, vector<192x1xf32>
    %cst_141 = arith.constant dense<0.000000e+00> : vector<8x1xf32>
    %497 = tpu.matmul %495, %496, %cst_141 {dimension_numbers = #tpu.dot_dimension_numbers<[1], [0], [0], [1], [0, 0, 1, 1], [], []>} : vector<8x192xf32>, vector<192x1xf32>, vector<8x1xf32> -> vector<8x1xf32>
    %c0_142 = arith.constant 0 : index
    %c0_143 = arith.constant 0 : index
    %498 = vector.load %arg17[%c0_142, %c0_143] : memref<1x1xf32, #tpu.memory_space<vmem>>, vector<1x1xf32>
    %499 = vector.broadcast %498 : vector<1x1xf32> to vector<8x1xf32>
    %500 = arith.addf %497, %499 : vector<8x1xf32>
    %c0_144 = arith.constant 0 : index
    %c0_145 = arith.constant 0 : index
    %501 = vector.load %arg18[%c0_144, %c0_145] : memref<8x1xf32, #tpu.memory_space<vmem>>, vector<8x1xf32>
    tpu.vector_store %arg18[%c0_144, %c0_145], %500 {strides = array<i32>} : memref<8x1xf32, #tpu.memory_space<vmem>>, vector<8x1xf32>,
    return
  }
}

</mosaic_0001>

<llo_original>
// kernel: kenhance_forward.1
$region0: #{kenhance_forward.1}
  #allocation0 [shape = 'u32[]', space=smem, size = 0x4, offset = 0x4, fixed_abs, tag = 'smem constant byte address 0x4 - core index']
  #allocation1 [shape = 'u32[144,128]{1,0:T(1,128)}', space=vmem, size = 0x12000, scoped, tag = 'internal scratch']
  #allocation2 [shape = 'f32[32,128]{1,0:T(8,128)}', space=vmem, size = 0x4000, scoped, tag = 'scratch operand']
  #allocation3 [shape = 'f32[1,1]{1,0:T(1,128)S(1)}', space=vmem, size = 0x200, scoped, tag = 'scoped memory for kenhance_forward.1']
  #allocation4 [shape = 'f32[1,1]{1,0:T(1,128)S(1)}', space=vmem, size = 0x200, scoped, tag = 'scoped memory for kenhance_forward.1']
  %s0 = inlined_call_operand.vmem [shape: f32[32,6], index: 0, kind: input, shape index: {}]
  %s1 = inlined_call_operand.vmem [shape: f32[6,32], index: 1, kind: input, shape index: {}]
  %s2 = inlined_call_operand.vmem [shape: f32[1,32], index: 2, kind: input, shape index: {}]
  %s3 = inlined_call_operand.vmem [shape: f32[50,384], index: 3, kind: input, shape index: {}]
  %s4 = inlined_call_operand.vmem [shape: f32[1,128,384], index: 4, kind: input, shape index: {}]
  %s5 = inlined_call_operand.vmem [shape: f32[2,128,384], index: 5, kind: input, shape index: {}]
  %s6 = inlined_call_operand.vmem [shape: f32[2,1,384], index: 6, kind: input, shape index: {}]
  %s7 = inlined_call_operand.vmem [shape: f32[2,1,128], index: 7, kind: input, shape index: {}]
  %s8 = inlined_call_operand.vmem [shape: f32[32,16], index: 8, kind: input, shape index: {}]
  %s9 = inlined_call_operand.vmem [shape: f32[1,16], index: 9, kind: input, shape index: {}]
  %s10 = inlined_call_operand.vmem [shape: f32[16,1], index: 10, kind: input, shape index: {}]
  %s11 = inlined_call_operand.vmem [shape: f32[32,8], index: 11, kind: input, shape index: {}]
  %s12 = inlined_call_operand.vmem [shape: f32[1,3], index: 12, kind: input, shape index: {}]
  %s13 = inlined_call_operand.<no memory space> [shape: f32[1,1], index: 13, kind: input, shape index: {}]
  %s14 = inlined_call_operand.vmem [shape: f32[8,40], index: 14, kind: input, shape index: {}]
  %s15 = inlined_call_operand.vmem [shape: f32[40,16], index: 15, kind: input, shape index: {}]
  %s16 = inlined_call_operand.vmem [shape: f32[192,1], index: 16, kind: input, shape index: {}]
  %s17 = inlined_call_operand.<no memory space> [shape: f32[1,1], index: 17, kind: input, shape index: {}]
  %s18 = inlined_call_operand.vmem [shape: f32[8,1], index: 18, kind: output, shape index: {}]
  %s19 = sld [smem:[#allocation0]]
  $region82: #{kenhance_forward.1} parent=0
    _
  %s21 = ssub.s32 1, %s19
  %s22 = scalar_select 0, %s21, %s19
  %v23 = vstv %s13
  %24 = vst [vmem:[#allocation3] sm:$0x1] %v23
  %v25 = vstv %s17
  %26 = vst [vmem:[#allocation4] sm:$0x1] %v25
  // Predicated region
  $region2: #{kenhance_forward.1} parent=0 // pred_check
    _
  $region3: #{kenhance_forward.1} parent=0 // pred_check_branch
    %28 = sbr.rel (0) target = $region5
  $region4: #{kenhance_forward.1} parent=0 // pred_region
    _
  $region5: #{kenhance_forward.1} parent=0 // pred_fallthru
    _
  // Predicated region
  $region6: #{kenhance_forward.1} parent=0 // pred_check
    _
  $region7: #{kenhance_forward.1} parent=0 // pred_check_branch
    %30 = sbr.rel (0) target = $region9
  $region8: #{kenhance_forward.1} parent=0 // pred_region
    _
  $region9: #{kenhance_forward.1} parent=0 // pred_fallthru
    _
  // Predicated region
  $region10: #{kenhance_forward.1} parent=0 // pred_check
    _
  $region11: #{kenhance_forward.1} parent=0 // pred_check_branch
    %32 = sbr.rel (0) target = $region13
  $region12: #{kenhance_forward.1} parent=0 // pred_region
    _
  $region13: #{kenhance_forward.1} parent=0 // pred_fallthru
    _
  // Predicated region
  $region14: #{kenhance_forward.1} parent=0 // pred_check
    _
  $region15: #{kenhance_forward.1} parent=0 // pred_check_branch
    %34 = sbr.rel (0) target = $region17
  $region16: #{kenhance_forward.1} parent=0 // pred_region
    _
  $region17: #{kenhance_forward.1} parent=0 // pred_fallthru
    _
  // Predicated region
  $region18: #{kenhance_forward.1} parent=0 // pred_check
    _
  $region19: #{kenhance_forward.1} parent=0 // pred_check_branch
    %36 = sbr.rel (0) target = $region21
  $region20: #{kenhance_forward.1} parent=0 // pred_region
    _
  $region21: #{kenhance_forward.1} parent=0 // pred_fallthru
    _
  // Predicated region
  $region22: #{kenhance_forward.1} parent=0 // pred_check
    _
  $region23: #{kenhance_forward.1} parent=0 // pred_check_branch
    %38 = sbr.rel (0) target = $region25
  $region24: #{kenhance_forward.1} parent=0 // pred_region
    _
  $region25: #{kenhance_forward.1} parent=0 // pred_fallthru
    _
  // Predicated region
  $region26: #{kenhance_forward.1} parent=0 // pred_check
    _
  $region27: #{kenhance_forward.1} parent=0 // pred_check_branch
    %40 = sbr.rel (0) target = $region29
  $region28: #{kenhance_forward.1} parent=0 // pred_region
    _
  $region29: #{kenhance_forward.1} parent=0 // pred_fallthru
    _
  // Predicated region
  $region30: #{kenhance_forward.1} parent=0 // pred_check
    _
  $region31: #{kenhance_forward.1} parent=0 // pred_check_branch
    %42 = sbr.rel (0) target = $region33
  $region32: #{kenhance_forward.1} parent=0 // pred_region
    _
  $region33: #{kenhance_forward.1} parent=0 // pred_fallthru
    _
  // Predicated region
  $region34: #{kenhance_forward.1} parent=0 // pred_check
    _
  $region35: #{kenhance_forward.1} parent=0 // pred_check_branch
    %44 = sbr.rel (0) target = $region37
  $region36: #{kenhance_forward.1} parent=0 // pred_region
    _
  $region37: #{kenhance_forward.1} parent=0 // pred_fallthru
    _
  // Predicated region
  $region38: #{kenhance_forward.1} parent=0 // pred_check
    _
  $region39: #{kenhance_forward.1} parent=0 // pred_check_branch
    %46 = sbr.rel (0) target = $region41
  $region40: #{kenhance_forward.1} parent=0 // pred_region
    _
  $region41: #{kenhance_forward.1} parent=0 // pred_fallthru
    _
  // Predicated region
  $region42: #{kenhance_forward.1} parent=0 // pred_check
    _
  $region43: #{kenhance_forward.1} parent=0 // pred_check_branch
    %48 = sbr.rel (0) target = $region45
  $region44: #{kenhance_forward.1} parent=0 // pred_region
    _
  $region45: #{kenhance_forward.1} parent=0 // pred_fallthru
    _
  // Predicated region
  $region46: #{kenhance_forward.1} parent=0 // pred_check
    _
  $region47: #{kenhance_forward.1} parent=0 // pred_check_branch
    %50 = sbr.rel (0) target = $region49
  $region48: #{kenhance_forward.1} parent=0 // pred_region
    _
  $region49: #{kenhance_forward.1} parent=0 // pred_fallthru
    _
  // Predicated region
  $region50: #{kenhance_forward.1} parent=0 // pred_check
    _
  $region51: #{kenhance_forward.1} parent=0 // pred_check_branch
    %52 = sbr.rel (0) target = $region53
  $region52: #{kenhance_forward.1} parent=0 // pred_region
    _
  $region53: #{kenhance_forward.1} parent=0 // pred_fallthru
    _
  // Predicated region
  $region54: #{kenhance_forward.1} parent=0 // pred_check
    _
  $region55: #{kenhance_forward.1} parent=0 // pred_check_branch
    %54 = sbr.rel (0) target = $region57
  $region56: #{kenhance_forward.1} parent=0 // pred_region
    _
  $region57: #{kenhance_forward.1} parent=0 // pred_fallthru
    _
  // Predicated region
  $region58: #{kenhance_forward.1} parent=0 // pred_check
    _
  $region59: #{kenhance_forward.1} parent=0 // pred_check_branch
    %56 = sbr.rel (0) target = $region61
  $region60: #{kenhance_forward.1} parent=0 // pred_region
    _
  $region61: #{kenhance_forward.1} parent=0 // pred_fallthru
    _
  // Predicated region
  $region62: #{kenhance_forward.1} parent=0 // pred_check
    _
  $region63: #{kenhance_forward.1} parent=0 // pred_check_branch
    %58 = sbr.rel (0) target = $region65
  $region64: #{kenhance_forward.1} parent=0 // pred_region
    _
  $region65: #{kenhance_forward.1} parent=0 // pred_fallthru
    _
  // Predicated region
  $region66: #{kenhance_forward.1} parent=0 // pred_check
    _
  $region67: #{kenhance_forward.1} parent=0 // pred_check_branch
    %60 = sbr.rel (0) target = $region69
  $region68: #{kenhance_forward.1} parent=0 // pred_region
    _
  $region69: #{kenhance_forward.1} parent=0 // pred_fallthru
    _
  // Predicated region
  $region70: #{kenhance_forward.1} parent=0 // pred_check
    _
  $region71: #{kenhance_forward.1} parent=0 // pred_check_branch
    %62 = sbr.rel (0) target = $region73
  $region72: #{kenhance_forward.1} parent=0 // pred_region
    _
  $region73: #{kenhance_forward.1} parent=0 // pred_fallthru
    _
  %v63 = vld [vmem:[%s0] sm:$0xff]
  %v64 = vld [vmem:[%s0 + $0x8] sm:$0xff]
  %v65 = vld [vmem:[%s0 + $0x10] sm:$0xff]
  %v66 = vld [vmem:[%s0 + $0x18] sm:$0xff]
  %v67 = vld [vmem:[%s1] sm:$0x3f]
  %v68 = vld [vmem:[%s2] sm:$0x1]
  %v70 = vlaneseq
  %v71 = vshrl.u32 %v70, 7
  %v72 = vsub.s32 0, %v71
  %v73 = vrot.slane %v68, %v72
  %vm75 = vcmask 48128
  %v77 = vsel %vm75, %v63, 0
  %v80 = vsel %vm75, %v64, 0
  %v83 = vsel %vm75, %v65, 0
  %v86 = vsel %vm75, %v66, 0
  %vm88 = vcmask 1045504
  %v90 = vsel %vm88, %v67, 0
  %92 = vmatprep.subr.mxu0 0.0
  %93 = vmatpush1.msra.mxu0 %v90
  %94 = vmatprep.subr.mxu0 0.0
  %95 = vmatpush1.msra.mxu0 0.0
  %96 = vmatprep.subr.mxu0 0.0
  %97 = vmatpush1.msra.mxu0 0.0
  %98 = vmatprep.subr.mxu0 0.0
  %99 = vmatpush1.msra.mxu0 0.0
  %100 = vmatprep.subr.mxu0 0.0
  %101 = vmatpush1.msra.mxu0 0.0
  %102 = vmatprep.subr.mxu0 0.0
  %103 = vmatpush1.msra.mxu0 0.0
  %104 = vmatprep.subr.mxu0 0.0
  %105 = vmatpush1.msra.mxu0 0.0
  %106 = vmatprep.subr.mxu0 0.0
  %107 = vmatpush1.msra.mxu0 0.0
  %108 = vmatprep.subr.mxu0 0.0
  %109 = vmatpush1.msra.mxu0 0.0
  %110 = vmatprep.subr.mxu0 0.0
  %111 = vmatpush1.msra.mxu0 0.0
  %112 = vmatprep.subr.mxu0 0.0
  %113 = vmatpush1.msra.mxu0 0.0
  %114 = vmatprep.subr.mxu0 0.0
  %115 = vmatpush1.msra.mxu0 0.0
  %116 = vmatprep.subr.mxu0 0.0
  %117 = vmatpush1.msra.mxu0 0.0
  %118 = vmatprep.subr.mxu0 0.0
  %119 = vmatpush1.msra.mxu0 0.0
  %120 = vmatprep.subr.mxu0 0.0
  %121 = vmatpush1.msra.mxu0 0.0
  %122 = vmatprep.subr.mxu0 0.0
  %123 = vmatpush1.msra.mxu0 0.0
  %124 = vmatprep.subr.mxu0 0.0
  %125 = vmatpush1.msra.mxu0 0.0
  %126 = vmatprep.subr.mxu0 0.0
  %127 = vmatpush1.msra.mxu0 0.0
  %128 = vmatprep.subr.mxu0 0.0
  %129 = vmatpush1.msra.mxu0 0.0
  %130 = vmatprep.subr.mxu0 0.0
  %131 = vmatpush1.msra.mxu0 0.0
  %132 = vmatprep.subr.mxu0 0.0
  %133 = vmatpush1.msra.mxu0 0.0
  %134 = vmatprep.subr.mxu0 0.0
  %135 = vmatpush1.msra.mxu0 0.0
  %136 = vmatprep.subr.mxu0 0.0
  %137 = vmatpush1.msra.mxu0 0.0
  %138 = vmatprep.subr.mxu0 0.0
  %139 = vmatpush1.msra.mxu0 0.0
  %140 = vmatprep.subr.mxu0 0.0
  %141 = vmatpush1.msra.mxu0 0.0
  %142 = vmatprep.subr.mxu0 0.0
  %143 = vmatpush1.msra.mxu0 0.0
  %144 = vmatprep.subr.mxu0 0.0
  %145 = vmatpush1.msra.mxu0 0.0
  %146 = vmatprep.subr.mxu0 0.0
  %147 = vmatpush1.msra.mxu0 0.0
  %148 = vmatprep.subr.mxu0 0.0
  %149 = vmatpush1.msra.mxu0 0.0
  %150 = vmatprep.subr.mxu0 0.0
  %151 = vmatpush1.msra.mxu0 0.0
  %152 = vmatprep.subr.mxu0 0.0
  %153 = vmatpush1.msra.mxu0 0.0
  %154 = vmatprep.subr.mxu0 0.0
  %155 = vmatpush1.msra.mxu0 0.0
  %156 = vmatprep.mubr.f32.mxu0 0.0
  %157 = vmatmul.mubr.f32.gmra.mrb[0].mxu0 %v77
  %v158 = vpop.f32.mrb[0].mxu0
  %v159 = vadd.f32 %v73, %v158
  %v160 = vpop.f32.mrb[0].mxu0
  %161 = vmatprep.mubr.f32.mxu0 0.0
  %162 = vmatmul.mubr.f32.gmra.mrb[0].mxu0 %v80
  %v163 = vpop.f32.mrb[0].mxu0
  %v164 = vadd.f32 %v73, %v163
  %v165 = vpop.f32.mrb[0].mxu0
  %166 = vmatprep.mubr.f32.mxu0 0.0
  %167 = vmatmul.mubr.f32.gmra.mrb[0].mxu0 %v83
  %v168 = vpop.f32.mrb[0].mxu0
  %v169 = vadd.f32 %v73, %v168
  %v170 = vpop.f32.mrb[0].mxu0
  %171 = vmatprep.mubr.f32.mxu0 0.0
  %172 = vmatmul.mubr.f32.gmra.mrb[0].mxu0 %v86
  %v173 = vpop.f32.mrb[0].mxu0
  %v174 = vadd.f32 %v73, %v173
  %v175 = vpop.f32.mrb[0].mxu0
  %176 = vdwg.mxu0
  %v177 = vtanh.pop %v159
  %v178 = vtanh.pop %v164
  %v179 = vtanh.pop %v169
  %v180 = vtanh.pop %v174
  %181 = vrot.lane.b32.xlu0 %v63, 32
  %v182 = vpop.permute.xlu0 %181
  %183 = vrot.lane.b32.xlu0 %v64, 32
  %v184 = vpop.permute.xlu0 %183
  %185 = vrot.lane.b32.xlu0 %v65, 32
  %v186 = vpop.permute.xlu0 %185
  %187 = vrot.lane.b32.xlu0 %v66, 32
  %v188 = vpop.permute.xlu0 %187
  %193 = vrot.lane.b32.xlu0 %v63, 38
  %v194 = vpop.permute.xlu0 %193
  %195 = vrot.lane.b32.xlu0 %v64, 38
  %v196 = vpop.permute.xlu0 %195
  %197 = vrot.lane.b32.xlu0 %v65, 38
  %v198 = vpop.permute.xlu0 %197
  %199 = vrot.lane.b32.xlu0 %v66, 38
  %v200 = vpop.permute.xlu0 %199
  %205 = vrot.lane.b32.xlu0 %v63, 44
  %v206 = vpop.permute.xlu0 %205
  %207 = vrot.lane.b32.xlu0 %v64, 44
  %v208 = vpop.permute.xlu0 %207
  %209 = vrot.lane.b32.xlu0 %v65, 44
  %v210 = vpop.permute.xlu0 %209
  %211 = vrot.lane.b32.xlu0 %v66, 44
  %v212 = vpop.permute.xlu0 %211
  %vm217 = vcmask 261120
  %v218 = vsel %vm217, %v177, %v182
  %v219 = vsel %vm217, %v178, %v184
  %v220 = vsel %vm217, %v179, %v186
  %v221 = vsel %vm217, %v180, %v188
  %vm222 = vcmask 310272
  %v223 = vsel %vm222, %v218, %v194
  %v224 = vsel %vm222, %v219, %v196
  %v225 = vsel %vm222, %v220, %v198
  %v226 = vsel %vm222, %v221, %v200
  %vm227 = vcmask 359424
  %v228 = vsel %vm227, %v223, %v206
  %v229 = vsel %vm227, %v224, %v208
  %v230 = vsel %vm227, %v225, %v210
  %v231 = vsel %vm227, %v226, %v212
  %v232 = vld [vmem:[%s3] sm:$0xff]
  %v233 = vld [vmem:[%s3 + $0x8] sm:$0xff]
  %v234 = vld [vmem:[%s3 + $0x10] sm:$0xff]
  %v235 = vld [vmem:[%s3 + $0x18] sm:$0xff]
  %v236 = vld [vmem:[%s3 + $0x20] sm:$0xff]
  %v237 = vld [vmem:[%s3 + $0x28] sm:$0xff]
  %v238 = vld [vmem:[%s3 + $0x30] sm:$0xff]
  %v239 = vld [vmem:[%s3 + $0x38] sm:$0xff]
  %v240 = vld [vmem:[%s3 + $0x40] sm:$0xff]
  %v241 = vld [vmem:[%s3 + $0x48] sm:$0xff]
  %v242 = vld [vmem:[%s3 + $0x50] sm:$0xff]
  %v243 = vld [vmem:[%s3 + $0x58] sm:$0xff]
  %v244 = vld [vmem:[%s3 + $0x60] sm:$0xff]
  %v245 = vld [vmem:[%s3 + $0x68] sm:$0xff]
  %v246 = vld [vmem:[%s3 + $0x70] sm:$0xff]
  %v247 = vld [vmem:[%s3 + $0x78] sm:$0xff]
  %v248 = vld [vmem:[%s3 + $0x80] sm:$0xff]
  %v249 = vld [vmem:[%s3 + $0x88] sm:$0xff]
  %v250 = vld [vmem:[%s3 + $0x90] sm:$0x3]
  %v251 = vld [vmem:[%s3 + $0x98] sm:$0x3]
  %v252 = vld [vmem:[%s3 + $0xa0] sm:$0x3]
  %v253 = vld [vmem:[%s6] sm:$0x7]
  %v255 = vlaneseq
  %v256 = vshrl.u32 %v255, 7
  %v257 = vsub.s32 0, %v256
  %v258 = vrot.slane %v253, %v257
  %v259 = vlaneseq
  %v260 = vshrl.u32 %v259, 7
  %v261 = vsub.s32 1, %v260
  %v262 = vrot.slane %v253, %v261
  %v263 = vlaneseq
  %v264 = vshrl.u32 %v263, 7
  %v265 = vsub.s32 2, %v264
  %v266 = vrot.slane %v253, %v265
  %vm270 = vcmask 408576
  %v272 = vsel %vm270, %v228, 0
  %v275 = vsel %vm270, %v229, 0
  %v278 = vsel %vm270, %v230, 0
  %v281 = vsel %vm270, %v231, 0
  %vm283 = vcmask 1041408
  %v285 = vsel %vm283, %v250, 0
  %v288 = vsel %vm283, %v251, 0
  %v291 = vsel %vm283, %v252, 0
  %293 = vmatprep.subr.mxu0 %v233
  %294 = vmatpush1.msra.mxu0 %v232
  %295 = vmatprep.subr.mxu0 %v236
  %296 = vmatpush1.msra.mxu0 %v235
  %297 = vmatprep.subr.mxu0 %v239
  %298 = vmatpush1.msra.mxu0 %v238
  %299 = vmatprep.subr.mxu0 %v242
  %300 = vmatpush1.msra.mxu0 %v241
  %301 = vmatprep.subr.mxu0 %v245
  %302 = vmatpush1.msra.mxu0 %v244
  %303 = vmatprep.subr.mxu0 %v248
  %304 = vmatpush1.msra.mxu0 %v247
  %305 = vmatprep.subr.mxu0 %v288
  %306 = vmatpush1.msra.mxu0 %v285
  %307 = vmatprep.subr.mxu0 0.0
  %308 = vmatpush1.msra.mxu0 0.0
  %309 = vmatprep.subr.mxu0 0.0
  %310 = vmatpush1.msra.mxu0 0.0
  %311 = vmatprep.subr.mxu0 0.0
  %312 = vmatpush1.msra.mxu0 0.0
  %313 = vmatprep.subr.mxu0 0.0
  %314 = vmatpush1.msra.mxu0 0.0
  %315 = vmatprep.subr.mxu0 0.0
  %316 = vmatpush1.msra.mxu0 0.0
  %317 = vmatprep.subr.mxu0 0.0
  %318 = vmatpush1.msra.mxu0 0.0
  %319 = vmatprep.subr.mxu0 0.0
  %320 = vmatpush1.msra.mxu0 0.0
  %321 = vmatprep.subr.mxu0 0.0
  %322 = vmatpush1.msra.mxu0 0.0
  %323 = vmatprep.subr.mxu0 0.0
  %324 = vmatpush1.msra.mxu0 0.0
  %325 = vmatprep.subr.mxu0 0.0
  %326 = vmatpush1.msra.mxu0 0.0
  %327 = vmatprep.subr.mxu0 0.0
  %328 = vmatpush1.msra.mxu0 0.0
  %329 = vmatprep.subr.mxu0 0.0
  %330 = vmatpush1.msra.mxu0 0.0
  %331 = vmatprep.subr.mxu0 0.0
  %332 = vmatpush1.msra.mxu0 0.0
  %333 = vmatprep.subr.mxu0 0.0
  %334 = vmatpush1.msra.mxu0 0.0
  %335 = vmatprep.subr.mxu0 0.0
  %336 = vmatpush1.msra.mxu0 0.0
  %337 = vmatprep.subr.mxu0 0.0
  %338 = vmatpush1.msra.mxu0 0.0
  %339 = vmatprep.subr.mxu0 0.0
  %340 = vmatpush1.msra.mxu0 0.0
  %341 = vmatprep.subr.mxu0 0.0
  %342 = vmatpush1.msra.mxu0 0.0
  %343 = vmatprep.subr.mxu0 0.0
  %344 = vmatpush1.msra.mxu0 0.0
  %345 = vmatprep.subr.mxu0 0.0
  %346 = vmatpush1.msra.mxu0 0.0
  %347 = vmatprep.subr.mxu0 0.0
  %348 = vmatpush1.msra.mxu0 0.0
  %349 = vmatprep.subr.mxu0 0.0
  %350 = vmatpush1.msra.mxu0 0.0
  %351 = vmatprep.subr.mxu0 0.0
  %352 = vmatpush1.msra.mxu0 0.0
  %353 = vmatprep.subr.mxu0 0.0
  %354 = vmatpush1.msra.mxu0 0.0
  %355 = vmatprep.subr.mxu0 0.0
  %356 = vmatpush1.msra.mxu0 0.0
  %357 = vmatprep.mubr.f32.mxu0 0.0
  %358 = vmatmul.mubr.f32.gmra.mrb[0].mxu0 %v272
  %v359 = vpop.f32.mrb[0].mxu0
  %v360 = vadd.f32 %v258, %v359
  %v361 = vpop.f32.mrb[0].mxu0
  %v362 = vadd.f32 %v262, %v361
  %363 = vmatprep.mubr.f32.mxu0 0.0
  %364 = vmatmul.mubr.f32.gmra.mrb[0].mxu0 %v275
  %v365 = vpop.f32.mrb[0].mxu0
  %v366 = vadd.f32 %v258, %v365
  %v367 = vpop.f32.mrb[0].mxu0
  %v368 = vadd.f32 %v262, %v367
  %369 = vmatprep.mubr.f32.mxu0 0.0
  %370 = vmatmul.mubr.f32.gmra.mrb[0].mxu0 %v278
  %v371 = vpop.f32.mrb[0].mxu0
  %v372 = vadd.f32 %v258, %v371
  %v373 = vpop.f32.mrb[0].mxu0
  %v374 = vadd.f32 %v262, %v373
  %375 = vmatprep.mubr.f32.mxu0 0.0
  %376 = vmatmul.mubr.f32.gmra.mrb[0].mxu0 %v281
  %v377 = vpop.f32.mrb[0].mxu0
  %v378 = vadd.f32 %v258, %v377
  %v379 = vpop.f32.mrb[0].mxu0
  %v380 = vadd.f32 %v262, %v379
  %381 = vdwg.mxu0
  %382 = vmatprep.subr.mxu0 0.0
  %383 = vmatpush1.msra.mxu0 %v234
  %384 = vmatprep.subr.mxu0 0.0
  %385 = vmatpush1.msra.mxu0 %v237
  %386 = vmatprep.subr.mxu0 0.0
  %387 = vmatpush1.msra.mxu0 %v240
  %388 = vmatprep.subr.mxu0 0.0
  %389 = vmatpush1.msra.mxu0 %v243
  %390 = vmatprep.subr.mxu0 0.0
  %391 = vmatpush1.msra.mxu0 %v246
  %392 = vmatprep.subr.mxu0 0.0
  %393 = vmatpush1.msra.mxu0 %v249
  %394 = vmatprep.subr.mxu0 0.0
  %395 = vmatpush1.msra.mxu0 %v291
  %396 = vmatprep.subr.mxu0 0.0
  %397 = vmatpush1.msra.mxu0 0.0
  %398 = vmatprep.subr.mxu0 0.0
  %399 = vmatpush1.msra.mxu0 0.0
  %400 = vmatprep.subr.mxu0 0.0
  %401 = vmatpush1.msra.mxu0 0.0
  %402 = vmatprep.subr.mxu0 0.0
  %403 = vmatpush1.msra.mxu0 0.0
  %404 = vmatprep.subr.mxu0 0.0
  %405 = vmatpush1.msra.mxu0 0.0
  %406 = vmatprep.subr.mxu0 0.0
  %407 = vmatpush1.msra.mxu0 0.0
  %408 = vmatprep.subr.mxu0 0.0
  %409 = vmatpush1.msra.mxu0 0.0
  %410 = vmatprep.subr.mxu0 0.0
  %411 = vmatpush1.msra.mxu0 0.0
  %412 = vmatprep.subr.mxu0 0.0
  %413 = vmatpush1.msra.mxu0 0.0
  %414 = vmatprep.subr.mxu0 0.0
  %415 = vmatpush1.msra.mxu0 0.0
  %416 = vmatprep.subr.mxu0 0.0
  %417 = vmatpush1.msra.mxu0 0.0
  %418 = vmatprep.subr.mxu0 0.0
  %419 = vmatpush1.msra.mxu0 0.0
  %420 = vmatprep.subr.mxu0 0.0
  %421 = vmatpush1.msra.mxu0 0.0
  %422 = vmatprep.subr.mxu0 0.0
  %423 = vmatpush1.msra.mxu0 0.0
  %424 = vmatprep.subr.mxu0 0.0
  %425 = vmatpush1.msra.mxu0 0.0
  %426 = vmatprep.subr.mxu0 0.0
  %427 = vmatpush1.msra.mxu0 0.0
  %428 = vmatprep.subr.mxu0 0.0
  %429 = vmatpush1.msra.mxu0 0.0
  %430 = vmatprep.subr.mxu0 0.0
  %431 = vmatpush1.msra.mxu0 0.0
  %432 = vmatprep.subr.mxu0 0.0
  %433 = vmatpush1.msra.mxu0 0.0
  %434 = vmatprep.subr.mxu0 0.0
  %435 = vmatpush1.msra.mxu0 0.0
  %436 = vmatprep.subr.mxu0 0.0
  %437 = vmatpush1.msra.mxu0 0.0
  %438 = vmatprep.subr.mxu0 0.0
  %439 = vmatpush1.msra.mxu0 0.0
  %440 = vmatprep.subr.mxu0 0.0
  %441 = vmatpush1.msra.mxu0 0.0
  %442 = vmatprep.subr.mxu0 0.0
  %443 = vmatpush1.msra.mxu0 0.0
  %444 = vmatprep.subr.mxu0 0.0
  %445 = vmatpush1.msra.mxu0 0.0
  %446 = vmatprep.mubr.f32.mxu0 0.0
  %447 = vmatmul.mubr.f32.gmra.mrb[0].mxu0 %v272
  %v448 = vpop.f32.mrb[0].mxu0
  %v449 = vadd.f32 %v266, %v448
  %v450 = vpop.f32.mrb[0].mxu0
  %451 = vmatprep.mubr.f32.mxu0 0.0
  %452 = vmatmul.mubr.f32.gmra.mrb[0].mxu0 %v275
  %v453 = vpop.f32.mrb[0].mxu0
  %v454 = vadd.f32 %v266, %v453
  %v455 = vpop.f32.mrb[0].mxu0
  %456 = vmatprep.mubr.f32.mxu0 0.0
  %457 = vmatmul.mubr.f32.gmra.mrb[0].mxu0 %v278
  %v458 = vpop.f32.mrb[0].mxu0
  %v459 = vadd.f32 %v266, %v458
  %v460 = vpop.f32.mrb[0].mxu0
  %461 = vmatprep.mubr.f32.mxu0 0.0
  %462 = vmatmul.mubr.f32.gmra.mrb[0].mxu0 %v281
  %v463 = vpop.f32.mrb[0].mxu0
  %v464 = vadd.f32 %v266, %v463
  %v465 = vpop.f32.mrb[0].mxu0
  %466 = vdwg.mxu0
  %v467 = vld [vmem:[%s5] sm:$0xff]
  %v468 = vld [vmem:[%s5 + $0x8] sm:$0xff]
  %v469 = vld [vmem:[%s5 + $0x10] sm:$0xff]
  %v470 = vld [vmem:[%s5 + $0x18] sm:$0xff]
  %v471 = vld [vmem:[%s5 + $0x20] sm:$0xff]
  %v472 = vld [vmem:[%s5 + $0x28] sm:$0xff]
  %v473 = vld [vmem:[%s5 + $0x30] sm:$0xff]
  %v474 = vld [vmem:[%s5 + $0x38] sm:$0xff]
  %v475 = vld [vmem:[%s5 + $0x40] sm:$0xff]
  %v476 = vld [vmem:[%s5 + $0x48] sm:$0xff]
  %v477 = vld [vmem:[%s5 + $0x50] sm:$0xff]
  %v478 = vld [vmem:[%s5 + $0x58] sm:$0xff]
  %v479 = vld [vmem:[%s5 + $0x60] sm:$0xff]
  %v480 = vld [vmem:[%s5 + $0x68] sm:$0xff]
  %v481 = vld [vmem:[%s5 + $0x70] sm:$0xff]
  %v482 = vld [vmem:[%s5 + $0x78] sm:$0xff]
  %v483 = vld [vmem:[%s5 + $0x80] sm:$0xff]
  %v484 = vld [vmem:[%s5 + $0x88] sm:$0xff]
  %v485 = vld [vmem:[%s5 + $0x90] sm:$0xff]
  %v486 = vld [vmem:[%s5 + $0x98] sm:$0xff]
  %v487 = vld [vmem:[%s5 + $0xa0] sm:$0xff]
  %v488 = vld [vmem:[%s5 + $0xa8] sm:$0xff]
  %v489 = vld [vmem:[%s5 + $0xb0] sm:$0xff]
  %v490 = vld [vmem:[%s5 + $0xb8] sm:$0xff]
  %v491 = vld [vmem:[%s5 + $0xc0] sm:$0xff]
  %v492 = vld [vmem:[%s5 + $0xc8] sm:$0xff]
  %v493 = vld [vmem:[%s5 + $0xd0] sm:$0xff]
  %v494 = vld [vmem:[%s5 + $0xd8] sm:$0xff]
  %v495 = vld [vmem:[%s5 + $0xe0] sm:$0xff]
  %v496 = vld [vmem:[%s5 + $0xe8] sm:$0xff]
  %v497 = vld [vmem:[%s5 + $0xf0] sm:$0xff]
  %v498 = vld [vmem:[%s5 + $0xf8] sm:$0xff]
  %v499 = vld [vmem:[%s5 + $0x100] sm:$0xff]
  %v500 = vld [vmem:[%s5 + $0x108] sm:$0xff]
  %v501 = vld [vmem:[%s5 + $0x110] sm:$0xff]
  %v502 = vld [vmem:[%s5 + $0x118] sm:$0xff]
  %v503 = vld [vmem:[%s5 + $0x120] sm:$0xff]
  %v504 = vld [vmem:[%s5 + $0x128] sm:$0xff]
  %v505 = vld [vmem:[%s5 + $0x130] sm:$0xff]
  %v506 = vld [vmem:[%s5 + $0x138] sm:$0xff]
  %v507 = vld [vmem:[%s5 + $0x140] sm:$0xff]
  %v508 = vld [vmem:[%s5 + $0x148] sm:$0xff]
  %v509 = vld [vmem:[%s5 + $0x150] sm:$0xff]
  %v510 = vld [vmem:[%s5 + $0x158] sm:$0xff]
  %v511 = vld [vmem:[%s5 + $0x160] sm:$0xff]
  %v512 = vld [vmem:[%s5 + $0x168] sm:$0xff]
  %v513 = vld [vmem:[%s5 + $0x170] sm:$0xff]
  %v514 = vld [vmem:[%s5 + $0x178] sm:$0xff]
  %v515 = vld [vmem:[%s7] sm:$0x1]
  %v517 = vlaneseq
  %v518 = vshrl.u32 %v517, 7
  %v519 = vsub.s32 0, %v518
  %v520 = vrot.slane %v515, %v519
  %522 = vmatprep.subr.mxu0 %v468
  %523 = vmatpush1.msra.mxu0 %v467
  %524 = vmatprep.subr.mxu0 %v471
  %525 = vmatpush1.msra.mxu0 %v470
  %526 = vmatprep.subr.mxu0 %v474
  %527 = vmatpush1.msra.mxu0 %v473
  %528 = vmatprep.subr.mxu0 %v477
  %529 = vmatpush1.msra.mxu0 %v476
  %530 = vmatprep.subr.mxu0 %v480
  %531 = vmatpush1.msra.mxu0 %v479
  %532 = vmatprep.subr.mxu0 %v483
  %533 = vmatpush1.msra.mxu0 %v482
  %534 = vmatprep.subr.mxu0 %v486
  %535 = vmatpush1.msra.mxu0 %v485
  %536 = vmatprep.subr.mxu0 %v489
  %537 = vmatpush1.msra.mxu0 %v488
  %538 = vmatprep.subr.mxu0 %v492
  %539 = vmatpush1.msra.mxu0 %v491
  %540 = vmatprep.subr.mxu0 %v495
  %541 = vmatpush1.msra.mxu0 %v494
  %542 = vmatprep.subr.mxu0 %v498
  %543 = vmatpush1.msra.mxu0 %v497
  %544 = vmatprep.subr.mxu0 %v501
  %545 = vmatpush1.msra.mxu0 %v500
  %546 = vmatprep.subr.mxu0 %v504
  %547 = vmatpush1.msra.mxu0 %v503
  %548 = vmatprep.subr.mxu0 %v507
  %549 = vmatpush1.msra.mxu0 %v506
  %550 = vmatprep.subr.mxu0 %v510
  %551 = vmatpush1.msra.mxu0 %v509
  %552 = vmatprep.subr.mxu0 %v513
  %553 = vmatpush1.msra.mxu0 %v512
  %554 = vmatprep.subr.mxu0 0.0
  %555 = vmatpush1.msra.mxu0 0.0
  %556 = vmatprep.subr.mxu0 0.0
  %557 = vmatpush1.msra.mxu0 0.0
  %558 = vmatprep.subr.mxu0 0.0
  %559 = vmatpush1.msra.mxu0 0.0
  %560 = vmatprep.subr.mxu0 0.0
  %561 = vmatpush1.msra.mxu0 0.0
  %562 = vmatprep.subr.mxu0 0.0
  %563 = vmatpush1.msra.mxu0 0.0
  %564 = vmatprep.subr.mxu0 0.0
  %565 = vmatpush1.msra.mxu0 0.0
  %566 = vmatprep.subr.mxu0 0.0
  %567 = vmatpush1.msra.mxu0 0.0
  %568 = vmatprep.subr.mxu0 0.0
  %569 = vmatpush1.msra.mxu0 0.0
  %570 = vmatprep.subr.mxu0 0.0
  %571 = vmatpush1.msra.mxu0 0.0
  %572 = vmatprep.subr.mxu0 0.0
  %573 = vmatpush1.msra.mxu0 0.0
  %574 = vmatprep.subr.mxu0 0.0
  %575 = vmatpush1.msra.mxu0 0.0
  %576 = vmatprep.subr.mxu0 0.0
  %577 = vmatpush1.msra.mxu0 0.0
  %578 = vmatprep.subr.mxu0 0.0
  %579 = vmatpush1.msra.mxu0 0.0
  %580 = vmatprep.subr.mxu0 0.0
  %581 = vmatpush1.msra.mxu0 0.0
  %582 = vmatprep.subr.mxu0 0.0
  %583 = vmatpush1.msra.mxu0 0.0
  %584 = vmatprep.subr.mxu0 0.0
  %585 = vmatpush1.msra.mxu0 0.0
  %586 = vmatprep.mubr.f32.mxu0 0.0
  %587 = vmatmul.mubr.f32.gmra.mrb[0].mxu0 0.0
  %v588 = vpop.f32.mrb[0].mxu0
  %v589 = vadd.f32 0.0, %v588
  %v590 = vpop.f32.mrb[0].mxu0
  %v591 = vadd.f32 0.0, %v590
  %592 = vdwg.mxu0
  %593 = vmatprep.subr.mxu0 0.0
  %594 = vmatpush1.msra.mxu0 %v469
  %595 = vmatprep.subr.mxu0 0.0
  %596 = vmatpush1.msra.mxu0 %v472
  %597 = vmatprep.subr.mxu0 0.0
  %598 = vmatpush1.msra.mxu0 %v475
  %599 = vmatprep.subr.mxu0 0.0
  %600 = vmatpush1.msra.mxu0 %v478
  %601 = vmatprep.subr.mxu0 0.0
  %602 = vmatpush1.msra.mxu0 %v481
  %603 = vmatprep.subr.mxu0 0.0
  %604 = vmatpush1.msra.mxu0 %v484
  %605 = vmatprep.subr.mxu0 0.0
  %606 = vmatpush1.msra.mxu0 %v487
  %607 = vmatprep.subr.mxu0 0.0
  %608 = vmatpush1.msra.mxu0 %v490
  %609 = vmatprep.subr.mxu0 0.0
  %610 = vmatpush1.msra.mxu0 %v493
  %611 = vmatprep.subr.mxu0 0.0
  %612 = vmatpush1.msra.mxu0 %v496
  %613 = vmatprep.subr.mxu0 0.0
  %614 = vmatpush1.msra.mxu0 %v499
  %615 = vmatprep.subr.mxu0 0.0
  %616 = vmatpush1.msra.mxu0 %v502
  %617 = vmatprep.subr.mxu0 0.0
  %618 = vmatpush1.msra.mxu0 %v505
  %619 = vmatprep.subr.mxu0 0.0
  %620 = vmatpush1.msra.mxu0 %v508
  %621 = vmatprep.subr.mxu0 0.0
  %622 = vmatpush1.msra.mxu0 %v511
  %623 = vmatprep.subr.mxu0 0.0
  %624 = vmatpush1.msra.mxu0 %v514
  %625 = vmatprep.subr.mxu0 0.0
  %626 = vmatpush1.msra.mxu0 0.0
  %627 = vmatprep.subr.mxu0 0.0
  %628 = vmatpush1.msra.mxu0 0.0
  %629 = vmatprep.subr.mxu0 0.0
  %630 = vmatpush1.msra.mxu0 0.0
  %631 = vmatprep.subr.mxu0 0.0
  %632 = vmatpush1.msra.mxu0 0.0
  %633 = vmatprep.subr.mxu0 0.0
  %634 = vmatpush1.msra.mxu0 0.0
  %635 = vmatprep.subr.mxu0 0.0
  %636 = vmatpush1.msra.mxu0 0.0
  %637 = vmatprep.subr.mxu0 0.0
  %638 = vmatpush1.msra.mxu0 0.0
  %639 = vmatprep.subr.mxu0 0.0
  %640 = vmatpush1.msra.mxu0 0.0
  %641 = vmatprep.subr.mxu0 0.0
  %642 = vmatpush1.msra.mxu0 0.0
  %643 = vmatprep.subr.mxu0 0.0
  %644 = vmatpush1.msra.mxu0 0.0
  %645 = vmatprep.subr.mxu0 0.0
  %646 = vmatpush1.msra.mxu0 0.0
  %647 = vmatprep.subr.mxu0 0.0
  %648 = vmatpush1.msra.mxu0 0.0
  %649 = vmatprep.subr.mxu0 0.0
  %650 = vmatpush1.msra.mxu0 0.0
  %651 = vmatprep.subr.mxu0 0.0
  %652 = vmatpush1.msra.mxu0 0.0
  %653 = vmatprep.subr.mxu0 0.0
  %654 = vmatpush1.msra.mxu0 0.0
  %655 = vmatprep.subr.mxu0 0.0
  %656 = vmatpush1.msra.mxu0 0.0
  %657 = vmatprep.mubr.f32.mxu0 0.0
  %658 = vmatmul.mubr.f32.gmra.mrb[0].mxu0 0.0
  %v659 = vpop.f32.mrb[0].mxu0
  %v660 = vadd.f32 0.0, %v659
  %v661 = vpop.f32.mrb[0].mxu0
  %662 = vdwg.mxu0
  %v663 = vadd.f32 %v360, %v589
  %v664 = vxor.u32 %v663, 2147483648
  %v665 = vmul.f32 %v664, 1.442695
  %v666 = vpow.pop %v665
  %v667 = vadd.f32 %v666, 1.0
  %v668 = vrcp.pop %v667
  %v669 = vmul.f32 1.0, %v668
  %v670 = vadd.f32 %v362, %v591
  %v671 = vxor.u32 %v670, 2147483648
  %v672 = vmul.f32 %v671, 1.442695
  %v673 = vpow.pop %v672
  %v674 = vadd.f32 %v673, 1.0
  %v675 = vrcp.pop %v674
  %v676 = vmul.f32 1.0, %v675
  %v677 = vadd.f32 %v660, %v520
  %v678 = vmul.f32 %v669, %v677
  %v679 = vadd.f32 %v449, %v678
  %v680 = vtanh.pop %v679
  %v681 = vsub.f32 1.0, %v676
  %v682 = vmul.f32 %v681, %v680
  %v683 = vmul.f32 %v676, 0.0
  %v684 = vadd.f32 %v682, %v683
  %685 = vst [vmem:[#allocation2] sm:$0xff] %v684
  %686 = vmatprep.subr.mxu0 %v468
  %687 = vmatpush1.msra.mxu0 %v467
  %688 = vmatprep.subr.mxu0 %v471
  %689 = vmatpush1.msra.mxu0 %v470
  %690 = vmatprep.subr.mxu0 %v474
  %691 = vmatpush1.msra.mxu0 %v473
  %692 = vmatprep.subr.mxu0 %v477
  %693 = vmatpush1.msra.mxu0 %v476
  %694 = vmatprep.subr.mxu0 %v480
  %695 = vmatpush1.msra.mxu0 %v479
  %696 = vmatprep.subr.mxu0 %v483
  %697 = vmatpush1.msra.mxu0 %v482
  %698 = vmatprep.subr.mxu0 %v486
  %699 = vmatpush1.msra.mxu0 %v485
  %700 = vmatprep.subr.mxu0 %v489
  %701 = vmatpush1.msra.mxu0 %v488
  %702 = vmatprep.subr.mxu0 %v492
  %703 = vmatpush1.msra.mxu0 %v491
  %704 = vmatprep.subr.mxu0 %v495
  %705 = vmatpush1.msra.mxu0 %v494
  %706 = vmatprep.subr.mxu0 %v498
  %707 = vmatpush1.msra.mxu0 %v497
  %708 = vmatprep.subr.mxu0 %v501
  %709 = vmatpush1.msra.mxu0 %v500
  %710 = vmatprep.subr.mxu0 %v504
  %711 = vmatpush1.msra.mxu0 %v503
  %712 = vmatprep.subr.mxu0 %v507
  %713 = vmatpush1.msra.mxu0 %v506
  %714 = vmatprep.subr.mxu0 %v510
  %715 = vmatpush1.msra.mxu0 %v509
  %716 = vmatprep.subr.mxu0 %v513
  %717 = vmatpush1.msra.mxu0 %v512
  %718 = vmatprep.subr.mxu0 0.0
  %719 = vmatpush1.msra.mxu0 0.0
  %720 = vmatprep.subr.mxu0 0.0
  %721 = vmatpush1.msra.mxu0 0.0
  %722 = vmatprep.subr.mxu0 0.0
  %723 = vmatpush1.msra.mxu0 0.0
  %724 = vmatprep.subr.mxu0 0.0
  %725 = vmatpush1.msra.mxu0 0.0
  %726 = vmatprep.subr.mxu0 0.0
  %727 = vmatpush1.msra.mxu0 0.0
  %728 = vmatprep.subr.mxu0 0.0
  %729 = vmatpush1.msra.mxu0 0.0
  %730 = vmatprep.subr.mxu0 0.0
  %731 = vmatpush1.msra.mxu0 0.0
  %732 = vmatprep.subr.mxu0 0.0
  %733 = vmatpush1.msra.mxu0 0.0
  %734 = vmatprep.subr.mxu0 0.0
  %735 = vmatpush1.msra.mxu0 0.0
  %736 = vmatprep.subr.mxu0 0.0
  %737 = vmatpush1.msra.mxu0 0.0
  %738 = vmatprep.subr.mxu0 0.0
  %739 = vmatpush1.msra.mxu0 0.0
  %740 = vmatprep.subr.mxu0 0.0
  %741 = vmatpush1.msra.mxu0 0.0
  %742 = vmatprep.subr.mxu0 0.0
  %743 = vmatpush1.msra.mxu0 0.0
  %744 = vmatprep.subr.mxu0 0.0
  %745 = vmatpush1.msra.mxu0 0.0
  %746 = vmatprep.subr.mxu0 0.0
  %747 = vmatpush1.msra.mxu0 0.0
  %748 = vmatprep.subr.mxu0 0.0
  %749 = vmatpush1.msra.mxu0 0.0
  %750 = vmatprep.mubr.f32.mxu0 0.0
  %751 = vmatmul.mubr.f32.gmra.mrb[0].mxu0 %v684
  %v752 = vpop.f32.mrb[0].mxu0
  %v753 = vadd.f32 0.0, %v752
  %v754 = vpop.f32.mrb[0].mxu0
  %v755 = vadd.f32 0.0, %v754
  %756 = vdwg.mxu0
  %757 = vmatprep.subr.mxu0 0.0
  %758 = vmatpush1.msra.mxu0 %v469
  %759 = vmatprep.subr.mxu0 0.0
  %760 = vmatpush1.msra.mxu0 %v472
  %761 = vmatprep.subr.mxu0 0.0
  %762 = vmatpush1.msra.mxu0 %v475
  %763 = vmatprep.subr.mxu0 0.0
  %764 = vmatpush1.msra.mxu0 %v478
  %765 = vmatprep.subr.mxu0 0.0
  %766 = vmatpush1.msra.mxu0 %v481
  %767 = vmatprep.subr.mxu0 0.0
  %768 = vmatpush1.msra.mxu0 %v484
  %769 = vmatprep.subr.mxu0 0.0
  %770 = vmatpush1.msra.mxu0 %v487
  %771 = vmatprep.subr.mxu0 0.0
  %772 = vmatpush1.msra.mxu0 %v490
  %773 = vmatprep.subr.mxu0 0.0
  %774 = vmatpush1.msra.mxu0 %v493
  %775 = vmatprep.subr.mxu0 0.0
  %776 = vmatpush1.msra.mxu0 %v496
  %777 = vmatprep.subr.mxu0 0.0
  %778 = vmatpush1.msra.mxu0 %v499
  %779 = vmatprep.subr.mxu0 0.0
  %780 = vmatpush1.msra.mxu0 %v502
  %781 = vmatprep.subr.mxu0 0.0
  %782 = vmatpush1.msra.mxu0 %v505
  %783 = vmatprep.subr.mxu0 0.0
  %784 = vmatpush1.msra.mxu0 %v508
  %785 = vmatprep.subr.mxu0 0.0
  %786 = vmatpush1.msra.mxu0 %v511
  %787 = vmatprep.subr.mxu0 0.0
  %788 = vmatpush1.msra.mxu0 %v514
  %789 = vmatprep.subr.mxu0 0.0
  %790 = vmatpush1.msra.mxu0 0.0
  %791 = vmatprep.subr.mxu0 0.0
  %792 = vmatpush1.msra.mxu0 0.0
  %793 = vmatprep.subr.mxu0 0.0
  %794 = vmatpush1.msra.mxu0 0.0
  %795 = vmatprep.subr.mxu0 0.0
  %796 = vmatpush1.msra.mxu0 0.0
  %797 = vmatprep.subr.mxu0 0.0
  %798 = vmatpush1.msra.mxu0 0.0
  %799 = vmatprep.subr.mxu0 0.0
  %800 = vmatpush1.msra.mxu0 0.0
  %801 = vmatprep.subr.mxu0 0.0
  %802 = vmatpush1.msra.mxu0 0.0
  %803 = vmatprep.subr.mxu0 0.0
  %804 = vmatpush1.msra.mxu0 0.0
  %805 = vmatprep.subr.mxu0 0.0
  %806 = vmatpush1.msra.mxu0 0.0
  %807 = vmatprep.subr.mxu0 0.0
  %808 = vmatpush1.msra.mxu0 0.0
  %809 = vmatprep.subr.mxu0 0.0
  %810 = vmatpush1.msra.mxu0 0.0
  %811 = vmatprep.subr.mxu0 0.0
  %812 = vmatpush1.msra.mxu0 0.0
  %813 = vmatprep.subr.mxu0 0.0
  %814 = vmatpush1.msra.mxu0 0.0
  %815 = vmatprep.subr.mxu0 0.0
  %816 = vmatpush1.msra.mxu0 0.0
  %817 = vmatprep.subr.mxu0 0.0
  %818 = vmatpush1.msra.mxu0 0.0
  %819 = vmatprep.subr.mxu0 0.0
  %820 = vmatpush1.msra.mxu0 0.0
  %821 = vmatprep.mubr.f32.mxu0 0.0
  %822 = vmatmul.mubr.f32.gmra.mrb[0].mxu0 %v684
  %v823 = vpop.f32.mrb[0].mxu0
  %v824 = vadd.f32 0.0, %v823
  %v825 = vpop.f32.mrb[0].mxu0
  %826 = vdwg.mxu0
  %v827 = vadd.f32 %v366, %v753
  %v828 = vxor.u32 %v827, 2147483648
  %v829 = vmul.f32 %v828, 1.442695
  %v830 = vpow.pop %v829
  %v831 = vadd.f32 %v830, 1.0
  %v832 = vrcp.pop %v831
  %v833 = vmul.f32 1.0, %v832
  %v834 = vadd.f32 %v368, %v755
  %v835 = vxor.u32 %v834, 2147483648
  %v836 = vmul.f32 %v835, 1.442695
  %v837 = vpow.pop %v836
  %v838 = vadd.f32 %v837, 1.0
  %v839 = vrcp.pop %v838
  %v840 = vmul.f32 1.0, %v839
  %v841 = vadd.f32 %v824, %v520
  %v842 = vmul.f32 %v833, %v841
  %v843 = vadd.f32 %v454, %v842
  %v844 = vtanh.pop %v843
  %v845 = vsub.f32 1.0, %v840
  %v846 = vmul.f32 %v845, %v844
  %v847 = vmul.f32 %v840, %v684
  %v848 = vadd.f32 %v846, %v847
  %849 = vst [vmem:[#allocation2 + $0x8] sm:$0xff] %v848
  %850 = vmatprep.subr.mxu0 %v468
  %851 = vmatpush1.msra.mxu0 %v467
  %852 = vmatprep.subr.mxu0 %v471
  %853 = vmatpush1.msra.mxu0 %v470
  %854 = vmatprep.subr.mxu0 %v474
  %855 = vmatpush1.msra.mxu0 %v473
  %856 = vmatprep.subr.mxu0 %v477
  %857 = vmatpush1.msra.mxu0 %v476
  %858 = vmatprep.subr.mxu0 %v480
  %859 = vmatpush1.msra.mxu0 %v479
  %860 = vmatprep.subr.mxu0 %v483
  %861 = vmatpush1.msra.mxu0 %v482
  %862 = vmatprep.subr.mxu0 %v486
  %863 = vmatpush1.msra.mxu0 %v485
  %864 = vmatprep.subr.mxu0 %v489
  %865 = vmatpush1.msra.mxu0 %v488
  %866 = vmatprep.subr.mxu0 %v492
  %867 = vmatpush1.msra.mxu0 %v491
  %868 = vmatprep.subr.mxu0 %v495
  %869 = vmatpush1.msra.mxu0 %v494
  %870 = vmatprep.subr.mxu0 %v498
  %871 = vmatpush1.msra.mxu0 %v497
  %872 = vmatprep.subr.mxu0 %v501
  %873 = vmatpush1.msra.mxu0 %v500
  %874 = vmatprep.subr.mxu0 %v504
  %875 = vmatpush1.msra.mxu0 %v503
  %876 = vmatprep.subr.mxu0 %v507
  %877 = vmatpush1.msra.mxu0 %v506
  %878 = vmatprep.subr.mxu0 %v510
  %879 = vmatpush1.msra.mxu0 %v509
  %880 = vmatprep.subr.mxu0 %v513
  %881 = vmatpush1.msra.mxu0 %v512
  %882 = vmatprep.subr.mxu0 0.0
  %883 = vmatpush1.msra.mxu0 0.0
  %884 = vmatprep.subr.mxu0 0.0
  %885 = vmatpush1.msra.mxu0 0.0
  %886 = vmatprep.subr.mxu0 0.0
  %887 = vmatpush1.msra.mxu0 0.0
  %888 = vmatprep.subr.mxu0 0.0
  %889 = vmatpush1.msra.mxu0 0.0
  %890 = vmatprep.subr.mxu0 0.0
  %891 = vmatpush1.msra.mxu0 0.0
  %892 = vmatprep.subr.mxu0 0.0
  %893 = vmatpush1.msra.mxu0 0.0
  %894 = vmatprep.subr.mxu0 0.0
  %895 = vmatpush1.msra.mxu0 0.0
  %896 = vmatprep.subr.mxu0 0.0
  %897 = vmatpush1.msra.mxu0 0.0
  %898 = vmatprep.subr.mxu0 0.0
  %899 = vmatpush1.msra.mxu0 0.0
  %900 = vmatprep.subr.mxu0 0.0
  %901 = vmatpush1.msra.mxu0 0.0
  %902 = vmatprep.subr.mxu0 0.0
  %903 = vmatpush1.msra.mxu0 0.0
  %904 = vmatprep.subr.mxu0 0.0
  %905 = vmatpush1.msra.mxu0 0.0
  %906 = vmatprep.subr.mxu0 0.0
  %907 = vmatpush1.msra.mxu0 0.0
  %908 = vmatprep.subr.mxu0 0.0
  %909 = vmatpush1.msra.mxu0 0.0
  %910 = vmatprep.subr.mxu0 0.0
  %911 = vmatpush1.msra.mxu0 0.0
  %912 = vmatprep.subr.mxu0 0.0
  %913 = vmatpush1.msra.mxu0 0.0
  %914 = vmatprep.mubr.f32.mxu0 0.0
  %915 = vmatmul.mubr.f32.gmra.mrb[0].mxu0 %v848
  %v916 = vpop.f32.mrb[0].mxu0
  %v917 = vadd.f32 0.0, %v916
  %v918 = vpop.f32.mrb[0].mxu0
  %v919 = vadd.f32 0.0, %v918
  %920 = vdwg.mxu0
  %921 = vmatprep.subr.mxu0 0.0
  %922 = vmatpush1.msra.mxu0 %v469
  %923 = vmatprep.subr.mxu0 0.0
  %924 = vmatpush1.msra.mxu0 %v472
  %925 = vmatprep.subr.mxu0 0.0
  %926 = vmatpush1.msra.mxu0 %v475
  %927 = vmatprep.subr.mxu0 0.0
  %928 = vmatpush1.msra.mxu0 %v478
  %929 = vmatprep.subr.mxu0 0.0
  %930 = vmatpush1.msra.mxu0 %v481
  %931 = vmatprep.subr.mxu0 0.0
  %932 = vmatpush1.msra.mxu0 %v484
  %933 = vmatprep.subr.mxu0 0.0
  %934 = vmatpush1.msra.mxu0 %v487
  %935 = vmatprep.subr.mxu0 0.0
  %936 = vmatpush1.msra.mxu0 %v490
  %937 = vmatprep.subr.mxu0 0.0
  %938 = vmatpush1.msra.mxu0 %v493
  %939 = vmatprep.subr.mxu0 0.0
  %940 = vmatpush1.msra.mxu0 %v496
  %941 = vmatprep.subr.mxu0 0.0
  %942 = vmatpush1.msra.mxu0 %v499
  %943 = vmatprep.subr.mxu0 0.0
  %944 = vmatpush1.msra.mxu0 %v502
  %945 = vmatprep.subr.mxu0 0.0
  %946 = vmatpush1.msra.mxu0 %v505
  %947 = vmatprep.subr.mxu0 0.0
  %948 = vmatpush1.msra.mxu0 %v508
  %949 = vmatprep.subr.mxu0 0.0
  %950 = vmatpush1.msra.mxu0 %v511
  %951 = vmatprep.subr.mxu0 0.0
  %952 = vmatpush1.msra.mxu0 %v514
  %953 = vmatprep.subr.mxu0 0.0
  %954 = vmatpush1.msra.mxu0 0.0
  %955 = vmatprep.subr.mxu0 0.0
  %956 = vmatpush1.msra.mxu0 0.0
  %957 = vmatprep.subr.mxu0 0.0
  %958 = vmatpush1.msra.mxu0 0.0
  %959 = vmatprep.subr.mxu0 0.0
  %960 = vmatpush1.msra.mxu0 0.0
  %961 = vmatprep.subr.mxu0 0.0
  %962 = vmatpush1.msra.mxu0 0.0
  %963 = vmatprep.subr.mxu0 0.0
  %964 = vmatpush1.msra.mxu0 0.0
  %965 = vmatprep.subr.mxu0 0.0
  %966 = vmatpush1.msra.mxu0 0.0
  %967 = vmatprep.subr.mxu0 0.0
  %968 = vmatpush1.msra.mxu0 0.0
  %969 = vmatprep.subr.mxu0 0.0
  %970 = vmatpush1.msra.mxu0 0.0
  %971 = vmatprep.subr.mxu0 0.0
  %972 = vmatpush1.msra.mxu0 0.0
  %973 = vmatprep.subr.mxu0 0.0
  %974 = vmatpush1.msra.mxu0 0.0
  %975 = vmatprep.subr.mxu0 0.0
  %976 = vmatpush1.msra.mxu0 0.0
  %977 = vmatprep.subr.mxu0 0.0
  %978 = vmatpush1.msra.mxu0 0.0
  %979 = vmatprep.subr.mxu0 0.0
  %980 = vmatpush1.msra.mxu0 0.0
  %981 = vmatprep.subr.mxu0 0.0
  %982 = vmatpush1.msra.mxu0 0.0
  %983 = vmatprep.subr.mxu0 0.0
  %984 = vmatpush1.msra.mxu0 0.0
  %985 = vmatprep.mubr.f32.mxu0 0.0
  %986 = vmatmul.mubr.f32.gmra.mrb[0].mxu0 %v848
  %v987 = vpop.f32.mrb[0].mxu0
  %v988 = vadd.f32 0.0, %v987
  %v989 = vpop.f32.mrb[0].mxu0
  %990 = vdwg.mxu0
  %v991 = vadd.f32 %v372, %v917
  %v992 = vxor.u32 %v991, 2147483648
  %v993 = vmul.f32 %v992, 1.442695
  %v994 = vpow.pop %v993
  %v995 = vadd.f32 %v994, 1.0
  %v996 = vrcp.pop %v995
  %v997 = vmul.f32 1.0, %v996
  %v998 = vadd.f32 %v374, %v919
  %v999 = vxor.u32 %v998, 2147483648
  %v1000 = vmul.f32 %v999, 1.442695
  %v1001 = vpow.pop %v1000
  %v1002 = vadd.f32 %v1001, 1.0
  %v1003 = vrcp.pop %v1002
  %v1004 = vmul.f32 1.0, %v1003
  %v1005 = vadd.f32 %v988, %v520
  %v1006 = vmul.f32 %v997, %v1005
  %v1007 = vadd.f32 %v459, %v1006
  %v1008 = vtanh.pop %v1007
  %v1009 = vsub.f32 1.0, %v1004
  %v1010 = vmul.f32 %v1009, %v1008
  %v1011 = vmul.f32 %v1004, %v848
  %v1012 = vadd.f32 %v1010, %v1011
  %1013 = vst [vmem:[#allocation2 + $0x10] sm:$0xff] %v1012
  %1014 = vmatprep.subr.mxu0 %v468
  %1015 = vmatpush1.msra.mxu0 %v467
  %1016 = vmatprep.subr.mxu0 %v471
  %1017 = vmatpush1.msra.mxu0 %v470
  %1018 = vmatprep.subr.mxu0 %v474
  %1019 = vmatpush1.msra.mxu0 %v473
  %1020 = vmatprep.subr.mxu0 %v477
  %1021 = vmatpush1.msra.mxu0 %v476
  %1022 = vmatprep.subr.mxu0 %v480
  %1023 = vmatpush1.msra.mxu0 %v479
  %1024 = vmatprep.subr.mxu0 %v483
  %1025 = vmatpush1.msra.mxu0 %v482
  %1026 = vmatprep.subr.mxu0 %v486
  %1027 = vmatpush1.msra.mxu0 %v485
  %1028 = vmatprep.subr.mxu0 %v489
  %1029 = vmatpush1.msra.mxu0 %v488
  %1030 = vmatprep.subr.mxu0 %v492
  %1031 = vmatpush1.msra.mxu0 %v491
  %1032 = vmatprep.subr.mxu0 %v495
  %1033 = vmatpush1.msra.mxu0 %v494
  %1034 = vmatprep.subr.mxu0 %v498
  %1035 = vmatpush1.msra.mxu0 %v497
  %1036 = vmatprep.subr.mxu0 %v501
  %1037 = vmatpush1.msra.mxu0 %v500
  %1038 = vmatprep.subr.mxu0 %v504
  %1039 = vmatpush1.msra.mxu0 %v503
  %1040 = vmatprep.subr.mxu0 %v507
  %1041 = vmatpush1.msra.mxu0 %v506
  %1042 = vmatprep.subr.mxu0 %v510
  %1043 = vmatpush1.msra.mxu0 %v509
  %1044 = vmatprep.subr.mxu0 %v513
  %1045 = vmatpush1.msra.mxu0 %v512
  %1046 = vmatprep.subr.mxu0 0.0
  %1047 = vmatpush1.msra.mxu0 0.0
  %1048 = vmatprep.subr.mxu0 0.0
  %1049 = vmatpush1.msra.mxu0 0.0
  %1050 = vmatprep.subr.mxu0 0.0
  %1051 = vmatpush1.msra.mxu0 0.0
  %1052 = vmatprep.subr.mxu0 0.0
  %1053 = vmatpush1.msra.mxu0 0.0
  %1054 = vmatprep.subr.mxu0 0.0
  %1055 = vmatpush1.msra.mxu0 0.0
  %1056 = vmatprep.subr.mxu0 0.0
  %1057 = vmatpush1.msra.mxu0 0.0
  %1058 = vmatprep.subr.mxu0 0.0
  %1059 = vmatpush1.msra.mxu0 0.0
  %1060 = vmatprep.subr.mxu0 0.0
  %1061 = vmatpush1.msra.mxu0 0.0
  %1062 = vmatprep.subr.mxu0 0.0
  %1063 = vmatpush1.msra.mxu0 0.0
  %1064 = vmatprep.subr.mxu0 0.0
  %1065 = vmatpush1.msra.mxu0 0.0
  %1066 = vmatprep.subr.mxu0 0.0
  %1067 = vmatpush1.msra.mxu0 0.0
  %1068 = vmatprep.subr.mxu0 0.0
  %1069 = vmatpush1.msra.mxu0 0.0
  %1070 = vmatprep.subr.mxu0 0.0
  %1071 = vmatpush1.msra.mxu0 0.0
  %1072 = vmatprep.subr.mxu0 0.0
  %1073 = vmatpush1.msra.mxu0 0.0
  %1074 = vmatprep.subr.mxu0 0.0
  %1075 = vmatpush1.msra.mxu0 0.0
  %1076 = vmatprep.subr.mxu0 0.0
  %1077 = vmatpush1.msra.mxu0 0.0
  %1078 = vmatprep.mubr.f32.mxu0 0.0
  %1079 = vmatmul.mubr.f32.gmra.mrb[0].mxu0 %v1012
  %v1080 = vpop.f32.mrb[0].mxu0
  %v1081 = vadd.f32 0.0, %v1080
  %v1082 = vpop.f32.mrb[0].mxu0
  %v1083 = vadd.f32 0.0, %v1082
  %1084 = vdwg.mxu0
  %1085 = vmatprep.subr.mxu0 0.0
  %1086 = vmatpush1.msra.mxu0 %v469
  %1087 = vmatprep.subr.mxu0 0.0
  %1088 = vmatpush1.msra.mxu0 %v472
  %1089 = vmatprep.subr.mxu0 0.0
  %1090 = vmatpush1.msra.mxu0 %v475
  %1091 = vmatprep.subr.mxu0 0.0
  %1092 = vmatpush1.msra.mxu0 %v478
  %1093 = vmatprep.subr.mxu0 0.0
  %1094 = vmatpush1.msra.mxu0 %v481
  %1095 = vmatprep.subr.mxu0 0.0
  %1096 = vmatpush1.msra.mxu0 %v484
  %1097 = vmatprep.subr.mxu0 0.0
  %1098 = vmatpush1.msra.mxu0 %v487
  %1099 = vmatprep.subr.mxu0 0.0
  %1100 = vmatpush1.msra.mxu0 %v490
  %1101 = vmatprep.subr.mxu0 0.0
  %1102 = vmatpush1.msra.mxu0 %v493
  %1103 = vmatprep.subr.mxu0 0.0
  %1104 = vmatpush1.msra.mxu0 %v496
  %1105 = vmatprep.subr.mxu0 0.0
  %1106 = vmatpush1.msra.mxu0 %v499
  %1107 = vmatprep.subr.mxu0 0.0
  %1108 = vmatpush1.msra.mxu0 %v502
  %1109 = vmatprep.subr.mxu0 0.0
  %1110 = vmatpush1.msra.mxu0 %v505
  %1111 = vmatprep.subr.mxu0 0.0
  %1112 = vmatpush1.msra.mxu0 %v508
  %1113 = vmatprep.subr.mxu0 0.0
  %1114 = vmatpush1.msra.mxu0 %v511
  %1115 = vmatprep.subr.mxu0 0.0
  %1116 = vmatpush1.msra.mxu0 %v514
  %1117 = vmatprep.subr.mxu0 0.0
  %1118 = vmatpush1.msra.mxu0 0.0
  %1119 = vmatprep.subr.mxu0 0.0
  %1120 = vmatpush1.msra.mxu0 0.0
  %1121 = vmatprep.subr.mxu0 0.0
  %1122 = vmatpush1.msra.mxu0 0.0
  %1123 = vmatprep.subr.mxu0 0.0
  %1124 = vmatpush1.msra.mxu0 0.0
  %1125 = vmatprep.subr.mxu0 0.0
  %1126 = vmatpush1.msra.mxu0 0.0
  %1127 = vmatprep.subr.mxu0 0.0
  %1128 = vmatpush1.msra.mxu0 0.0
  %1129 = vmatprep.subr.mxu0 0.0
  %1130 = vmatpush1.msra.mxu0 0.0
  %1131 = vmatprep.subr.mxu0 0.0
  %1132 = vmatpush1.msra.mxu0 0.0
  %1133 = vmatprep.subr.mxu0 0.0
  %1134 = vmatpush1.msra.mxu0 0.0
  %1135 = vmatprep.subr.mxu0 0.0
  %1136 = vmatpush1.msra.mxu0 0.0
  %1137 = vmatprep.subr.mxu0 0.0
  %1138 = vmatpush1.msra.mxu0 0.0
  %1139 = vmatprep.subr.mxu0 0.0
  %1140 = vmatpush1.msra.mxu0 0.0
  %1141 = vmatprep.subr.mxu0 0.0
  %1142 = vmatpush1.msra.mxu0 0.0
  %1143 = vmatprep.subr.mxu0 0.0
  %1144 = vmatpush1.msra.mxu0 0.0
  %1145 = vmatprep.subr.mxu0 0.0
  %1146 = vmatpush1.msra.mxu0 0.0
  %1147 = vmatprep.subr.mxu0 0.0
  %1148 = vmatpush1.msra.mxu0 0.0
  %1149 = vmatprep.mubr.f32.mxu0 0.0
  %1150 = vmatmul.mubr.f32.gmra.mrb[0].mxu0 %v1012
  %v1151 = vpop.f32.mrb[0].mxu0
  %v1152 = vadd.f32 0.0, %v1151
  %v1153 = vpop.f32.mrb[0].mxu0
  %1154 = vdwg.mxu0
  %v1155 = vadd.f32 %v378, %v1081
  %v1156 = vxor.u32 %v1155, 2147483648
  %v1157 = vmul.f32 %v1156, 1.442695
  %v1158 = vpow.pop %v1157
  %v1159 = vadd.f32 %v1158, 1.0
  %v1160 = vrcp.pop %v1159
  %v1161 = vmul.f32 1.0, %v1160
  %v1162 = vadd.f32 %v380, %v1083
  %v1163 = vxor.u32 %v1162, 2147483648
  %v1164 = vmul.f32 %v1163, 1.442695
  %v1165 = vpow.pop %v1164
  %v1166 = vadd.f32 %v1165, 1.0
  %v1167 = vrcp.pop %v1166
  %v1168 = vmul.f32 1.0, %v1167
  %v1169 = vadd.f32 %v1152, %v520
  %v1170 = vmul.f32 %v1161, %v1169
  %v1171 = vadd.f32 %v464, %v1170
  %v1172 = vtanh.pop %v1171
  %v1173 = vsub.f32 1.0, %v1168
  %v1174 = vmul.f32 %v1173, %v1172
  %v1175 = vmul.f32 %v1168, %v1012
  %v1176 = vadd.f32 %v1174, %v1175
  %1177 = vst [vmem:[#allocation2 + $0x18] sm:$0xff] %v1176
  %v1178 = vld [vmem:[#allocation2] sm:$0xff]
  %v1179 = vld [vmem:[#allocation2 + $0x8] sm:$0xff]
  %v1180 = vld [vmem:[#allocation2 + $0x10] sm:$0xff]
  %v1181 = vld [vmem:[#allocation2 + $0x18] sm:$0xff]
  %v1182 = vld [vmem:[%s4] sm:$0xff]
  %v1183 = vld [vmem:[%s4 + $0x8] sm:$0xff]
  %v1184 = vld [vmem:[%s4 + $0x10] sm:$0xff]
  %v1185 = vld [vmem:[%s4 + $0x18] sm:$0xff]
  %v1186 = vld [vmem:[%s4 + $0x20] sm:$0xff]
  %v1187 = vld [vmem:[%s4 + $0x28] sm:$0xff]
  %v1188 = vld [vmem:[%s4 + $0x30] sm:$0xff]
  %v1189 = vld [vmem:[%s4 + $0x38] sm:$0xff]
  %v1190 = vld [vmem:[%s4 + $0x40] sm:$0xff]
  %v1191 = vld [vmem:[%s4 + $0x48] sm:$0xff]
  %v1192 = vld [vmem:[%s4 + $0x50] sm:$0xff]
  %v1193 = vld [vmem:[%s4 + $0x58] sm:$0xff]
  %v1194 = vld [vmem:[%s4 + $0x60] sm:$0xff]
  %v1195 = vld [vmem:[%s4 + $0x68] sm:$0xff]
  %v1196 = vld [vmem:[%s4 + $0x70] sm:$0xff]
  %v1197 = vld [vmem:[%s4 + $0x78] sm:$0xff]
  %v1198 = vld [vmem:[%s4 + $0x80] sm:$0xff]
  %v1199 = vld [vmem:[%s4 + $0x88] sm:$0xff]
  %v1200 = vld [vmem:[%s4 + $0x90] sm:$0xff]
  %v1201 = vld [vmem:[%s4 + $0x98] sm:$0xff]
  %v1202 = vld [vmem:[%s4 + $0xa0] sm:$0xff]
  %v1203 = vld [vmem:[%s4 + $0xa8] sm:$0xff]
  %v1204 = vld [vmem:[%s4 + $0xb0] sm:$0xff]
  %v1205 = vld [vmem:[%s4 + $0xb8] sm:$0xff]
  %v1206 = vld [vmem:[%s4 + $0xc0] sm:$0xff]
  %v1207 = vld [vmem:[%s4 + $0xc8] sm:$0xff]
  %v1208 = vld [vmem:[%s4 + $0xd0] sm:$0xff]
  %v1209 = vld [vmem:[%s4 + $0xd8] sm:$0xff]
  %v1210 = vld [vmem:[%s4 + $0xe0] sm:$0xff]
  %v1211 = vld [vmem:[%s4 + $0xe8] sm:$0xff]
  %v1212 = vld [vmem:[%s4 + $0xf0] sm:$0xff]
  %v1213 = vld [vmem:[%s4 + $0xf8] sm:$0xff]
  %v1214 = vld [vmem:[%s4 + $0x100] sm:$0xff]
  %v1215 = vld [vmem:[%s4 + $0x108] sm:$0xff]
  %v1216 = vld [vmem:[%s4 + $0x110] sm:$0xff]
  %v1217 = vld [vmem:[%s4 + $0x118] sm:$0xff]
  %v1218 = vld [vmem:[%s4 + $0x120] sm:$0xff]
  %v1219 = vld [vmem:[%s4 + $0x128] sm:$0xff]
  %v1220 = vld [vmem:[%s4 + $0x130] sm:$0xff]
  %v1221 = vld [vmem:[%s4 + $0x138] sm:$0xff]
  %v1222 = vld [vmem:[%s4 + $0x140] sm:$0xff]
  %v1223 = vld [vmem:[%s4 + $0x148] sm:$0xff]
  %v1224 = vld [vmem:[%s4 + $0x150] sm:$0xff]
  %v1225 = vld [vmem:[%s4 + $0x158] sm:$0xff]
  %v1226 = vld [vmem:[%s4 + $0x160] sm:$0xff]
  %v1227 = vld [vmem:[%s4 + $0x168] sm:$0xff]
  %v1228 = vld [vmem:[%s4 + $0x170] sm:$0xff]
  %v1229 = vld [vmem:[%s4 + $0x178] sm:$0xff]
  %s1230 = scalar_lea.vmem %s6, 3
  %v1231 = vld [vmem:[%s1230] sm:$0x7]
  %v1233 = vlaneseq
  %v1234 = vshrl.u32 %v1233, 7
  %v1235 = vsub.s32 0, %v1234
  %v1236 = vrot.slane %v1231, %v1235
  %v1237 = vlaneseq
  %v1238 = vshrl.u32 %v1237, 7
  %v1239 = vsub.s32 1, %v1238
  %v1240 = vrot.slane %v1231, %v1239
  %v1241 = vlaneseq
  %v1242 = vshrl.u32 %v1241, 7
  %v1243 = vsub.s32 2, %v1242
  %v1244 = vrot.slane %v1231, %v1243
  %1248 = vmatprep.subr.mxu0 %v1183
  %1249 = vmatpush1.msra.mxu0 %v1182
  %1250 = vmatprep.subr.mxu0 %v1186
  %1251 = vmatpush1.msra.mxu0 %v1185
  %1252 = vmatprep.subr.mxu0 %v1189
  %1253 = vmatpush1.msra.mxu0 %v1188
  %1254 = vmatprep.subr.mxu0 %v1192
  %1255 = vmatpush1.msra.mxu0 %v1191
  %1256 = vmatprep.subr.mxu0 %v1195
  %1257 = vmatpush1.msra.mxu0 %v1194
  %1258 = vmatprep.subr.mxu0 %v1198
  %1259 = vmatpush1.msra.mxu0 %v1197
  %1260 = vmatprep.subr.mxu0 %v1201
  %1261 = vmatpush1.msra.mxu0 %v1200
  %1262 = vmatprep.subr.mxu0 %v1204
  %1263 = vmatpush1.msra.mxu0 %v1203
  %1264 = vmatprep.subr.mxu0 %v1207
  %1265 = vmatpush1.msra.mxu0 %v1206
  %1266 = vmatprep.subr.mxu0 %v1210
  %1267 = vmatpush1.msra.mxu0 %v1209
  %1268 = vmatprep.subr.mxu0 %v1213
  %1269 = vmatpush1.msra.mxu0 %v1212
  %1270 = vmatprep.subr.mxu0 %v1216
  %1271 = vmatpush1.msra.mxu0 %v1215
  %1272 = vmatprep.subr.mxu0 %v1219
  %1273 = vmatpush1.msra.mxu0 %v1218
  %1274 = vmatprep.subr.mxu0 %v1222
  %1275 = vmatpush1.msra.mxu0 %v1221
  %1276 = vmatprep.subr.mxu0 %v1225
  %1277 = vmatpush1.msra.mxu0 %v1224
  %1278 = vmatprep.subr.mxu0 %v1228
  %1279 = vmatpush1.msra.mxu0 %v1227
  %1280 = vmatprep.subr.mxu0 0.0
  %1281 = vmatpush1.msra.mxu0 0.0
  %1282 = vmatprep.subr.mxu0 0.0
  %1283 = vmatpush1.msra.mxu0 0.0
  %1284 = vmatprep.subr.mxu0 0.0
  %1285 = vmatpush1.msra.mxu0 0.0
  %1286 = vmatprep.subr.mxu0 0.0
  %1287 = vmatpush1.msra.mxu0 0.0
  %1288 = vmatprep.subr.mxu0 0.0
  %1289 = vmatpush1.msra.mxu0 0.0
  %1290 = vmatprep.subr.mxu0 0.0
  %1291 = vmatpush1.msra.mxu0 0.0
  %1292 = vmatprep.subr.mxu0 0.0
  %1293 = vmatpush1.msra.mxu0 0.0
  %1294 = vmatprep.subr.mxu0 0.0
  %1295 = vmatpush1.msra.mxu0 0.0
  %1296 = vmatprep.subr.mxu0 0.0
  %1297 = vmatpush1.msra.mxu0 0.0
  %1298 = vmatprep.subr.mxu0 0.0
  %1299 = vmatpush1.msra.mxu0 0.0
  %1300 = vmatprep.subr.mxu0 0.0
  %1301 = vmatpush1.msra.mxu0 0.0
  %1302 = vmatprep.subr.mxu0 0.0
  %1303 = vmatpush1.msra.mxu0 0.0
  %1304 = vmatprep.subr.mxu0 0.0
  %1305 = vmatpush1.msra.mxu0 0.0
  %1306 = vmatprep.subr.mxu0 0.0
  %1307 = vmatpush1.msra.mxu0 0.0
  %1308 = vmatprep.subr.mxu0 0.0
  %1309 = vmatpush1.msra.mxu0 0.0
  %1310 = vmatprep.subr.mxu0 0.0
  %1311 = vmatpush1.msra.mxu0 0.0
  %1312 = vmatprep.mubr.f32.mxu0 0.0
  %1313 = vmatmul.mubr.f32.gmra.mrb[0].mxu0 %v1178
  %v1314 = vpop.f32.mrb[0].mxu0
  %v1315 = vadd.f32 %v1236, %v1314
  %v1316 = vpop.f32.mrb[0].mxu0
  %v1317 = vadd.f32 %v1240, %v1316
  %1318 = vmatprep.mubr.f32.mxu0 0.0
  %1319 = vmatmul.mubr.f32.gmra.mrb[0].mxu0 %v1179
  %v1320 = vpop.f32.mrb[0].mxu0
  %v1321 = vadd.f32 %v1236, %v1320
  %v1322 = vpop.f32.mrb[0].mxu0
  %v1323 = vadd.f32 %v1240, %v1322
  %1324 = vmatprep.mubr.f32.mxu0 0.0
  %1325 = vmatmul.mubr.f32.gmra.mrb[0].mxu0 %v1180
  %v1326 = vpop.f32.mrb[0].mxu0
  %v1327 = vadd.f32 %v1236, %v1326
  %v1328 = vpop.f32.mrb[0].mxu0
  %v1329 = vadd.f32 %v1240, %v1328
  %1330 = vmatprep.mubr.f32.mxu0 0.0
  %1331 = vmatmul.mubr.f32.gmra.mrb[0].mxu0 %v1181
  %v1332 = vpop.f32.mrb[0].mxu0
  %v1333 = vadd.f32 %v1236, %v1332
  %v1334 = vpop.f32.mrb[0].mxu0
  %v1335 = vadd.f32 %v1240, %v1334
  %1336 = vdwg.mxu0
  %1337 = vmatprep.subr.mxu0 0.0
  %1338 = vmatpush1.msra.mxu0 %v1184
  %1339 = vmatprep.subr.mxu0 0.0
  %1340 = vmatpush1.msra.mxu0 %v1187
  %1341 = vmatprep.subr.mxu0 0.0
  %1342 = vmatpush1.msra.mxu0 %v1190
  %1343 = vmatprep.subr.mxu0 0.0
  %1344 = vmatpush1.msra.mxu0 %v1193
  %1345 = vmatprep.subr.mxu0 0.0
  %1346 = vmatpush1.msra.mxu0 %v1196
  %1347 = vmatprep.subr.mxu0 0.0
  %1348 = vmatpush1.msra.mxu0 %v1199
  %1349 = vmatprep.subr.mxu0 0.0
  %1350 = vmatpush1.msra.mxu0 %v1202
  %1351 = vmatprep.subr.mxu0 0.0
  %1352 = vmatpush1.msra.mxu0 %v1205
  %1353 = vmatprep.subr.mxu0 0.0
  %1354 = vmatpush1.msra.mxu0 %v1208
  %1355 = vmatprep.subr.mxu0 0.0
  %1356 = vmatpush1.msra.mxu0 %v1211
  %1357 = vmatprep.subr.mxu0 0.0
  %1358 = vmatpush1.msra.mxu0 %v1214
  %1359 = vmatprep.subr.mxu0 0.0
  %1360 = vmatpush1.msra.mxu0 %v1217
  %1361 = vmatprep.subr.mxu0 0.0
  %1362 = vmatpush1.msra.mxu0 %v1220
  %1363 = vmatprep.subr.mxu0 0.0
  %1364 = vmatpush1.msra.mxu0 %v1223
  %1365 = vmatprep.subr.mxu0 0.0
  %1366 = vmatpush1.msra.mxu0 %v1226
  %1367 = vmatprep.subr.mxu0 0.0
  %1368 = vmatpush1.msra.mxu0 %v1229
  %1369 = vmatprep.subr.mxu0 0.0
  %1370 = vmatpush1.msra.mxu0 0.0
  %1371 = vmatprep.subr.mxu0 0.0
  %1372 = vmatpush1.msra.mxu0 0.0
  %1373 = vmatprep.subr.mxu0 0.0
  %1374 = vmatpush1.msra.mxu0 0.0
  %1375 = vmatprep.subr.mxu0 0.0
  %1376 = vmatpush1.msra.mxu0 0.0
  %1377 = vmatprep.subr.mxu0 0.0
  %1378 = vmatpush1.msra.mxu0 0.0
  %1379 = vmatprep.subr.mxu0 0.0
  %1380 = vmatpush1.msra.mxu0 0.0
  %1381 = vmatprep.subr.mxu0 0.0
  %1382 = vmatpush1.msra.mxu0 0.0
  %1383 = vmatprep.subr.mxu0 0.0
  %1384 = vmatpush1.msra.mxu0 0.0
  %1385 = vmatprep.subr.mxu0 0.0
  %1386 = vmatpush1.msra.mxu0 0.0
  %1387 = vmatprep.subr.mxu0 0.0
  %1388 = vmatpush1.msra.mxu0 0.0
  %1389 = vmatprep.subr.mxu0 0.0
  %1390 = vmatpush1.msra.mxu0 0.0
  %1391 = vmatprep.subr.mxu0 0.0
  %1392 = vmatpush1.msra.mxu0 0.0
  %1393 = vmatprep.subr.mxu0 0.0
  %1394 = vmatpush1.msra.mxu0 0.0
  %1395 = vmatprep.subr.mxu0 0.0
  %1396 = vmatpush1.msra.mxu0 0.0
  %1397 = vmatprep.subr.mxu0 0.0
  %1398 = vmatpush1.msra.mxu0 0.0
  %1399 = vmatprep.subr.mxu0 0.0
  %1400 = vmatpush1.msra.mxu0 0.0
  %1401 = vmatprep.mubr.f32.mxu0 0.0
  %1402 = vmatmul.mubr.f32.gmra.mrb[0].mxu0 %v1178
  %v1403 = vpop.f32.mrb[0].mxu0
  %v1404 = vadd.f32 %v1244, %v1403
  %v1405 = vpop.f32.mrb[0].mxu0
  %1406 = vmatprep.mubr.f32.mxu0 0.0
  %1407 = vmatmul.mubr.f32.gmra.mrb[0].mxu0 %v1179
  %v1408 = vpop.f32.mrb[0].mxu0
  %v1409 = vadd.f32 %v1244, %v1408
  %v1410 = vpop.f32.mrb[0].mxu0
  %1411 = vmatprep.mubr.f32.mxu0 0.0
  %1412 = vmatmul.mubr.f32.gmra.mrb[0].mxu0 %v1180
  %v1413 = vpop.f32.mrb[0].mxu0
  %v1414 = vadd.f32 %v1244, %v1413
  %v1415 = vpop.f32.mrb[0].mxu0
  %1416 = vmatprep.mubr.f32.mxu0 0.0
  %1417 = vmatmul.mubr.f32.gmra.mrb[0].mxu0 %v1181
  %v1418 = vpop.f32.mrb[0].mxu0
  %v1419 = vadd.f32 %v1244, %v1418
  %v1420 = vpop.f32.mrb[0].mxu0
  %1421 = vdwg.mxu0
  %s1422 = scalar_lea.vmem %s5, 384
  %v1423 = vld [vmem:[%s1422] sm:$0xff]
  %v1424 = vld [vmem:[%s1422 + $0x8] sm:$0xff]
  %v1425 = vld [vmem:[%s1422 + $0x10] sm:$0xff]
  %v1426 = vld [vmem:[%s1422 + $0x18] sm:$0xff]
  %v1427 = vld [vmem:[%s1422 + $0x20] sm:$0xff]
  %v1428 = vld [vmem:[%s1422 + $0x28] sm:$0xff]
  %v1429 = vld [vmem:[%s1422 + $0x30] sm:$0xff]
  %v1430 = vld [vmem:[%s1422 + $0x38] sm:$0xff]
  %v1431 = vld [vmem:[%s1422 + $0x40] sm:$0xff]
  %v1432 = vld [vmem:[%s1422 + $0x48] sm:$0xff]
  %v1433 = vld [vmem:[%s1422 + $0x50] sm:$0xff]
  %v1434 = vld [vmem:[%s1422 + $0x58] sm:$0xff]
  %v1435 = vld [vmem:[%s1422 + $0x60] sm:$0xff]
  %v1436 = vld [vmem:[%s1422 + $0x68] sm:$0xff]
  %v1437 = vld [vmem:[%s1422 + $0x70] sm:$0xff]
  %v1438 = vld [vmem:[%s1422 + $0x78] sm:$0xff]
  %v1439 = vld [vmem:[%s1422 + $0x80] sm:$0xff]
  %v1440 = vld [vmem:[%s1422 + $0x88] sm:$0xff]
  %v1441 = vld [vmem:[%s1422 + $0x90] sm:$0xff]
  %v1442 = vld [vmem:[%s1422 + $0x98] sm:$0xff]
  %v1443 = vld [vmem:[%s1422 + $0xa0] sm:$0xff]
  %v1444 = vld [vmem:[%s1422 + $0xa8] sm:$0xff]
  %v1445 = vld [vmem:[%s1422 + $0xb0] sm:$0xff]
  %v1446 = vld [vmem:[%s1422 + $0xb8] sm:$0xff]
  %v1447 = vld [vmem:[%s1422 + $0xc0] sm:$0xff]
  %v1448 = vld [vmem:[%s1422 + $0xc8] sm:$0xff]
  %v1449 = vld [vmem:[%s1422 + $0xd0] sm:$0xff]
  %v1450 = vld [vmem:[%s1422 + $0xd8] sm:$0xff]
  %v1451 = vld [vmem:[%s1422 + $0xe0] sm:$0xff]
  %v1452 = vld [vmem:[%s1422 + $0xe8] sm:$0xff]
  %v1453 = vld [vmem:[%s1422 + $0xf0] sm:$0xff]
  %v1454 = vld [vmem:[%s1422 + $0xf8] sm:$0xff]
  %v1455 = vld [vmem:[%s1422 + $0x100] sm:$0xff]
  %v1456 = vld [vmem:[%s1422 + $0x108] sm:$0xff]
  %v1457 = vld [vmem:[%s1422 + $0x110] sm:$0xff]
  %v1458 = vld [vmem:[%s1422 + $0x118] sm:$0xff]
  %v1459 = vld [vmem:[%s1422 + $0x120] sm:$0xff]
  %v1460 = vld [vmem:[%s1422 + $0x128] sm:$0xff]
  %v1461 = vld [vmem:[%s1422 + $0x130] sm:$0xff]
  %v1462 = vld [vmem:[%s1422 + $0x138] sm:$0xff]
  %v1463 = vld [vmem:[%s1422 + $0x140] sm:$0xff]
  %v1464 = vld [vmem:[%s1422 + $0x148] sm:$0xff]
  %v1465 = vld [vmem:[%s1422 + $0x150] sm:$0xff]
  %v1466 = vld [vmem:[%s1422 + $0x158] sm:$0xff]
  %v1467 = vld [vmem:[%s1422 + $0x160] sm:$0xff]
  %v1468 = vld [vmem:[%s1422 + $0x168] sm:$0xff]
  %v1469 = vld [vmem:[%s1422 + $0x170] sm:$0xff]
  %v1470 = vld [vmem:[%s1422 + $0x178] sm:$0xff]
  %s1471 = scalar_lea.vmem %s7, 1
  %v1472 = vld [vmem:[%s1471] sm:$0x1]
  %v1474 = vlaneseq
  %v1475 = vshrl.u32 %v1474, 7
  %v1476 = vsub.s32 0, %v1475
  %v1477 = vrot.slane %v1472, %v1476
  %1479 = vmatprep.subr.mxu0 %v1424
  %1480 = vmatpush1.msra.mxu0 %v1423
  %1481 = vmatprep.subr.mxu0 %v1427
  %1482 = vmatpush1.msra.mxu0 %v1426
  %1483 = vmatprep.subr.mxu0 %v1430
  %1484 = vmatpush1.msra.mxu0 %v1429
  %1485 = vmatprep.subr.mxu0 %v1433
  %1486 = vmatpush1.msra.mxu0 %v1432
  %1487 = vmatprep.subr.mxu0 %v1436
  %1488 = vmatpush1.msra.mxu0 %v1435
  %1489 = vmatprep.subr.mxu0 %v1439
  %1490 = vmatpush1.msra.mxu0 %v1438
  %1491 = vmatprep.subr.mxu0 %v1442
  %1492 = vmatpush1.msra.mxu0 %v1441
  %1493 = vmatprep.subr.mxu0 %v1445
  %1494 = vmatpush1.msra.mxu0 %v1444
  %1495 = vmatprep.subr.mxu0 %v1448
  %1496 = vmatpush1.msra.mxu0 %v1447
  %1497 = vmatprep.subr.mxu0 %v1451
  %1498 = vmatpush1.msra.mxu0 %v1450
  %1499 = vmatprep.subr.mxu0 %v1454
  %1500 = vmatpush1.msra.mxu0 %v1453
  %1501 = vmatprep.subr.mxu0 %v1457
  %1502 = vmatpush1.msra.mxu0 %v1456
  %1503 = vmatprep.subr.mxu0 %v1460
  %1504 = vmatpush1.msra.mxu0 %v1459
  %1505 = vmatprep.subr.mxu0 %v1463
  %1506 = vmatpush1.msra.mxu0 %v1462
  %1507 = vmatprep.subr.mxu0 %v1466
  %1508 = vmatpush1.msra.mxu0 %v1465
  %1509 = vmatprep.subr.mxu0 %v1469
  %1510 = vmatpush1.msra.mxu0 %v1468
  %1511 = vmatprep.subr.mxu0 0.0
  %1512 = vmatpush1.msra.mxu0 0.0
  %1513 = vmatprep.subr.mxu0 0.0
  %1514 = vmatpush1.msra.mxu0 0.0
  %1515 = vmatprep.subr.mxu0 0.0
  %1516 = vmatpush1.msra.mxu0 0.0
  %1517 = vmatprep.subr.mxu0 0.0
  %1518 = vmatpush1.msra.mxu0 0.0
  %1519 = vmatprep.subr.mxu0 0.0
  %1520 = vmatpush1.msra.mxu0 0.0
  %1521 = vmatprep.subr.mxu0 0.0
  %1522 = vmatpush1.msra.mxu0 0.0
  %1523 = vmatprep.subr.mxu0 0.0
  %1524 = vmatpush1.msra.mxu0 0.0
  %1525 = vmatprep.subr.mxu0 0.0
  %1526 = vmatpush1.msra.mxu0 0.0
  %1527 = vmatprep.subr.mxu0 0.0
  %1528 = vmatpush1.msra.mxu0 0.0
  %1529 = vmatprep.subr.mxu0 0.0
  %1530 = vmatpush1.msra.mxu0 0.0
  %1531 = vmatprep.subr.mxu0 0.0
  %1532 = vmatpush1.msra.mxu0 0.0
  %1533 = vmatprep.subr.mxu0 0.0
  %1534 = vmatpush1.msra.mxu0 0.0
  %1535 = vmatprep.subr.mxu0 0.0
  %1536 = vmatpush1.msra.mxu0 0.0
  %1537 = vmatprep.subr.mxu0 0.0
  %1538 = vmatpush1.msra.mxu0 0.0
  %1539 = vmatprep.subr.mxu0 0.0
  %1540 = vmatpush1.msra.mxu0 0.0
  %1541 = vmatprep.subr.mxu0 0.0
  %1542 = vmatpush1.msra.mxu0 0.0
  %1543 = vmatprep.mubr.f32.mxu0 0.0
  %1544 = vmatmul.mubr.f32.gmra.mrb[0].mxu0 0.0
  %v1545 = vpop.f32.mrb[0].mxu0
  %v1546 = vadd.f32 0.0, %v1545
  %v1547 = vpop.f32.mrb[0].mxu0
  %v1548 = vadd.f32 0.0, %v1547
  %1549 = vdwg.mxu0
  %1550 = vmatprep.subr.mxu0 0.0
  %1551 = vmatpush1.msra.mxu0 %v1425
  %1552 = vmatprep.subr.mxu0 0.0
  %1553 = vmatpush1.msra.mxu0 %v1428
  %1554 = vmatprep.subr.mxu0 0.0
  %1555 = vmatpush1.msra.mxu0 %v1431
  %1556 = vmatprep.subr.mxu0 0.0
  %1557 = vmatpush1.msra.mxu0 %v1434
  %1558 = vmatprep.subr.mxu0 0.0
  %1559 = vmatpush1.msra.mxu0 %v1437
  %1560 = vmatprep.subr.mxu0 0.0
  %1561 = vmatpush1.msra.mxu0 %v1440
  %1562 = vmatprep.subr.mxu0 0.0
  %1563 = vmatpush1.msra.mxu0 %v1443
  %1564 = vmatprep.subr.mxu0 0.0
  %1565 = vmatpush1.msra.mxu0 %v1446
  %1566 = vmatprep.subr.mxu0 0.0
  %1567 = vmatpush1.msra.mxu0 %v1449
  %1568 = vmatprep.subr.mxu0 0.0
  %1569 = vmatpush1.msra.mxu0 %v1452
  %1570 = vmatprep.subr.mxu0 0.0
  %1571 = vmatpush1.msra.mxu0 %v1455
  %1572 = vmatprep.subr.mxu0 0.0
  %1573 = vmatpush1.msra.mxu0 %v1458
  %1574 = vmatprep.subr.mxu0 0.0
  %1575 = vmatpush1.msra.mxu0 %v1461
  %1576 = vmatprep.subr.mxu0 0.0
  %1577 = vmatpush1.msra.mxu0 %v1464
  %1578 = vmatprep.subr.mxu0 0.0
  %1579 = vmatpush1.msra.mxu0 %v1467
  %1580 = vmatprep.subr.mxu0 0.0
  %1581 = vmatpush1.msra.mxu0 %v1470
  %1582 = vmatprep.subr.mxu0 0.0
  %1583 = vmatpush1.msra.mxu0 0.0
  %1584 = vmatprep.subr.mxu0 0.0
  %1585 = vmatpush1.msra.mxu0 0.0
  %1586 = vmatprep.subr.mxu0 0.0
  %1587 = vmatpush1.msra.mxu0 0.0
  %1588 = vmatprep.subr.mxu0 0.0
  %1589 = vmatpush1.msra.mxu0 0.0
  %1590 = vmatprep.subr.mxu0 0.0
  %1591 = vmatpush1.msra.mxu0 0.0
  %1592 = vmatprep.subr.mxu0 0.0
  %1593 = vmatpush1.msra.mxu0 0.0
  %1594 = vmatprep.subr.mxu0 0.0
  %1595 = vmatpush1.msra.mxu0 0.0
  %1596 = vmatprep.subr.mxu0 0.0
  %1597 = vmatpush1.msra.mxu0 0.0
  %1598 = vmatprep.subr.mxu0 0.0
  %1599 = vmatpush1.msra.mxu0 0.0
  %1600 = vmatprep.subr.mxu0 0.0
  %1601 = vmatpush1.msra.mxu0 0.0
  %1602 = vmatprep.subr.mxu0 0.0
  %1603 = vmatpush1.msra.mxu0 0.0
  %1604 = vmatprep.subr.mxu0 0.0
  %1605 = vmatpush1.msra.mxu0 0.0
  %1606 = vmatprep.subr.mxu0 0.0
  %1607 = vmatpush1.msra.mxu0 0.0
  %1608 = vmatprep.subr.mxu0 0.0
  %1609 = vmatpush1.msra.mxu0 0.0
  %1610 = vmatprep.subr.mxu0 0.0
  %1611 = vmatpush1.msra.mxu0 0.0
  %1612 = vmatprep.subr.mxu0 0.0
  %1613 = vmatpush1.msra.mxu0 0.0
  %1614 = vmatprep.mubr.f32.mxu0 0.0
  %1615 = vmatmul.mubr.f32.gmra.mrb[0].mxu0 0.0
  %v1616 = vpop.f32.mrb[0].mxu0
  %v1617 = vadd.f32 0.0, %v1616
  %v1618 = vpop.f32.mrb[0].mxu0
  %1619 = vdwg.mxu0
  %v1620 = vadd.f32 %v1315, %v1546
  %v1621 = vxor.u32 %v1620, 2147483648
  %v1622 = vmul.f32 %v1621, 1.442695
  %v1623 = vpow.pop %v1622
  %v1624 = vadd.f32 %v1623, 1.0
  %v1625 = vrcp.pop %v1624
  %v1626 = vmul.f32 1.0, %v1625
  %v1627 = vadd.f32 %v1317, %v1548
  %v1628 = vxor.u32 %v1627, 2147483648
  %v1629 = vmul.f32 %v1628, 1.442695
  %v1630 = vpow.pop %v1629
  %v1631 = vadd.f32 %v1630, 1.0
  %v1632 = vrcp.pop %v1631
  %v1633 = vmul.f32 1.0, %v1632
  %v1634 = vadd.f32 %v1617, %v1477
  %v1635 = vmul.f32 %v1626, %v1634
  %v1636 = vadd.f32 %v1404, %v1635
  %v1637 = vtanh.pop %v1636
  %v1638 = vsub.f32 1.0, %v1633
  %v1639 = vmul.f32 %v1638, %v1637
  %v1640 = vmul.f32 %v1633, 0.0
  %v1641 = vadd.f32 %v1639, %v1640
  %1642 = vst [vmem:[#allocation2] sm:$0xff] %v1641
  %1643 = vmatprep.subr.mxu0 %v1424
  %1644 = vmatpush1.msra.mxu0 %v1423
  %1645 = vmatprep.subr.mxu0 %v1427
  %1646 = vmatpush1.msra.mxu0 %v1426
  %1647 = vmatprep.subr.mxu0 %v1430
  %1648 = vmatpush1.msra.mxu0 %v1429
  %1649 = vmatprep.subr.mxu0 %v1433
  %1650 = vmatpush1.msra.mxu0 %v1432
  %1651 = vmatprep.subr.mxu0 %v1436
  %1652 = vmatpush1.msra.mxu0 %v1435
  %1653 = vmatprep.subr.mxu0 %v1439
  %1654 = vmatpush1.msra.mxu0 %v1438
  %1655 = vmatprep.subr.mxu0 %v1442
  %1656 = vmatpush1.msra.mxu0 %v1441
  %1657 = vmatprep.subr.mxu0 %v1445
  %1658 = vmatpush1.msra.mxu0 %v1444
  %1659 = vmatprep.subr.mxu0 %v1448
  %1660 = vmatpush1.msra.mxu0 %v1447
  %1661 = vmatprep.subr.mxu0 %v1451
  %1662 = vmatpush1.msra.mxu0 %v1450
  %1663 = vmatprep.subr.mxu0 %v1454
  %1664 = vmatpush1.msra.mxu0 %v1453
  %1665 = vmatprep.subr.mxu0 %v1457
  %1666 = vmatpush1.msra.mxu0 %v1456
  %1667 = vmatprep.subr.mxu0 %v1460
  %1668 = vmatpush1.msra.mxu0 %v1459
  %1669 = vmatprep.subr.mxu0 %v1463
  %1670 = vmatpush1.msra.mxu0 %v1462
  %1671 = vmatprep.subr.mxu0 %v1466
  %1672 = vmatpush1.msra.mxu0 %v1465
  %1673 = vmatprep.subr.mxu0 %v1469
  %1674 = vmatpush1.msra.mxu0 %v1468
  %1675 = vmatprep.subr.mxu0 0.0
  %1676 = vmatpush1.msra.mxu0 0.0
  %1677 = vmatprep.subr.mxu0 0.0
  %1678 = vmatpush1.msra.mxu0 0.0
  %1679 = vmatprep.subr.mxu0 0.0
  %1680 = vmatpush1.msra.mxu0 0.0
  %1681 = vmatprep.subr.mxu0 0.0
  %1682 = vmatpush1.msra.mxu0 0.0
  %1683 = vmatprep.subr.mxu0 0.0
  %1684 = vmatpush1.msra.mxu0 0.0
  %1685 = vmatprep.subr.mxu0 0.0
  %1686 = vmatpush1.msra.mxu0 0.0
  %1687 = vmatprep.subr.mxu0 0.0
  %1688 = vmatpush1.msra.mxu0 0.0
  %1689 = vmatprep.subr.mxu0 0.0
  %1690 = vmatpush1.msra.mxu0 0.0
  %1691 = vmatprep.subr.mxu0 0.0
  %1692 = vmatpush1.msra.mxu0 0.0
  %1693 = vmatprep.subr.mxu0 0.0
  %1694 = vmatpush1.msra.mxu0 0.0
  %1695 = vmatprep.subr.mxu0 0.0
  %1696 = vmatpush1.msra.mxu0 0.0
  %1697 = vmatprep.subr.mxu0 0.0
  %1698 = vmatpush1.msra.mxu0 0.0
  %1699 = vmatprep.subr.mxu0 0.0
  %1700 = vmatpush1.msra.mxu0 0.0
  %1701 = vmatprep.subr.mxu0 0.0
  %1702 = vmatpush1.msra.mxu0 0.0
  %1703 = vmatprep.subr.mxu0 0.0
  %1704 = vmatpush1.msra.mxu0 0.0
  %1705 = vmatprep.subr.mxu0 0.0
  %1706 = vmatpush1.msra.mxu0 0.0
  %1707 = vmatprep.mubr.f32.mxu0 0.0
  %1708 = vmatmul.mubr.f32.gmra.mrb[0].mxu0 %v1641
  %v1709 = vpop.f32.mrb[0].mxu0
  %v1710 = vadd.f32 0.0, %v1709
  %v1711 = vpop.f32.mrb[0].mxu0
  %v1712 = vadd.f32 0.0, %v1711
  %1713 = vdwg.mxu0
  %1714 = vmatprep.subr.mxu0 0.0
  %1715 = vmatpush1.msra.mxu0 %v1425
  %1716 = vmatprep.subr.mxu0 0.0
  %1717 = vmatpush1.msra.mxu0 %v1428
  %1718 = vmatprep.subr.mxu0 0.0
  %1719 = vmatpush1.msra.mxu0 %v1431
  %1720 = vmatprep.subr.mxu0 0.0
  %1721 = vmatpush1.msra.mxu0 %v1434
  %1722 = vmatprep.subr.mxu0 0.0
  %1723 = vmatpush1.msra.mxu0 %v1437
  %1724 = vmatprep.subr.mxu0 0.0
  %1725 = vmatpush1.msra.mxu0 %v1440
  %1726 = vmatprep.subr.mxu0 0.0
  %1727 = vmatpush1.msra.mxu0 %v1443
  %1728 = vmatprep.subr.mxu0 0.0
  %1729 = vmatpush1.msra.mxu0 %v1446
  %1730 = vmatprep.subr.mxu0 0.0
  %1731 = vmatpush1.msra.mxu0 %v1449
  %1732 = vmatprep.subr.mxu0 0.0
  %1733 = vmatpush1.msra.mxu0 %v1452
  %1734 = vmatprep.subr.mxu0 0.0
  %1735 = vmatpush1.msra.mxu0 %v1455
  %1736 = vmatprep.subr.mxu0 0.0
  %1737 = vmatpush1.msra.mxu0 %v1458
  %1738 = vmatprep.subr.mxu0 0.0
  %1739 = vmatpush1.msra.mxu0 %v1461
  %1740 = vmatprep.subr.mxu0 0.0
  %1741 = vmatpush1.msra.mxu0 %v1464
  %1742 = vmatprep.subr.mxu0 0.0
  %1743 = vmatpush1.msra.mxu0 %v1467
  %1744 = vmatprep.subr.mxu0 0.0
  %1745 = vmatpush1.msra.mxu0 %v1470
  %1746 = vmatprep.subr.mxu0 0.0
  %1747 = vmatpush1.msra.mxu0 0.0
  %1748 = vmatprep.subr.mxu0 0.0
  %1749 = vmatpush1.msra.mxu0 0.0
  %1750 = vmatprep.subr.mxu0 0.0
  %1751 = vmatpush1.msra.mxu0 0.0
  %1752 = vmatprep.subr.mxu0 0.0
  %1753 = vmatpush1.msra.mxu0 0.0
  %1754 = vmatprep.subr.mxu0 0.0
  %1755 = vmatpush1.msra.mxu0 0.0
  %1756 = vmatprep.subr.mxu0 0.0
  %1757 = vmatpush1.msra.mxu0 0.0
  %1758 = vmatprep.subr.mxu0 0.0
  %1759 = vmatpush1.msra.mxu0 0.0
  %1760 = vmatprep.subr.mxu0 0.0
  %1761 = vmatpush1.msra.mxu0 0.0
  %1762 = vmatprep.subr.mxu0 0.0
  %1763 = vmatpush1.msra.mxu0 0.0
  %1764 = vmatprep.subr.mxu0 0.0
  %1765 = vmatpush1.msra.mxu0 0.0
  %1766 = vmatprep.subr.mxu0 0.0
  %1767 = vmatpush1.msra.mxu0 0.0
  %1768 = vmatprep.subr.mxu0 0.0
  %1769 = vmatpush1.msra.mxu0 0.0
  %1770 = vmatprep.subr.mxu0 0.0
  %1771 = vmatpush1.msra.mxu0 0.0
  %1772 = vmatprep.subr.mxu0 0.0
  %1773 = vmatpush1.msra.mxu0 0.0
  %1774 = vmatprep.subr.mxu0 0.0
  %1775 = vmatpush1.msra.mxu0 0.0
  %1776 = vmatprep.subr.mxu0 0.0
  %1777 = vmatpush1.msra.mxu0 0.0
  %1778 = vmatprep.mubr.f32.mxu0 0.0
  %1779 = vmatmul.mubr.f32.gmra.mrb[0].mxu0 %v1641
  %v1780 = vpop.f32.mrb[0].mxu0
  %v1781 = vadd.f32 0.0, %v1780
  %v1782 = vpop.f32.mrb[0].mxu0
  %1783 = vdwg.mxu0
  %v1784 = vadd.f32 %v1321, %v1710
  %v1785 = vxor.u32 %v1784, 2147483648
  %v1786 = vmul.f32 %v1785, 1.442695
  %v1787 = vpow.pop %v1786
  %v1788 = vadd.f32 %v1787, 1.0
  %v1789 = vrcp.pop %v1788
  %v1790 = vmul.f32 1.0, %v1789
  %v1791 = vadd.f32 %v1323, %v1712
  %v1792 = vxor.u32 %v1791, 2147483648
  %v1793 = vmul.f32 %v1792, 1.442695
  %v1794 = vpow.pop %v1793
  %v1795 = vadd.f32 %v1794, 1.0
  %v1796 = vrcp.pop %v1795
  %v1797 = vmul.f32 1.0, %v1796
  %v1798 = vadd.f32 %v1781, %v1477
  %v1799 = vmul.f32 %v1790, %v1798
  %v1800 = vadd.f32 %v1409, %v1799
  %v1801 = vtanh.pop %v1800
  %v1802 = vsub.f32 1.0, %v1797
  %v1803 = vmul.f32 %v1802, %v1801
  %v1804 = vmul.f32 %v1797, %v1641
  %v1805 = vadd.f32 %v1803, %v1804
  %1806 = vst [vmem:[#allocation2 + $0x8] sm:$0xff] %v1805
  %1807 = vmatprep.subr.mxu0 %v1424
  %1808 = vmatpush1.msra.mxu0 %v1423
  %1809 = vmatprep.subr.mxu0 %v1427
  %1810 = vmatpush1.msra.mxu0 %v1426
  %1811 = vmatprep.subr.mxu0 %v1430
  %1812 = vmatpush1.msra.mxu0 %v1429
  %1813 = vmatprep.subr.mxu0 %v1433
  %1814 = vmatpush1.msra.mxu0 %v1432
  %1815 = vmatprep.subr.mxu0 %v1436
  %1816 = vmatpush1.msra.mxu0 %v1435
  %1817 = vmatprep.subr.mxu0 %v1439
  %1818 = vmatpush1.msra.mxu0 %v1438
  %1819 = vmatprep.subr.mxu0 %v1442
  %1820 = vmatpush1.msra.mxu0 %v1441
  %1821 = vmatprep.subr.mxu0 %v1445
  %1822 = vmatpush1.msra.mxu0 %v1444
  %1823 = vmatprep.subr.mxu0 %v1448
  %1824 = vmatpush1.msra.mxu0 %v1447
  %1825 = vmatprep.subr.mxu0 %v1451
  %1826 = vmatpush1.msra.mxu0 %v1450
  %1827 = vmatprep.subr.mxu0 %v1454
  %1828 = vmatpush1.msra.mxu0 %v1453
  %1829 = vmatprep.subr.mxu0 %v1457
  %1830 = vmatpush1.msra.mxu0 %v1456
  %1831 = vmatprep.subr.mxu0 %v1460
  %1832 = vmatpush1.msra.mxu0 %v1459
  %1833 = vmatprep.subr.mxu0 %v1463
  %1834 = vmatpush1.msra.mxu0 %v1462
  %1835 = vmatprep.subr.mxu0 %v1466
  %1836 = vmatpush1.msra.mxu0 %v1465
  %1837 = vmatprep.subr.mxu0 %v1469
  %1838 = vmatpush1.msra.mxu0 %v1468
  %1839 = vmatprep.subr.mxu0 0.0
  %1840 = vmatpush1.msra.mxu0 0.0
  %1841 = vmatprep.subr.mxu0 0.0
  %1842 = vmatpush1.msra.mxu0 0.0
  %1843 = vmatprep.subr.mxu0 0.0
  %1844 = vmatpush1.msra.mxu0 0.0
  %1845 = vmatprep.subr.mxu0 0.0
  %1846 = vmatpush1.msra.mxu0 0.0
  %1847 = vmatprep.subr.mxu0 0.0
  %1848 = vmatpush1.msra.mxu0 0.0
  %1849 = vmatprep.subr.mxu0 0.0
  %1850 = vmatpush1.msra.mxu0 0.0
  %1851 = vmatprep.subr.mxu0 0.0
  %1852 = vmatpush1.msra.mxu0 0.0
  %1853 = vmatprep.subr.mxu0 0.0
  %1854 = vmatpush1.msra.mxu0 0.0
  %1855 = vmatprep.subr.mxu0 0.0
  %1856 = vmatpush1.msra.mxu0 0.0
  %1857 = vmatprep.subr.mxu0 0.0
  %1858 = vmatpush1.msra.mxu0 0.0
  %1859 = vmatprep.subr.mxu0 0.0
  %1860 = vmatpush1.msra.mxu0 0.0
  %1861 = vmatprep.subr.mxu0 0.0
  %1862 = vmatpush1.msra.mxu0 0.0
  %1863 = vmatprep.subr.mxu0 0.0
  %1864 = vmatpush1.msra.mxu0 0.0
  %1865 = vmatprep.subr.mxu0 0.0
  %1866 = vmatpush1.msra.mxu0 0.0
  %1867 = vmatprep.subr.mxu0 0.0
  %1868 = vmatpush1.msra.mxu0 0.0
  %1869 = vmatprep.subr.mxu0 0.0
  %1870 = vmatpush1.msra.mxu0 0.0
  %1871 = vmatprep.mubr.f32.mxu0 0.0
  %1872 = vmatmul.mubr.f32.gmra.mrb[0].mxu0 %v1805
  %v1873 = vpop.f32.mrb[0].mxu0
  %v1874 = vadd.f32 0.0, %v1873
  %v1875 = vpop.f32.mrb[0].mxu0
  %v1876 = vadd.f32 0.0, %v1875
  %1877 = vdwg.mxu0
  %1878 = vmatprep.subr.mxu0 0.0
  %1879 = vmatpush1.msra.mxu0 %v1425
  %1880 = vmatprep.subr.mxu0 0.0
  %1881 = vmatpush1.msra.mxu0 %v1428
  %1882 = vmatprep.subr.mxu0 0.0
  %1883 = vmatpush1.msra.mxu0 %v1431
  %1884 = vmatprep.subr.mxu0 0.0
  %1885 = vmatpush1.msra.mxu0 %v1434
  %1886 = vmatprep.subr.mxu0 0.0
  %1887 = vmatpush1.msra.mxu0 %v1437
  %1888 = vmatprep.subr.mxu0 0.0
  %1889 = vmatpush1.msra.mxu0 %v1440
  %1890 = vmatprep.subr.mxu0 0.0
  %1891 = vmatpush1.msra.mxu0 %v1443
  %1892 = vmatprep.subr.mxu0 0.0
  %1893 = vmatpush1.msra.mxu0 %v1446
  %1894 = vmatprep.subr.mxu0 0.0
  %1895 = vmatpush1.msra.mxu0 %v1449
  %1896 = vmatprep.subr.mxu0 0.0
  %1897 = vmatpush1.msra.mxu0 %v1452
  %1898 = vmatprep.subr.mxu0 0.0
  %1899 = vmatpush1.msra.mxu0 %v1455
  %1900 = vmatprep.subr.mxu0 0.0
  %1901 = vmatpush1.msra.mxu0 %v1458
  %1902 = vmatprep.subr.mxu0 0.0
  %1903 = vmatpush1.msra.mxu0 %v1461
  %1904 = vmatprep.subr.mxu0 0.0
  %1905 = vmatpush1.msra.mxu0 %v1464
  %1906 = vmatprep.subr.mxu0 0.0
  %1907 = vmatpush1.msra.mxu0 %v1467
  %1908 = vmatprep.subr.mxu0 0.0
  %1909 = vmatpush1.msra.mxu0 %v1470
  %1910 = vmatprep.subr.mxu0 0.0
  %1911 = vmatpush1.msra.mxu0 0.0
  %1912 = vmatprep.subr.mxu0 0.0
  %1913 = vmatpush1.msra.mxu0 0.0
  %1914 = vmatprep.subr.mxu0 0.0
  %1915 = vmatpush1.msra.mxu0 0.0
  %1916 = vmatprep.subr.mxu0 0.0
  %1917 = vmatpush1.msra.mxu0 0.0
  %1918 = vmatprep.subr.mxu0 0.0
  %1919 = vmatpush1.msra.mxu0 0.0
  %1920 = vmatprep.subr.mxu0 0.0
  %1921 = vmatpush1.msra.mxu0 0.0
  %1922 = vmatprep.subr.mxu0 0.0
  %1923 = vmatpush1.msra.mxu0 0.0
  %1924 = vmatprep.subr.mxu0 0.0
  %1925 = vmatpush1.msra.mxu0 0.0
  %1926 = vmatprep.subr.mxu0 0.0
  %1927 = vmatpush1.msra.mxu0 0.0
  %1928 = vmatprep.subr.mxu0 0.0
  %1929 = vmatpush1.msra.mxu0 0.0
  %1930 = vmatprep.subr.mxu0 0.0
  %1931 = vmatpush1.msra.mxu0 0.0
  %1932 = vmatprep.subr.mxu0 0.0
  %1933 = vmatpush1.msra.mxu0 0.0
  %1934 = vmatprep.subr.mxu0 0.0
  %1935 = vmatpush1.msra.mxu0 0.0
  %1936 = vmatprep.subr.mxu0 0.0
  %1937 = vmatpush1.msra.mxu0 0.0
  %1938 = vmatprep.subr.mxu0 0.0
  %1939 = vmatpush1.msra.mxu0 0.0
  %1940 = vmatprep.subr.mxu0 0.0
  %1941 = vmatpush1.msra.mxu0 0.0
  %1942 = vmatprep.mubr.f32.mxu0 0.0
  %1943 = vmatmul.mubr.f32.gmra.mrb[0].mxu0 %v1805
  %v1944 = vpop.f32.mrb[0].mxu0
  %v1945 = vadd.f32 0.0, %v1944
  %v1946 = vpop.f32.mrb[0].mxu0
  %1947 = vdwg.mxu0
  %v1948 = vadd.f32 %v1327, %v1874
  %v1949 = vxor.u32 %v1948, 2147483648
  %v1950 = vmul.f32 %v1949, 1.442695
  %v1951 = vpow.pop %v1950
  %v1952 = vadd.f32 %v1951, 1.0
  %v1953 = vrcp.pop %v1952
  %v1954 = vmul.f32 1.0, %v1953
  %v1955 = vadd.f32 %v1329, %v1876
  %v1956 = vxor.u32 %v1955, 2147483648
  %v1957 = vmul.f32 %v1956, 1.442695
  %v1958 = vpow.pop %v1957
  %v1959 = vadd.f32 %v1958, 1.0
  %v1960 = vrcp.pop %v1959
  %v1961 = vmul.f32 1.0, %v1960
  %v1962 = vadd.f32 %v1945, %v1477
  %v1963 = vmul.f32 %v1954, %v1962
  %v1964 = vadd.f32 %v1414, %v1963
  %v1965 = vtanh.pop %v1964
  %v1966 = vsub.f32 1.0, %v1961
  %v1967 = vmul.f32 %v1966, %v1965
  %v1968 = vmul.f32 %v1961, %v1805
  %v1969 = vadd.f32 %v1967, %v1968
  %1970 = vst [vmem:[#allocation2 + $0x10] sm:$0xff] %v1969
  %1971 = vmatprep.subr.mxu0 %v1424
  %1972 = vmatpush1.msra.mxu0 %v1423
  %1973 = vmatprep.subr.mxu0 %v1427
  %1974 = vmatpush1.msra.mxu0 %v1426
  %1975 = vmatprep.subr.mxu0 %v1430
  %1976 = vmatpush1.msra.mxu0 %v1429
  %1977 = vmatprep.subr.mxu0 %v1433
  %1978 = vmatpush1.msra.mxu0 %v1432
  %1979 = vmatprep.subr.mxu0 %v1436
  %1980 = vmatpush1.msra.mxu0 %v1435
  %1981 = vmatprep.subr.mxu0 %v1439
  %1982 = vmatpush1.msra.mxu0 %v1438
  %1983 = vmatprep.subr.mxu0 %v1442
  %1984 = vmatpush1.msra.mxu0 %v1441
  %1985 = vmatprep.subr.mxu0 %v1445
  %1986 = vmatpush1.msra.mxu0 %v1444
  %1987 = vmatprep.subr.mxu0 %v1448
  %1988 = vmatpush1.msra.mxu0 %v1447
  %1989 = vmatprep.subr.mxu0 %v1451
  %1990 = vmatpush1.msra.mxu0 %v1450
  %1991 = vmatprep.subr.mxu0 %v1454
  %1992 = vmatpush1.msra.mxu0 %v1453
  %1993 = vmatprep.subr.mxu0 %v1457
  %1994 = vmatpush1.msra.mxu0 %v1456
  %1995 = vmatprep.subr.mxu0 %v1460
  %1996 = vmatpush1.msra.mxu0 %v1459
  %1997 = vmatprep.subr.mxu0 %v1463
  %1998 = vmatpush1.msra.mxu0 %v1462
  %1999 = vmatprep.subr.mxu0 %v1466
  %2000 = vmatpush1.msra.mxu0 %v1465
  %2001 = vmatprep.subr.mxu0 %v1469
  %2002 = vmatpush1.msra.mxu0 %v1468
  %2003 = vmatprep.subr.mxu0 0.0
  %2004 = vmatpush1.msra.mxu0 0.0
  %2005 = vmatprep.subr.mxu0 0.0
  %2006 = vmatpush1.msra.mxu0 0.0
  %2007 = vmatprep.subr.mxu0 0.0
  %2008 = vmatpush1.msra.mxu0 0.0
  %2009 = vmatprep.subr.mxu0 0.0
  %2010 = vmatpush1.msra.mxu0 0.0
  %2011 = vmatprep.subr.mxu0 0.0
  %2012 = vmatpush1.msra.mxu0 0.0
  %2013 = vmatprep.subr.mxu0 0.0
  %2014 = vmatpush1.msra.mxu0 0.0
  %2015 = vmatprep.subr.mxu0 0.0
  %2016 = vmatpush1.msra.mxu0 0.0
  %2017 = vmatprep.subr.mxu0 0.0
  %2018 = vmatpush1.msra.mxu0 0.0
  %2019 = vmatprep.subr.mxu0 0.0
  %2020 = vmatpush1.msra.mxu0 0.0
  %2021 = vmatprep.subr.mxu0 0.0
  %2022 = vmatpush1.msra.mxu0 0.0
  %2023 = vmatprep.subr.mxu0 0.0
  %2024 = vmatpush1.msra.mxu0 0.0
  %2025 = vmatprep.subr.mxu0 0.0
  %2026 = vmatpush1.msra.mxu0 0.0
  %2027 = vmatprep.subr.mxu0 0.0
  %2028 = vmatpush1.msra.mxu0 0.0
  %2029 = vmatprep.subr.mxu0 0.0
  %2030 = vmatpush1.msra.mxu0 0.0
  %2031 = vmatprep.subr.mxu0 0.0
  %2032 = vmatpush1.msra.mxu0 0.0
  %2033 = vmatprep.subr.mxu0 0.0
  %2034 = vmatpush1.msra.mxu0 0.0
  %2035 = vmatprep.mubr.f32.mxu0 0.0
  %2036 = vmatmul.mubr.f32.gmra.mrb[0].mxu0 %v1969
  %v2037 = vpop.f32.mrb[0].mxu0
  %v2038 = vadd.f32 0.0, %v2037
  %v2039 = vpop.f32.mrb[0].mxu0
  %v2040 = vadd.f32 0.0, %v2039
  %2041 = vdwg.mxu0
  %2042 = vmatprep.subr.mxu0 0.0
  %2043 = vmatpush1.msra.mxu0 %v1425
  %2044 = vmatprep.subr.mxu0 0.0
  %2045 = vmatpush1.msra.mxu0 %v1428
  %2046 = vmatprep.subr.mxu0 0.0
  %2047 = vmatpush1.msra.mxu0 %v1431
  %2048 = vmatprep.subr.mxu0 0.0
  %2049 = vmatpush1.msra.mxu0 %v1434
  %2050 = vmatprep.subr.mxu0 0.0
  %2051 = vmatpush1.msra.mxu0 %v1437
  %2052 = vmatprep.subr.mxu0 0.0
  %2053 = vmatpush1.msra.mxu0 %v1440
  %2054 = vmatprep.subr.mxu0 0.0
  %2055 = vmatpush1.msra.mxu0 %v1443
  %2056 = vmatprep.subr.mxu0 0.0
  %2057 = vmatpush1.msra.mxu0 %v1446
  %2058 = vmatprep.subr.mxu0 0.0
  %2059 = vmatpush1.msra.mxu0 %v1449
  %2060 = vmatprep.subr.mxu0 0.0
  %2061 = vmatpush1.msra.mxu0 %v1452
  %2062 = vmatprep.subr.mxu0 0.0
  %2063 = vmatpush1.msra.mxu0 %v1455
  %2064 = vmatprep.subr.mxu0 0.0
  %2065 = vmatpush1.msra.mxu0 %v1458
  %2066 = vmatprep.subr.mxu0 0.0
  %2067 = vmatpush1.msra.mxu0 %v1461
  %2068 = vmatprep.subr.mxu0 0.0
  %2069 = vmatpush1.msra.mxu0 %v1464
  %2070 = vmatprep.subr.mxu0 0.0
  %2071 = vmatpush1.msra.mxu0 %v1467
  %2072 = vmatprep.subr.mxu0 0.0
  %2073 = vmatpush1.msra.mxu0 %v1470
  %2074 = vmatprep.subr.mxu0 0.0
  %2075 = vmatpush1.msra.mxu0 0.0
  %2076 = vmatprep.subr.mxu0 0.0
  %2077 = vmatpush1.msra.mxu0 0.0
  %2078 = vmatprep.subr.mxu0 0.0
  %2079 = vmatpush1.msra.mxu0 0.0
  %2080 = vmatprep.subr.mxu0 0.0
  %2081 = vmatpush1.msra.mxu0 0.0
  %2082 = vmatprep.subr.mxu0 0.0
  %2083 = vmatpush1.msra.mxu0 0.0
  %2084 = vmatprep.subr.mxu0 0.0
  %2085 = vmatpush1.msra.mxu0 0.0
  %2086 = vmatprep.subr.mxu0 0.0
  %2087 = vmatpush1.msra.mxu0 0.0
  %2088 = vmatprep.subr.mxu0 0.0
  %2089 = vmatpush1.msra.mxu0 0.0
  %2090 = vmatprep.subr.mxu0 0.0
  %2091 = vmatpush1.msra.mxu0 0.0
  %2092 = vmatprep.subr.mxu0 0.0
  %2093 = vmatpush1.msra.mxu0 0.0
  %2094 = vmatprep.subr.mxu0 0.0
  %2095 = vmatpush1.msra.mxu0 0.0
  %2096 = vmatprep.subr.mxu0 0.0
  %2097 = vmatpush1.msra.mxu0 0.0
  %2098 = vmatprep.subr.mxu0 0.0
  %2099 = vmatpush1.msra.mxu0 0.0
  %2100 = vmatprep.subr.mxu0 0.0
  %2101 = vmatpush1.msra.mxu0 0.0
  %2102 = vmatprep.subr.mxu0 0.0
  %2103 = vmatpush1.msra.mxu0 0.0
  %2104 = vmatprep.subr.mxu0 0.0
  %2105 = vmatpush1.msra.mxu0 0.0
  %2106 = vmatprep.mubr.f32.mxu0 0.0
  %2107 = vmatmul.mubr.f32.gmra.mrb[0].mxu0 %v1969
  %v2108 = vpop.f32.mrb[0].mxu0
  %v2109 = vadd.f32 0.0, %v2108
  %v2110 = vpop.f32.mrb[0].mxu0
  %2111 = vdwg.mxu0
  %v2112 = vadd.f32 %v1333, %v2038
  %v2113 = vxor.u32 %v2112, 2147483648
  %v2114 = vmul.f32 %v2113, 1.442695
  %v2115 = vpow.pop %v2114
  %v2116 = vadd.f32 %v2115, 1.0
  %v2117 = vrcp.pop %v2116
  %v2118 = vmul.f32 1.0, %v2117
  %v2119 = vadd.f32 %v1335, %v2040
  %v2120 = vxor.u32 %v2119, 2147483648
  %v2121 = vmul.f32 %v2120, 1.442695
  %v2122 = vpow.pop %v2121
  %v2123 = vadd.f32 %v2122, 1.0
  %v2124 = vrcp.pop %v2123
  %v2125 = vmul.f32 1.0, %v2124
  %v2126 = vadd.f32 %v2109, %v1477
  %v2127 = vmul.f32 %v2118, %v2126
  %v2128 = vadd.f32 %v1419, %v2127
  %v2129 = vtanh.pop %v2128
  %v2130 = vsub.f32 1.0, %v2125
  %v2131 = vmul.f32 %v2130, %v2129
  %v2132 = vmul.f32 %v2125, %v1969
  %v2133 = vadd.f32 %v2131, %v2132
  %2134 = vst [vmem:[#allocation2 + $0x18] sm:$0xff] %v2133
  %v2135 = vld [vmem:[#allocation2] sm:$0xff]
  %v2136 = vld [vmem:[#allocation2 + $0x8] sm:$0xff]
  %v2137 = vld [vmem:[#allocation2 + $0x10] sm:$0xff]
  %v2138 = vld [vmem:[#allocation2 + $0x18] sm:$0xff]
  %v2139 = vld [vmem:[%s8] sm:$0xff]
  %v2140 = vld [vmem:[%s8 + $0x8] sm:$0xff]
  %v2141 = vld [vmem:[%s8 + $0x10] sm:$0xff]
  %v2142 = vld [vmem:[%s8 + $0x18] sm:$0xff]
  %v2143 = vld [vmem:[%s9] sm:$0x1]
  %v2145 = vlaneseq
  %v2146 = vshrl.u32 %v2145, 7
  %v2147 = vsub.s32 0, %v2146
  %v2148 = vrot.slane %v2143, %v2147
  %v2151 = vsel %vm217, %v2135, 0
  %v2154 = vsel %vm217, %v2136, 0
  %v2157 = vsel %vm217, %v2137, 0
  %v2160 = vsel %vm217, %v2138, 0
  %2162 = vmatprep.subr.mxu0 0.0
  %2163 = vmatpush1.msra.mxu0 %v2139
  %2164 = vmatprep.subr.mxu0 0.0
  %2165 = vmatpush1.msra.mxu0 %v2140
  %2166 = vmatprep.subr.mxu0 0.0
  %2167 = vmatpush1.msra.mxu0 %v2141
  %2168 = vmatprep.subr.mxu0 0.0
  %2169 = vmatpush1.msra.mxu0 %v2142
  %2170 = vmatprep.subr.mxu0 0.0
  %2171 = vmatpush1.msra.mxu0 0.0
  %2172 = vmatprep.subr.mxu0 0.0
  %2173 = vmatpush1.msra.mxu0 0.0
  %2174 = vmatprep.subr.mxu0 0.0
  %2175 = vmatpush1.msra.mxu0 0.0
  %2176 = vmatprep.subr.mxu0 0.0
  %2177 = vmatpush1.msra.mxu0 0.0
  %2178 = vmatprep.subr.mxu0 0.0
  %2179 = vmatpush1.msra.mxu0 0.0
  %2180 = vmatprep.subr.mxu0 0.0
  %2181 = vmatpush1.msra.mxu0 0.0
  %2182 = vmatprep.subr.mxu0 0.0
  %2183 = vmatpush1.msra.mxu0 0.0
  %2184 = vmatprep.subr.mxu0 0.0
  %2185 = vmatpush1.msra.mxu0 0.0
  %2186 = vmatprep.subr.mxu0 0.0
  %2187 = vmatpush1.msra.mxu0 0.0
  %2188 = vmatprep.subr.mxu0 0.0
  %2189 = vmatpush1.msra.mxu0 0.0
  %2190 = vmatprep.subr.mxu0 0.0
  %2191 = vmatpush1.msra.mxu0 0.0
  %2192 = vmatprep.subr.mxu0 0.0
  %2193 = vmatpush1.msra.mxu0 0.0
  %2194 = vmatprep.subr.mxu0 0.0
  %2195 = vmatpush1.msra.mxu0 0.0
  %2196 = vmatprep.subr.mxu0 0.0
  %2197 = vmatpush1.msra.mxu0 0.0
  %2198 = vmatprep.subr.mxu0 0.0
  %2199 = vmatpush1.msra.mxu0 0.0
  %2200 = vmatprep.subr.mxu0 0.0
  %2201 = vmatpush1.msra.mxu0 0.0
  %2202 = vmatprep.subr.mxu0 0.0
  %2203 = vmatpush1.msra.mxu0 0.0
  %2204 = vmatprep.subr.mxu0 0.0
  %2205 = vmatpush1.msra.mxu0 0.0
  %2206 = vmatprep.subr.mxu0 0.0
  %2207 = vmatpush1.msra.mxu0 0.0
  %2208 = vmatprep.subr.mxu0 0.0
  %2209 = vmatpush1.msra.mxu0 0.0
  %2210 = vmatprep.subr.mxu0 0.0
  %2211 = vmatpush1.msra.mxu0 0.0
  %2212 = vmatprep.subr.mxu0 0.0
  %2213 = vmatpush1.msra.mxu0 0.0
  %2214 = vmatprep.subr.mxu0 0.0
  %2215 = vmatpush1.msra.mxu0 0.0
  %2216 = vmatprep.subr.mxu0 0.0
  %2217 = vmatpush1.msra.mxu0 0.0
  %2218 = vmatprep.subr.mxu0 0.0
  %2219 = vmatpush1.msra.mxu0 0.0
  %2220 = vmatprep.subr.mxu0 0.0
  %2221 = vmatpush1.msra.mxu0 0.0
  %2222 = vmatprep.subr.mxu0 0.0
  %2223 = vmatpush1.msra.mxu0 0.0
  %2224 = vmatprep.subr.mxu0 0.0
  %2225 = vmatpush1.msra.mxu0 0.0
  %2226 = vmatprep.mubr.f32.mxu0 0.0
  %2227 = vmatmul.mubr.f32.gmra.mrb[0].mxu0 %v2151
  %v2228 = vpop.f32.mrb[0].mxu0
  %v2229 = vadd.f32 %v2148, %v2228
  %v2230 = vpop.f32.mrb[0].mxu0
  %2231 = vmatprep.mubr.f32.mxu0 0.0
  %2232 = vmatmul.mubr.f32.gmra.mrb[0].mxu0 %v2154
  %v2233 = vpop.f32.mrb[0].mxu0
  %v2234 = vadd.f32 %v2148, %v2233
  %v2235 = vpop.f32.mrb[0].mxu0
  %2236 = vmatprep.mubr.f32.mxu0 0.0
  %2237 = vmatmul.mubr.f32.gmra.mrb[0].mxu0 %v2157
  %v2238 = vpop.f32.mrb[0].mxu0
  %v2239 = vadd.f32 %v2148, %v2238
  %v2240 = vpop.f32.mrb[0].mxu0
  %2241 = vmatprep.mubr.f32.mxu0 0.0
  %2242 = vmatmul.mubr.f32.gmra.mrb[0].mxu0 %v2160
  %v2243 = vpop.f32.mrb[0].mxu0
  %v2244 = vadd.f32 %v2148, %v2243
  %v2245 = vpop.f32.mrb[0].mxu0
  %2246 = vdwg.mxu0
  %v2247 = vtanh.pop %v2229
  %v2248 = vtanh.pop %v2234
  %v2249 = vtanh.pop %v2239
  %v2250 = vtanh.pop %v2244
  %v2251 = vld [vmem:[%s10] sm:$0xff]
  %v2252 = vld [vmem:[%s10 + $0x8] sm:$0xff]
  %vm2253 = vcmask 130048
  %v2255 = vsel %vm2253, %v2247, 0
  %v2258 = vsel %vm2253, %v2248, 0
  %v2261 = vsel %vm2253, %v2249, 0
  %v2264 = vsel %vm2253, %v2250, 0
  %2266 = vmatprep.subr.mxu0 0.0
  %2267 = vmatpush1.msra.mxu0 %v2251
  %2268 = vmatprep.subr.mxu0 0.0
  %2269 = vmatpush1.msra.mxu0 %v2252
  %2270 = vmatprep.subr.mxu0 0.0
  %2271 = vmatpush1.msra.mxu0 0.0
  %2272 = vmatprep.subr.mxu0 0.0
  %2273 = vmatpush1.msra.mxu0 0.0
  %2274 = vmatprep.subr.mxu0 0.0
  %2275 = vmatpush1.msra.mxu0 0.0
  %2276 = vmatprep.subr.mxu0 0.0
  %2277 = vmatpush1.msra.mxu0 0.0
  %2278 = vmatprep.subr.mxu0 0.0
  %2279 = vmatpush1.msra.mxu0 0.0
  %2280 = vmatprep.subr.mxu0 0.0
  %2281 = vmatpush1.msra.mxu0 0.0
  %2282 = vmatprep.subr.mxu0 0.0
  %2283 = vmatpush1.msra.mxu0 0.0
  %2284 = vmatprep.subr.mxu0 0.0
  %2285 = vmatpush1.msra.mxu0 0.0
  %2286 = vmatprep.subr.mxu0 0.0
  %2287 = vmatpush1.msra.mxu0 0.0
  %2288 = vmatprep.subr.mxu0 0.0
  %2289 = vmatpush1.msra.mxu0 0.0
  %2290 = vmatprep.subr.mxu0 0.0
  %2291 = vmatpush1.msra.mxu0 0.0
  %2292 = vmatprep.subr.mxu0 0.0
  %2293 = vmatpush1.msra.mxu0 0.0
  %2294 = vmatprep.subr.mxu0 0.0
  %2295 = vmatpush1.msra.mxu0 0.0
  %2296 = vmatprep.subr.mxu0 0.0
  %2297 = vmatpush1.msra.mxu0 0.0
  %2298 = vmatprep.subr.mxu0 0.0
  %2299 = vmatpush1.msra.mxu0 0.0
  %2300 = vmatprep.subr.mxu0 0.0
  %2301 = vmatpush1.msra.mxu0 0.0
  %2302 = vmatprep.subr.mxu0 0.0
  %2303 = vmatpush1.msra.mxu0 0.0
  %2304 = vmatprep.subr.mxu0 0.0
  %2305 = vmatpush1.msra.mxu0 0.0
  %2306 = vmatprep.subr.mxu0 0.0
  %2307 = vmatpush1.msra.mxu0 0.0
  %2308 = vmatprep.subr.mxu0 0.0
  %2309 = vmatpush1.msra.mxu0 0.0
  %2310 = vmatprep.subr.mxu0 0.0
  %2311 = vmatpush1.msra.mxu0 0.0
  %2312 = vmatprep.subr.mxu0 0.0
  %2313 = vmatpush1.msra.mxu0 0.0
  %2314 = vmatprep.subr.mxu0 0.0
  %2315 = vmatpush1.msra.mxu0 0.0
  %2316 = vmatprep.subr.mxu0 0.0
  %2317 = vmatpush1.msra.mxu0 0.0
  %2318 = vmatprep.subr.mxu0 0.0
  %2319 = vmatpush1.msra.mxu0 0.0
  %2320 = vmatprep.subr.mxu0 0.0
  %2321 = vmatpush1.msra.mxu0 0.0
  %2322 = vmatprep.subr.mxu0 0.0
  %2323 = vmatpush1.msra.mxu0 0.0
  %2324 = vmatprep.subr.mxu0 0.0
  %2325 = vmatpush1.msra.mxu0 0.0
  %2326 = vmatprep.subr.mxu0 0.0
  %2327 = vmatpush1.msra.mxu0 0.0
  %2328 = vmatprep.subr.mxu0 0.0
  %2329 = vmatpush1.msra.mxu0 0.0
  %2330 = vmatprep.mubr.f32.mxu0 0.0
  %2331 = vmatmul.mubr.f32.gmra.mrb[0].mxu0 %v2255
  %v2332 = vpop.f32.mrb[0].mxu0
  %v2333 = vadd.f32 0.0, %v2332
  %v2334 = vpop.f32.mrb[0].mxu0
  %2335 = vmatprep.mubr.f32.mxu0 0.0
  %2336 = vmatmul.mubr.f32.gmra.mrb[0].mxu0 %v2258
  %v2337 = vpop.f32.mrb[0].mxu0
  %v2338 = vadd.f32 0.0, %v2337
  %v2339 = vpop.f32.mrb[0].mxu0
  %2340 = vmatprep.mubr.f32.mxu0 0.0
  %2341 = vmatmul.mubr.f32.gmra.mrb[0].mxu0 %v2261
  %v2342 = vpop.f32.mrb[0].mxu0
  %v2343 = vadd.f32 0.0, %v2342
  %v2344 = vpop.f32.mrb[0].mxu0
  %2345 = vmatprep.mubr.f32.mxu0 0.0
  %2346 = vmatmul.mubr.f32.gmra.mrb[0].mxu0 %v2264
  %v2347 = vpop.f32.mrb[0].mxu0
  %v2348 = vadd.f32 0.0, %v2347
  %v2349 = vpop.f32.mrb[0].mxu0
  %2350 = vdwg.mxu0
  %v2351 = vmax.f32 %v2333, %v2338
  %v2352 = vmax.f32 %v2351, %v2343
  %v2353 = vmax.f32 %v2352, %v2348
  %v2354 = vsub.f32 %v2333, %v2353
  %v2355 = vmul.f32 %v2354, 1.442695
  %v2356 = vpow.pop %v2355
  %v2357 = vsub.f32 %v2338, %v2353
  %v2358 = vmul.f32 %v2357, 1.442695
  %v2359 = vpow.pop %v2358
  %v2360 = vsub.f32 %v2343, %v2353
  %v2361 = vmul.f32 %v2360, 1.442695
  %v2362 = vpow.pop %v2361
  %v2363 = vsub.f32 %v2348, %v2353
  %v2364 = vmul.f32 %v2363, 1.442695
  %v2365 = vpow.pop %v2364
  %v2366 = vadd.f32 %v2356, %v2359
  %v2367 = vadd.f32 %v2366, %v2362
  %v2368 = vadd.f32 %v2367, %v2365
  %v2369 = vrcp.pop %v2368
  %v2370 = vmul.f32 1.0, %v2369
  %v2371 = vmul.f32 %v2356, %v2370
  %2373 = vset.pattern.permute.xlu0 0
  %2374 = vperm.xlu0 %2373, %v2371
  %v2375 = vpop.permute.xlu0 %2374
  %v2377 = vmul.f32 %v2375, %v2135
  %v2378 = vmul.f32 %v2359, %v2370
  %2380 = vset.pattern.permute.xlu0 0
  %2381 = vperm.xlu0 %2380, %v2378
  %v2382 = vpop.permute.xlu0 %2381
  %v2384 = vmul.f32 %v2382, %v2136
  %v2385 = vadd.f32 %v2377, %v2384
  %v2386 = vmul.f32 %v2362, %v2370
  %2388 = vset.pattern.permute.xlu0 0
  %2389 = vperm.xlu0 %2388, %v2386
  %v2390 = vpop.permute.xlu0 %2389
  %v2392 = vmul.f32 %v2390, %v2137
  %v2393 = vadd.f32 %v2385, %v2392
  %v2394 = vmul.f32 %v2365, %v2370
  %2396 = vset.pattern.permute.xlu0 0
  %2397 = vperm.xlu0 %2396, %v2394
  %v2398 = vpop.permute.xlu0 %2397
  %v2400 = vmul.f32 %v2398, %v2138
  %v2401 = vadd.f32 %v2393, %v2400
  %v2402 = vld [vmem:[%s11] sm:$0xff]
  %v2403 = vld [vmem:[%s11 + $0x8] sm:$0xff]
  %v2404 = vld [vmem:[%s11 + $0x10] sm:$0xff]
  %v2405 = vld [vmem:[%s11 + $0x18] sm:$0xff]
  %v2407 = vsel %vm217, %v2133, 0
  %2409 = vmatprep.subr.mxu0 0.0
  %2410 = vmatpush1.msra.mxu0 %v2402
  %2411 = vmatprep.subr.mxu0 0.0
  %2412 = vmatpush1.msra.mxu0 %v2403
  %2413 = vmatprep.subr.mxu0 0.0
  %2414 = vmatpush1.msra.mxu0 %v2404
  %2415 = vmatprep.subr.mxu0 0.0
  %2416 = vmatpush1.msra.mxu0 %v2405
  %2417 = vmatprep.subr.mxu0 0.0
  %2418 = vmatpush1.msra.mxu0 0.0
  %2419 = vmatprep.subr.mxu0 0.0
  %2420 = vmatpush1.msra.mxu0 0.0
  %2421 = vmatprep.subr.mxu0 0.0
  %2422 = vmatpush1.msra.mxu0 0.0
  %2423 = vmatprep.subr.mxu0 0.0
  %2424 = vmatpush1.msra.mxu0 0.0
  %2425 = vmatprep.subr.mxu0 0.0
  %2426 = vmatpush1.msra.mxu0 0.0
  %2427 = vmatprep.subr.mxu0 0.0
  %2428 = vmatpush1.msra.mxu0 0.0
  %2429 = vmatprep.subr.mxu0 0.0
  %2430 = vmatpush1.msra.mxu0 0.0
  %2431 = vmatprep.subr.mxu0 0.0
  %2432 = vmatpush1.msra.mxu0 0.0
  %2433 = vmatprep.subr.mxu0 0.0
  %2434 = vmatpush1.msra.mxu0 0.0
  %2435 = vmatprep.subr.mxu0 0.0
  %2436 = vmatpush1.msra.mxu0 0.0
  %2437 = vmatprep.subr.mxu0 0.0
  %2438 = vmatpush1.msra.mxu0 0.0
  %2439 = vmatprep.subr.mxu0 0.0
  %2440 = vmatpush1.msra.mxu0 0.0
  %2441 = vmatprep.subr.mxu0 0.0
  %2442 = vmatpush1.msra.mxu0 0.0
  %2443 = vmatprep.subr.mxu0 0.0
  %2444 = vmatpush1.msra.mxu0 0.0
  %2445 = vmatprep.subr.mxu0 0.0
  %2446 = vmatpush1.msra.mxu0 0.0
  %2447 = vmatprep.subr.mxu0 0.0
  %2448 = vmatpush1.msra.mxu0 0.0
  %2449 = vmatprep.subr.mxu0 0.0
  %2450 = vmatpush1.msra.mxu0 0.0
  %2451 = vmatprep.subr.mxu0 0.0
  %2452 = vmatpush1.msra.mxu0 0.0
  %2453 = vmatprep.subr.mxu0 0.0
  %2454 = vmatpush1.msra.mxu0 0.0
  %2455 = vmatprep.subr.mxu0 0.0
  %2456 = vmatpush1.msra.mxu0 0.0
  %2457 = vmatprep.subr.mxu0 0.0
  %2458 = vmatpush1.msra.mxu0 0.0
  %2459 = vmatprep.subr.mxu0 0.0
  %2460 = vmatpush1.msra.mxu0 0.0
  %2461 = vmatprep.subr.mxu0 0.0
  %2462 = vmatpush1.msra.mxu0 0.0
  %2463 = vmatprep.subr.mxu0 0.0
  %2464 = vmatpush1.msra.mxu0 0.0
  %2465 = vmatprep.subr.mxu0 0.0
  %2466 = vmatpush1.msra.mxu0 0.0
  %2467 = vmatprep.subr.mxu0 0.0
  %2468 = vmatpush1.msra.mxu0 0.0
  %2469 = vmatprep.subr.mxu0 0.0
  %2470 = vmatpush1.msra.mxu0 0.0
  %2471 = vmatprep.subr.mxu0 0.0
  %2472 = vmatpush1.msra.mxu0 0.0
  %2473 = vmatprep.mubr.f32.mxu0 0.0
  %2474 = vmatmul.mubr.f32.gmra.mrb[0].mxu0 %v2407
  %v2475 = vpop.f32.mrb[0].mxu0
  %v2476 = vadd.f32 0.0, %v2475
  %v2477 = vpop.f32.mrb[0].mxu0
  %2478 = vdwg.mxu0
  %v2479 = vld [vmem:[%s12] sm:$0x1]
  %v2480 = vlaneseq
  %v2481 = vshrl.u32 %v2480, 7
  %v2482 = vlaneseq
  %v2483 = vand.u32 %v2482, 127
  %vm2484 = vcmp.eq.s32.totalorder %v2481, %v2483
  %v2485 = vsel %vm2484, 1, 0
  %v2486 = vcvt.s32.f32 %v2485
  %v2487 = vmul.f32 %v2133, %v2133
  %2489 = vrot.lane.b32.xlu0 %v2487, 96
  %v2490 = vpop.permute.xlu0 %2489
  %v2492 = vsel %vm217, %v2490, 0.0
  %2493 = vadd.xlane.f32.xlu0 %v2492
  %v2494 = vpop.xlane.xlu0 %2493
  %v2495 = vrsqrt.pop %v2494
  %v2496 = vmul.f32 %v2494, %v2495
  %vm2497 = vcmp.eq.f32.partialorder %v2494, inf
  %v2498 = vsel %vm2497, %v2494, %v2496
  %vm2499 = vcmp.eq.f32.partialorder %v2494, 0.0
  %v2500 = vand.u32 %v2494, 2147483648
  %v2501 = vsel %vm2499, %v2500, %v2498
  %v2502 = vmax.f32 %v2501, 1e-06
  %v2503 = vrcp.pop %v2502
  %v2504 = vmul.f32 %v2133, %v2503
  %2506 = vrot.lane.b32.xlu0 %v2504, 96
  %v2507 = vpop.permute.xlu0 %2506
  %v2508 = vsel %vm217, %v2507, 0
  %2510 = vmatprep.subr.mxu0 0.0
  %2511 = vmatpush1.xpose.msra.mxu0 %v2508
  %2512 = vmatprep.subr.mxu0 0.0
  %2513 = vmatpush1.xpose.msra.mxu0 0.0
  %2514 = vmatprep.subr.mxu0 0.0
  %2515 = vmatpush1.xpose.msra.mxu0 0.0
  %2516 = vmatprep.subr.mxu0 0.0
  %2517 = vmatpush1.xpose.msra.mxu0 0.0
  %2518 = vmatprep.subr.mxu0 0.0
  %2519 = vmatpush1.xpose.msra.mxu0 0.0
  %2520 = vmatprep.subr.mxu0 0.0
  %2521 = vmatpush1.xpose.msra.mxu0 0.0
  %2522 = vmatprep.subr.mxu0 0.0
  %2523 = vmatpush1.xpose.msra.mxu0 0.0
  %2524 = vmatprep.subr.mxu0 0.0
  %2525 = vmatpush1.xpose.msra.mxu0 0.0
  %2526 = vmatprep.subr.mxu0 0.0
  %2527 = vmatpush1.xpose.msra.mxu0 0.0
  %2528 = vmatprep.subr.mxu0 0.0
  %2529 = vmatpush1.xpose.msra.mxu0 0.0
  %2530 = vmatprep.subr.mxu0 0.0
  %2531 = vmatpush1.xpose.msra.mxu0 0.0
  %2532 = vmatprep.subr.mxu0 0.0
  %2533 = vmatpush1.xpose.msra.mxu0 0.0
  %2534 = vmatprep.subr.mxu0 0.0
  %2535 = vmatpush1.xpose.msra.mxu0 0.0
  %2536 = vmatprep.subr.mxu0 0.0
  %2537 = vmatpush1.xpose.msra.mxu0 0.0
  %2538 = vmatprep.subr.mxu0 0.0
  %2539 = vmatpush1.xpose.msra.mxu0 0.0
  %2540 = vmatprep.subr.mxu0 0.0
  %2541 = vmatpush1.xpose.msra.mxu0 0.0
  %2542 = vmatprep.subr.mxu0 0.0
  %2543 = vmatpush1.xpose.msra.mxu0 0.0
  %2544 = vmatprep.subr.mxu0 0.0
  %2545 = vmatpush1.xpose.msra.mxu0 0.0
  %2546 = vmatprep.subr.mxu0 0.0
  %2547 = vmatpush1.xpose.msra.mxu0 0.0
  %2548 = vmatprep.subr.mxu0 0.0
  %2549 = vmatpush1.xpose.msra.mxu0 0.0
  %2550 = vmatprep.subr.mxu0 0.0
  %2551 = vmatpush1.xpose.msra.mxu0 0.0
  %2552 = vmatprep.subr.mxu0 0.0
  %2553 = vmatpush1.xpose.msra.mxu0 0.0
  %2554 = vmatprep.subr.mxu0 0.0
  %2555 = vmatpush1.xpose.msra.mxu0 0.0
  %2556 = vmatprep.subr.mxu0 0.0
  %2557 = vmatpush1.xpose.msra.mxu0 0.0
  %2558 = vmatprep.subr.mxu0 0.0
  %2559 = vmatpush1.xpose.msra.mxu0 0.0
  %2560 = vmatprep.subr.mxu0 0.0
  %2561 = vmatpush1.xpose.msra.mxu0 0.0
  %2562 = vmatprep.subr.mxu0 0.0
  %2563 = vmatpush1.xpose.msra.mxu0 0.0
  %2564 = vmatprep.subr.mxu0 0.0
  %2565 = vmatpush1.xpose.msra.mxu0 0.0
  %2566 = vmatprep.subr.mxu0 0.0
  %2567 = vmatpush1.xpose.msra.mxu0 0.0
  %2568 = vmatprep.subr.mxu0 0.0
  %2569 = vmatpush1.xpose.msra.mxu0 0.0
  %2570 = vmatprep.subr.mxu0 0.0
  %2571 = vmatpush1.xpose.msra.mxu0 0.0
  %2572 = vmatprep.subr.mxu0 0.0
  %2573 = vmatpush1.xpose.msra.mxu0 0.0
  %2574 = vmatprep.mubr.f32.mxu0 0.0
  %2575 = vmatmul.mubr.f32.gmra.mrb[0].mxu0 %v2508
  %v2576 = vpop.f32.mrb[0].mxu0
  %v2577 = vadd.f32 0.0, %v2576
  %v2578 = vpop.f32.mrb[0].mxu0
  %2579 = vdwg.mxu0
  %v2580 = vsub.f32 %v2577, %v2486
  %2582 = vrot.lane.b32.xlu0 %v2476, 127
  %v2583 = vpop.permute.xlu0 %2582
  %2585 = vxpose.xlu0.b32.start [1/16] %v2583, 128
  %2586 = vxpose.xlu0.b32.cont [2/16] 0.0, 128
  %2587 = vxpose.xlu0.b32.cont [3/16] 0.0, 128
  %2588 = vxpose.xlu0.b32.cont [4/16] 0.0, 128
  %2589 = vxpose.xlu0.b32.cont [5/16] 0.0, 128
  %2590 = vxpose.xlu0.b32.cont [6/16] 0.0, 128
  %2591 = vxpose.xlu0.b32.cont [7/16] 0.0, 128
  %2592 = vxpose.xlu0.b32.cont [8/16] 0.0, 128
  %2593 = vxpose.xlu0.b32.cont [9/16] 0.0, 128
  %2594 = vxpose.xlu0.b32.cont [10/16] 0.0, 128
  %2595 = vxpose.xlu0.b32.cont [11/16] 0.0, 128
  %2596 = vxpose.xlu0.b32.cont [12/16] 0.0, 128
  %2597 = vxpose.xlu0.b32.cont [13/16] 0.0, 128
  %2598 = vxpose.xlu0.b32.cont [14/16] 0.0, 128
  %2599 = vxpose.xlu0.b32.cont [15/16] 0.0, 128
  %2600 = vxpose.xlu0.b32.end [16/16] 0.0, 128
  %v2601 = vpop.trf.xlu0
  %v2602 = vpop.trf.xlu0
  %v2603 = vpop.trf.xlu0
  %v2604 = vpop.trf.xlu0
  %v2605 = vpop.trf.xlu0
  %v2606 = vpop.trf.xlu0
  %v2607 = vpop.trf.xlu0
  %v2608 = vpop.trf.xlu0
  %v2609 = vpop.trf.xlu0
  %v2610 = vpop.trf.xlu0
  %v2611 = vpop.trf.xlu0
  %v2612 = vpop.trf.xlu0
  %v2613 = vpop.trf.xlu0
  %v2614 = vpop.trf.xlu0
  %v2615 = vpop.trf.xlu0
  %v2616 = vpop.trf.xlu0
  %2617 = vset.pattern.permute.xlu0 0
  %2618 = vperm.xlu0 %2617, %v2476
  %v2619 = vpop.permute.xlu0 %2618
  %v2621 = vlaneseq
  %v2622 = vshrl.u32 %v2621, 7
  %v2623 = vsub.s32 0, %v2622
  %v2624 = vrot.slane %v2601, %v2623
  %v2625 = vadd.f32 %v2619, %v2624
  %v2627 = vlaneseq
  %v2628 = vshrl.u32 %v2627, 7
  %v2629 = vsub.s32 0, %v2628
  %v2630 = vrot.slane %v2479, %v2629
  %2631 = vset.pattern.permute.xlu0 0
  %2632 = vperm.xlu0 %2631, %v2630
  %v2633 = vpop.permute.xlu0 %2632
  %v2635 = vadd.f32 %v2625, %v2633
  %vm2636 = vcmp.gt.f32.partialorder %v2635, 0.0
  %v2637 = vmul.f32 %v2635, 0.01
  %v2638 = vsel %vm2636, %v2635, %v2637
  %vm2639 = vcmp.eq.f32.partialorder %v2580, 0.0
  %v2640 = vmul.f32 %v2580, %v2638
  %v2641 = vsel %vm2639, -1e+10, %v2640
  %vm2642 = vcmask 64512
  %v2643 = vsel %vm2642, %v2641, -inf
  %2644 = vmax.xlane.f32.xlu0 %v2643
  %v2645 = vpop.xlane.xlu0 %2644
  %v2646 = vsub.f32 %v2641, %v2645
  %v2647 = vmul.f32 %v2646, 1.442695
  %v2648 = vpow.pop %v2647
  %v2649 = vsel %vm2642, %v2648, 0.0
  %2650 = vadd.xlane.f32.xlu0 %v2649
  %v2651 = vpop.xlane.xlu0 %2650
  %v2652 = vrcp.pop %v2651
  %v2653 = vmul.f32 %v2648, %v2652
  %v2655 = vsel %vm2642, %v2653, 0
  %2657 = vmatprep.subr.mxu0 0.0
  %2658 = vmatpush1.msra.mxu0 %v2133
  %2659 = vmatprep.subr.mxu0 0.0
  %2660 = vmatpush1.msra.mxu0 0.0
  %2661 = vmatprep.subr.mxu0 0.0
  %2662 = vmatpush1.msra.mxu0 0.0
  %2663 = vmatprep.subr.mxu0 0.0
  %2664 = vmatpush1.msra.mxu0 0.0
  %2665 = vmatprep.subr.mxu0 0.0
  %2666 = vmatpush1.msra.mxu0 0.0
  %2667 = vmatprep.subr.mxu0 0.0
  %2668 = vmatpush1.msra.mxu0 0.0
  %2669 = vmatprep.subr.mxu0 0.0
  %2670 = vmatpush1.msra.mxu0 0.0
  %2671 = vmatprep.subr.mxu0 0.0
  %2672 = vmatpush1.msra.mxu0 0.0
  %2673 = vmatprep.subr.mxu0 0.0
  %2674 = vmatpush1.msra.mxu0 0.0
  %2675 = vmatprep.subr.mxu0 0.0
  %2676 = vmatpush1.msra.mxu0 0.0
  %2677 = vmatprep.subr.mxu0 0.0
  %2678 = vmatpush1.msra.mxu0 0.0
  %2679 = vmatprep.subr.mxu0 0.0
  %2680 = vmatpush1.msra.mxu0 0.0
  %2681 = vmatprep.subr.mxu0 0.0
  %2682 = vmatpush1.msra.mxu0 0.0
  %2683 = vmatprep.subr.mxu0 0.0
  %2684 = vmatpush1.msra.mxu0 0.0
  %2685 = vmatprep.subr.mxu0 0.0
  %2686 = vmatpush1.msra.mxu0 0.0
  %2687 = vmatprep.subr.mxu0 0.0
  %2688 = vmatpush1.msra.mxu0 0.0
  %2689 = vmatprep.subr.mxu0 0.0
  %2690 = vmatpush1.msra.mxu0 0.0
  %2691 = vmatprep.subr.mxu0 0.0
  %2692 = vmatpush1.msra.mxu0 0.0
  %2693 = vmatprep.subr.mxu0 0.0
  %2694 = vmatpush1.msra.mxu0 0.0
  %2695 = vmatprep.subr.mxu0 0.0
  %2696 = vmatpush1.msra.mxu0 0.0
  %2697 = vmatprep.subr.mxu0 0.0
  %2698 = vmatpush1.msra.mxu0 0.0
  %2699 = vmatprep.subr.mxu0 0.0
  %2700 = vmatpush1.msra.mxu0 0.0
  %2701 = vmatprep.subr.mxu0 0.0
  %2702 = vmatpush1.msra.mxu0 0.0
  %2703 = vmatprep.subr.mxu0 0.0
  %2704 = vmatpush1.msra.mxu0 0.0
  %2705 = vmatprep.subr.mxu0 0.0
  %2706 = vmatpush1.msra.mxu0 0.0
  %2707 = vmatprep.subr.mxu0 0.0
  %2708 = vmatpush1.msra.mxu0 0.0
  %2709 = vmatprep.subr.mxu0 0.0
  %2710 = vmatpush1.msra.mxu0 0.0
  %2711 = vmatprep.subr.mxu0 0.0
  %2712 = vmatpush1.msra.mxu0 0.0
  %2713 = vmatprep.subr.mxu0 0.0
  %2714 = vmatpush1.msra.mxu0 0.0
  %2715 = vmatprep.subr.mxu0 0.0
  %2716 = vmatpush1.msra.mxu0 0.0
  %2717 = vmatprep.subr.mxu0 0.0
  %2718 = vmatpush1.msra.mxu0 0.0
  %2719 = vmatprep.subr.mxu0 0.0
  %2720 = vmatpush1.msra.mxu0 0.0
  %2721 = vmatprep.mubr.f32.mxu0 0.0
  %2722 = vmatmul.mubr.f32.gmra.mrb[0].mxu0 %v2655
  %v2723 = vpop.f32.mrb[0].mxu0
  %v2724 = vadd.f32 0.0, %v2723
  %v2725 = vpop.f32.mrb[0].mxu0
  %2726 = vdwg.mxu0
  %2727 = vrot.lane.b32.xlu0 %v2487, 64
  %v2728 = vpop.permute.xlu0 %2727
  %v2730 = vsel %vm217, %v2728, 0.0
  %2731 = vadd.xlane.f32.xlu0 %v2730
  %v2732 = vpop.xlane.xlu0 %2731
  %v2733 = vrsqrt.pop %v2732
  %v2734 = vmul.f32 %v2732, %v2733
  %vm2735 = vcmp.eq.f32.partialorder %v2732, inf
  %v2736 = vsel %vm2735, %v2732, %v2734
  %vm2737 = vcmp.eq.f32.partialorder %v2732, 0.0
  %v2738 = vand.u32 %v2732, 2147483648
  %v2739 = vsel %vm2737, %v2738, %v2736
  %v2740 = vmax.f32 %v2739, 1e-06
  %v2741 = vrcp.pop %v2740
  %v2742 = vmul.f32 %v2133, %v2741
  %2744 = vrot.lane.b32.xlu0 %v2742, 64
  %v2745 = vpop.permute.xlu0 %2744
  %v2746 = vsel %vm217, %v2745, 0
  %2748 = vmatprep.subr.mxu0 0.0
  %2749 = vmatpush1.xpose.msra.mxu0 %v2746
  %2750 = vmatprep.subr.mxu0 0.0
  %2751 = vmatpush1.xpose.msra.mxu0 0.0
  %2752 = vmatprep.subr.mxu0 0.0
  %2753 = vmatpush1.xpose.msra.mxu0 0.0
  %2754 = vmatprep.subr.mxu0 0.0
  %2755 = vmatpush1.xpose.msra.mxu0 0.0
  %2756 = vmatprep.subr.mxu0 0.0
  %2757 = vmatpush1.xpose.msra.mxu0 0.0
  %2758 = vmatprep.subr.mxu0 0.0
  %2759 = vmatpush1.xpose.msra.mxu0 0.0
  %2760 = vmatprep.subr.mxu0 0.0
  %2761 = vmatpush1.xpose.msra.mxu0 0.0
  %2762 = vmatprep.subr.mxu0 0.0
  %2763 = vmatpush1.xpose.msra.mxu0 0.0
  %2764 = vmatprep.subr.mxu0 0.0
  %2765 = vmatpush1.xpose.msra.mxu0 0.0
  %2766 = vmatprep.subr.mxu0 0.0
  %2767 = vmatpush1.xpose.msra.mxu0 0.0
  %2768 = vmatprep.subr.mxu0 0.0
  %2769 = vmatpush1.xpose.msra.mxu0 0.0
  %2770 = vmatprep.subr.mxu0 0.0
  %2771 = vmatpush1.xpose.msra.mxu0 0.0
  %2772 = vmatprep.subr.mxu0 0.0
  %2773 = vmatpush1.xpose.msra.mxu0 0.0
  %2774 = vmatprep.subr.mxu0 0.0
  %2775 = vmatpush1.xpose.msra.mxu0 0.0
  %2776 = vmatprep.subr.mxu0 0.0
  %2777 = vmatpush1.xpose.msra.mxu0 0.0
  %2778 = vmatprep.subr.mxu0 0.0
  %2779 = vmatpush1.xpose.msra.mxu0 0.0
  %2780 = vmatprep.subr.mxu0 0.0
  %2781 = vmatpush1.xpose.msra.mxu0 0.0
  %2782 = vmatprep.subr.mxu0 0.0
  %2783 = vmatpush1.xpose.msra.mxu0 0.0
  %2784 = vmatprep.subr.mxu0 0.0
  %2785 = vmatpush1.xpose.msra.mxu0 0.0
  %2786 = vmatprep.subr.mxu0 0.0
  %2787 = vmatpush1.xpose.msra.mxu0 0.0
  %2788 = vmatprep.subr.mxu0 0.0
  %2789 = vmatpush1.xpose.msra.mxu0 0.0
  %2790 = vmatprep.subr.mxu0 0.0
  %2791 = vmatpush1.xpose.msra.mxu0 0.0
  %2792 = vmatprep.subr.mxu0 0.0
  %2793 = vmatpush1.xpose.msra.mxu0 0.0
  %2794 = vmatprep.subr.mxu0 0.0
  %2795 = vmatpush1.xpose.msra.mxu0 0.0
  %2796 = vmatprep.subr.mxu0 0.0
  %2797 = vmatpush1.xpose.msra.mxu0 0.0
  %2798 = vmatprep.subr.mxu0 0.0
  %2799 = vmatpush1.xpose.msra.mxu0 0.0
  %2800 = vmatprep.subr.mxu0 0.0
  %2801 = vmatpush1.xpose.msra.mxu0 0.0
  %2802 = vmatprep.subr.mxu0 0.0
  %2803 = vmatpush1.xpose.msra.mxu0 0.0
  %2804 = vmatprep.subr.mxu0 0.0
  %2805 = vmatpush1.xpose.msra.mxu0 0.0
  %2806 = vmatprep.subr.mxu0 0.0
  %2807 = vmatpush1.xpose.msra.mxu0 0.0
  %2808 = vmatprep.subr.mxu0 0.0
  %2809 = vmatpush1.xpose.msra.mxu0 0.0
  %2810 = vmatprep.subr.mxu0 0.0
  %2811 = vmatpush1.xpose.msra.mxu0 0.0
  %2812 = vmatprep.mubr.f32.mxu0 0.0
  %2813 = vmatmul.mubr.f32.gmra.mrb[0].mxu0 %v2746
  %v2814 = vpop.f32.mrb[0].mxu0
  %v2815 = vadd.f32 0.0, %v2814
  %v2816 = vpop.f32.mrb[0].mxu0
  %2817 = vdwg.mxu0
  %v2818 = vsub.f32 %v2815, %v2486
  %2819 = vrot.lane.b32.xlu0 %v2476, 125
  %v2820 = vpop.permute.xlu0 %2819
  %2822 = vxpose.xlu0.b32.start [1/16] %v2820, 128
  %2823 = vxpose.xlu0.b32.cont [2/16] 0.0, 128
  %2824 = vxpose.xlu0.b32.cont [3/16] 0.0, 128
  %2825 = vxpose.xlu0.b32.cont [4/16] 0.0, 128
  %2826 = vxpose.xlu0.b32.cont [5/16] 0.0, 128
  %2827 = vxpose.xlu0.b32.cont [6/16] 0.0, 128
  %2828 = vxpose.xlu0.b32.cont [7/16] 0.0, 128
  %2829 = vxpose.xlu0.b32.cont [8/16] 0.0, 128
  %2830 = vxpose.xlu0.b32.cont [9/16] 0.0, 128
  %2831 = vxpose.xlu0.b32.cont [10/16] 0.0, 128
  %2832 = vxpose.xlu0.b32.cont [11/16] 0.0, 128
  %2833 = vxpose.xlu0.b32.cont [12/16] 0.0, 128
  %2834 = vxpose.xlu0.b32.cont [13/16] 0.0, 128
  %2835 = vxpose.xlu0.b32.cont [14/16] 0.0, 128
  %2836 = vxpose.xlu0.b32.cont [15/16] 0.0, 128
  %2837 = vxpose.xlu0.b32.end [16/16] 0.0, 128
  %v2838 = vpop.trf.xlu0
  %v2839 = vpop.trf.xlu0
  %v2840 = vpop.trf.xlu0
  %v2841 = vpop.trf.xlu0
  %v2842 = vpop.trf.xlu0
  %v2843 = vpop.trf.xlu0
  %v2844 = vpop.trf.xlu0
  %v2845 = vpop.trf.xlu0
  %v2846 = vpop.trf.xlu0
  %v2847 = vpop.trf.xlu0
  %v2848 = vpop.trf.xlu0
  %v2849 = vpop.trf.xlu0
  %v2850 = vpop.trf.xlu0
  %v2851 = vpop.trf.xlu0
  %v2852 = vpop.trf.xlu0
  %v2853 = vpop.trf.xlu0
  %2854 = vset.pattern.permute.xlu0 2
  %2855 = vperm.xlu0 %2854, %v2476
  %v2856 = vpop.permute.xlu0 %2855
  %v2858 = vlaneseq
  %v2859 = vshrl.u32 %v2858, 7
  %v2860 = vsub.s32 0, %v2859
  %v2861 = vrot.slane %v2838, %v2860
  %v2862 = vadd.f32 %v2856, %v2861
  %2863 = vset.pattern.permute.xlu0 1
  %2864 = vperm.xlu0 %2863, %v2630
  %v2865 = vpop.permute.xlu0 %2864
  %v2867 = vadd.f32 %v2862, %v2865
  %vm2868 = vcmp.gt.f32.partialorder %v2867, 0.0
  %v2869 = vmul.f32 %v2867, 0.01
  %v2870 = vsel %vm2868, %v2867, %v2869
  %vm2871 = vcmp.eq.f32.partialorder %v2818, 0.0
  %v2872 = vmul.f32 %v2818, %v2870
  %v2873 = vsel %vm2871, -1e+10, %v2872
  %v2874 = vsel %vm2642, %v2873, -inf
  %2875 = vmax.xlane.f32.xlu0 %v2874
  %v2876 = vpop.xlane.xlu0 %2875
  %v2877 = vsub.f32 %v2873, %v2876
  %v2878 = vmul.f32 %v2877, 1.442695
  %v2879 = vpow.pop %v2878
  %v2880 = vsel %vm2642, %v2879, 0.0
  %2881 = vadd.xlane.f32.xlu0 %v2880
  %v2882 = vpop.xlane.xlu0 %2881
  %v2883 = vrcp.pop %v2882
  %v2884 = vmul.f32 %v2879, %v2883
  %v2886 = vsel %vm2642, %v2884, 0
  %2888 = vmatprep.subr.mxu0 0.0
  %2889 = vmatpush1.msra.mxu0 %v2133
  %2890 = vmatprep.subr.mxu0 0.0
  %2891 = vmatpush1.msra.mxu0 0.0
  %2892 = vmatprep.subr.mxu0 0.0
  %2893 = vmatpush1.msra.mxu0 0.0
  %2894 = vmatprep.subr.mxu0 0.0
  %2895 = vmatpush1.msra.mxu0 0.0
  %2896 = vmatprep.subr.mxu0 0.0
  %2897 = vmatpush1.msra.mxu0 0.0
  %2898 = vmatprep.subr.mxu0 0.0
  %2899 = vmatpush1.msra.mxu0 0.0
  %2900 = vmatprep.subr.mxu0 0.0
  %2901 = vmatpush1.msra.mxu0 0.0
  %2902 = vmatprep.subr.mxu0 0.0
  %2903 = vmatpush1.msra.mxu0 0.0
  %2904 = vmatprep.subr.mxu0 0.0
  %2905 = vmatpush1.msra.mxu0 0.0
  %2906 = vmatprep.subr.mxu0 0.0
  %2907 = vmatpush1.msra.mxu0 0.0
  %2908 = vmatprep.subr.mxu0 0.0
  %2909 = vmatpush1.msra.mxu0 0.0
  %2910 = vmatprep.subr.mxu0 0.0
  %2911 = vmatpush1.msra.mxu0 0.0
  %2912 = vmatprep.subr.mxu0 0.0
  %2913 = vmatpush1.msra.mxu0 0.0
  %2914 = vmatprep.subr.mxu0 0.0
  %2915 = vmatpush1.msra.mxu0 0.0
  %2916 = vmatprep.subr.mxu0 0.0
  %2917 = vmatpush1.msra.mxu0 0.0
  %2918 = vmatprep.subr.mxu0 0.0
  %2919 = vmatpush1.msra.mxu0 0.0
  %2920 = vmatprep.subr.mxu0 0.0
  %2921 = vmatpush1.msra.mxu0 0.0
  %2922 = vmatprep.subr.mxu0 0.0
  %2923 = vmatpush1.msra.mxu0 0.0
  %2924 = vmatprep.subr.mxu0 0.0
  %2925 = vmatpush1.msra.mxu0 0.0
  %2926 = vmatprep.subr.mxu0 0.0
  %2927 = vmatpush1.msra.mxu0 0.0
  %2928 = vmatprep.subr.mxu0 0.0
  %2929 = vmatpush1.msra.mxu0 0.0
  %2930 = vmatprep.subr.mxu0 0.0
  %2931 = vmatpush1.msra.mxu0 0.0
  %2932 = vmatprep.subr.mxu0 0.0
  %2933 = vmatpush1.msra.mxu0 0.0
  %2934 = vmatprep.subr.mxu0 0.0
  %2935 = vmatpush1.msra.mxu0 0.0
  %2936 = vmatprep.subr.mxu0 0.0
  %2937 = vmatpush1.msra.mxu0 0.0
  %2938 = vmatprep.subr.mxu0 0.0
  %2939 = vmatpush1.msra.mxu0 0.0
  %2940 = vmatprep.subr.mxu0 0.0
  %2941 = vmatpush1.msra.mxu0 0.0
  %2942 = vmatprep.subr.mxu0 0.0
  %2943 = vmatpush1.msra.mxu0 0.0
  %2944 = vmatprep.subr.mxu0 0.0
  %2945 = vmatpush1.msra.mxu0 0.0
  %2946 = vmatprep.subr.mxu0 0.0
  %2947 = vmatpush1.msra.mxu0 0.0
  %2948 = vmatprep.subr.mxu0 0.0
  %2949 = vmatpush1.msra.mxu0 0.0
  %2950 = vmatprep.subr.mxu0 0.0
  %2951 = vmatpush1.msra.mxu0 0.0
  %2952 = vmatprep.mubr.f32.mxu0 0.0
  %2953 = vmatmul.mubr.f32.gmra.mrb[0].mxu0 %v2886
  %v2954 = vpop.f32.mrb[0].mxu0
  %v2955 = vadd.f32 0.0, %v2954
  %v2956 = vpop.f32.mrb[0].mxu0
  %2957 = vdwg.mxu0
  %2958 = vrot.lane.b32.xlu0 %v2487, 32
  %v2959 = vpop.permute.xlu0 %2958
  %v2961 = vsel %vm217, %v2959, 0.0
  %2962 = vadd.xlane.f32.xlu0 %v2961
  %v2963 = vpop.xlane.xlu0 %2962
  %v2964 = vrsqrt.pop %v2963
  %v2965 = vmul.f32 %v2963, %v2964
  %vm2966 = vcmp.eq.f32.partialorder %v2963, inf
  %v2967 = vsel %vm2966, %v2963, %v2965
  %vm2968 = vcmp.eq.f32.partialorder %v2963, 0.0
  %v2969 = vand.u32 %v2963, 2147483648
  %v2970 = vsel %vm2968, %v2969, %v2967
  %v2971 = vmax.f32 %v2970, 1e-06
  %v2972 = vrcp.pop %v2971
  %v2973 = vmul.f32 %v2133, %v2972
  %2975 = vrot.lane.b32.xlu0 %v2973, 32
  %v2976 = vpop.permute.xlu0 %2975
  %v2977 = vsel %vm217, %v2976, 0
  %2979 = vmatprep.subr.mxu0 0.0
  %2980 = vmatpush1.xpose.msra.mxu0 %v2977
  %2981 = vmatprep.subr.mxu0 0.0
  %2982 = vmatpush1.xpose.msra.mxu0 0.0
  %2983 = vmatprep.subr.mxu0 0.0
  %2984 = vmatpush1.xpose.msra.mxu0 0.0
  %2985 = vmatprep.subr.mxu0 0.0
  %2986 = vmatpush1.xpose.msra.mxu0 0.0
  %2987 = vmatprep.subr.mxu0 0.0
  %2988 = vmatpush1.xpose.msra.mxu0 0.0
  %2989 = vmatprep.subr.mxu0 0.0
  %2990 = vmatpush1.xpose.msra.mxu0 0.0
  %2991 = vmatprep.subr.mxu0 0.0
  %2992 = vmatpush1.xpose.msra.mxu0 0.0
  %2993 = vmatprep.subr.mxu0 0.0
  %2994 = vmatpush1.xpose.msra.mxu0 0.0
  %2995 = vmatprep.subr.mxu0 0.0
  %2996 = vmatpush1.xpose.msra.mxu0 0.0
  %2997 = vmatprep.subr.mxu0 0.0
  %2998 = vmatpush1.xpose.msra.mxu0 0.0
  %2999 = vmatprep.subr.mxu0 0.0
  %3000 = vmatpush1.xpose.msra.mxu0 0.0
  %3001 = vmatprep.subr.mxu0 0.0
  %3002 = vmatpush1.xpose.msra.mxu0 0.0
  %3003 = vmatprep.subr.mxu0 0.0
  %3004 = vmatpush1.xpose.msra.mxu0 0.0
  %3005 = vmatprep.subr.mxu0 0.0
  %3006 = vmatpush1.xpose.msra.mxu0 0.0
  %3007 = vmatprep.subr.mxu0 0.0
  %3008 = vmatpush1.xpose.msra.mxu0 0.0
  %3009 = vmatprep.subr.mxu0 0.0
  %3010 = vmatpush1.xpose.msra.mxu0 0.0
  %3011 = vmatprep.subr.mxu0 0.0
  %3012 = vmatpush1.xpose.msra.mxu0 0.0
  %3013 = vmatprep.subr.mxu0 0.0
  %3014 = vmatpush1.xpose.msra.mxu0 0.0
  %3015 = vmatprep.subr.mxu0 0.0
  %3016 = vmatpush1.xpose.msra.mxu0 0.0
  %3017 = vmatprep.subr.mxu0 0.0
  %3018 = vmatpush1.xpose.msra.mxu0 0.0
  %3019 = vmatprep.subr.mxu0 0.0
  %3020 = vmatpush1.xpose.msra.mxu0 0.0
  %3021 = vmatprep.subr.mxu0 0.0
  %3022 = vmatpush1.xpose.msra.mxu0 0.0
  %3023 = vmatprep.subr.mxu0 0.0
  %3024 = vmatpush1.xpose.msra.mxu0 0.0
  %3025 = vmatprep.subr.mxu0 0.0
  %3026 = vmatpush1.xpose.msra.mxu0 0.0
  %3027 = vmatprep.subr.mxu0 0.0
  %3028 = vmatpush1.xpose.msra.mxu0 0.0
  %3029 = vmatprep.subr.mxu0 0.0
  %3030 = vmatpush1.xpose.msra.mxu0 0.0
  %3031 = vmatprep.subr.mxu0 0.0
  %3032 = vmatpush1.xpose.msra.mxu0 0.0
  %3033 = vmatprep.subr.mxu0 0.0
  %3034 = vmatpush1.xpose.msra.mxu0 0.0
  %3035 = vmatprep.subr.mxu0 0.0
  %3036 = vmatpush1.xpose.msra.mxu0 0.0
  %3037 = vmatprep.subr.mxu0 0.0
  %3038 = vmatpush1.xpose.msra.mxu0 0.0
  %3039 = vmatprep.subr.mxu0 0.0
  %3040 = vmatpush1.xpose.msra.mxu0 0.0
  %3041 = vmatprep.subr.mxu0 0.0
  %3042 = vmatpush1.xpose.msra.mxu0 0.0
  %3043 = vmatprep.mubr.f32.mxu0 0.0
  %3044 = vmatmul.mubr.f32.gmra.mrb[0].mxu0 %v2977
  %v3045 = vpop.f32.mrb[0].mxu0
  %v3046 = vadd.f32 0.0, %v3045
  %v3047 = vpop.f32.mrb[0].mxu0
  %3048 = vdwg.mxu0
  %v3049 = vsub.f32 %v3046, %v2486
  %3050 = vrot.lane.b32.xlu0 %v2476, 123
  %v3051 = vpop.permute.xlu0 %3050
  %3053 = vxpose.xlu0.b32.start [1/16] %v3051, 128
  %3054 = vxpose.xlu0.b32.cont [2/16] 0.0, 128
  %3055 = vxpose.xlu0.b32.cont [3/16] 0.0, 128
  %3056 = vxpose.xlu0.b32.cont [4/16] 0.0, 128
  %3057 = vxpose.xlu0.b32.cont [5/16] 0.0, 128
  %3058 = vxpose.xlu0.b32.cont [6/16] 0.0, 128
  %3059 = vxpose.xlu0.b32.cont [7/16] 0.0, 128
  %3060 = vxpose.xlu0.b32.cont [8/16] 0.0, 128
  %3061 = vxpose.xlu0.b32.cont [9/16] 0.0, 128
  %3062 = vxpose.xlu0.b32.cont [10/16] 0.0, 128
  %3063 = vxpose.xlu0.b32.cont [11/16] 0.0, 128
  %3064 = vxpose.xlu0.b32.cont [12/16] 0.0, 128
  %3065 = vxpose.xlu0.b32.cont [13/16] 0.0, 128
  %3066 = vxpose.xlu0.b32.cont [14/16] 0.0, 128
  %3067 = vxpose.xlu0.b32.cont [15/16] 0.0, 128
  %3068 = vxpose.xlu0.b32.end [16/16] 0.0, 128
  %v3069 = vpop.trf.xlu0
  %v3070 = vpop.trf.xlu0
  %v3071 = vpop.trf.xlu0
  %v3072 = vpop.trf.xlu0
  %v3073 = vpop.trf.xlu0
  %v3074 = vpop.trf.xlu0
  %v3075 = vpop.trf.xlu0
  %v3076 = vpop.trf.xlu0
  %v3077 = vpop.trf.xlu0
  %v3078 = vpop.trf.xlu0
  %v3079 = vpop.trf.xlu0
  %v3080 = vpop.trf.xlu0
  %v3081 = vpop.trf.xlu0
  %v3082 = vpop.trf.xlu0
  %v3083 = vpop.trf.xlu0
  %v3084 = vpop.trf.xlu0
  %3085 = vset.pattern.permute.xlu0 4
  %3086 = vperm.xlu0 %3085, %v2476
  %v3087 = vpop.permute.xlu0 %3086
  %v3089 = vlaneseq
  %v3090 = vshrl.u32 %v3089, 7
  %v3091 = vsub.s32 0, %v3090
  %v3092 = vrot.slane %v3069, %v3091
  %v3093 = vadd.f32 %v3087, %v3092
  %3094 = vset.pattern.permute.xlu0 2
  %3095 = vperm.xlu0 %3094, %v2630
  %v3096 = vpop.permute.xlu0 %3095
  %v3098 = vadd.f32 %v3093, %v3096
  %vm3099 = vcmp.gt.f32.partialorder %v3098, 0.0
  %v3100 = vmul.f32 %v3098, 0.01
  %v3101 = vsel %vm3099, %v3098, %v3100
  %vm3102 = vcmp.eq.f32.partialorder %v3049, 0.0
  %v3103 = vmul.f32 %v3049, %v3101
  %v3104 = vsel %vm3102, -1e+10, %v3103
  %v3105 = vsel %vm2642, %v3104, -inf
  %3106 = vmax.xlane.f32.xlu0 %v3105
  %v3107 = vpop.xlane.xlu0 %3106
  %v3108 = vsub.f32 %v3104, %v3107
  %v3109 = vmul.f32 %v3108, 1.442695
  %v3110 = vpow.pop %v3109
  %v3111 = vsel %vm2642, %v3110, 0.0
  %3112 = vadd.xlane.f32.xlu0 %v3111
  %v3113 = vpop.xlane.xlu0 %3112
  %v3114 = vrcp.pop %v3113
  %v3115 = vmul.f32 %v3110, %v3114
  %v3117 = vsel %vm2642, %v3115, 0
  %3119 = vmatprep.subr.mxu0 0.0
  %3120 = vmatpush1.msra.mxu0 %v2133
  %3121 = vmatprep.subr.mxu0 0.0
  %3122 = vmatpush1.msra.mxu0 0.0
  %3123 = vmatprep.subr.mxu0 0.0
  %3124 = vmatpush1.msra.mxu0 0.0
  %3125 = vmatprep.subr.mxu0 0.0
  %3126 = vmatpush1.msra.mxu0 0.0
  %3127 = vmatprep.subr.mxu0 0.0
  %3128 = vmatpush1.msra.mxu0 0.0
  %3129 = vmatprep.subr.mxu0 0.0
  %3130 = vmatpush1.msra.mxu0 0.0
  %3131 = vmatprep.subr.mxu0 0.0
  %3132 = vmatpush1.msra.mxu0 0.0
  %3133 = vmatprep.subr.mxu0 0.0
  %3134 = vmatpush1.msra.mxu0 0.0
  %3135 = vmatprep.subr.mxu0 0.0
  %3136 = vmatpush1.msra.mxu0 0.0
  %3137 = vmatprep.subr.mxu0 0.0
  %3138 = vmatpush1.msra.mxu0 0.0
  %3139 = vmatprep.subr.mxu0 0.0
  %3140 = vmatpush1.msra.mxu0 0.0
  %3141 = vmatprep.subr.mxu0 0.0
  %3142 = vmatpush1.msra.mxu0 0.0
  %3143 = vmatprep.subr.mxu0 0.0
  %3144 = vmatpush1.msra.mxu0 0.0
  %3145 = vmatprep.subr.mxu0 0.0
  %3146 = vmatpush1.msra.mxu0 0.0
  %3147 = vmatprep.subr.mxu0 0.0
  %3148 = vmatpush1.msra.mxu0 0.0
  %3149 = vmatprep.subr.mxu0 0.0
  %3150 = vmatpush1.msra.mxu0 0.0
  %3151 = vmatprep.subr.mxu0 0.0
  %3152 = vmatpush1.msra.mxu0 0.0
  %3153 = vmatprep.subr.mxu0 0.0
  %3154 = vmatpush1.msra.mxu0 0.0
  %3155 = vmatprep.subr.mxu0 0.0
  %3156 = vmatpush1.msra.mxu0 0.0
  %3157 = vmatprep.subr.mxu0 0.0
  %3158 = vmatpush1.msra.mxu0 0.0
  %3159 = vmatprep.subr.mxu0 0.0
  %3160 = vmatpush1.msra.mxu0 0.0
  %3161 = vmatprep.subr.mxu0 0.0
  %3162 = vmatpush1.msra.mxu0 0.0
  %3163 = vmatprep.subr.mxu0 0.0
  %3164 = vmatpush1.msra.mxu0 0.0
  %3165 = vmatprep.subr.mxu0 0.0
  %3166 = vmatpush1.msra.mxu0 0.0
  %3167 = vmatprep.subr.mxu0 0.0
  %3168 = vmatpush1.msra.mxu0 0.0
  %3169 = vmatprep.subr.mxu0 0.0
  %3170 = vmatpush1.msra.mxu0 0.0
  %3171 = vmatprep.subr.mxu0 0.0
  %3172 = vmatpush1.msra.mxu0 0.0
  %3173 = vmatprep.subr.mxu0 0.0
  %3174 = vmatpush1.msra.mxu0 0.0
  %3175 = vmatprep.subr.mxu0 0.0
  %3176 = vmatpush1.msra.mxu0 0.0
  %3177 = vmatprep.subr.mxu0 0.0
  %3178 = vmatpush1.msra.mxu0 0.0
  %3179 = vmatprep.subr.mxu0 0.0
  %3180 = vmatpush1.msra.mxu0 0.0
  %3181 = vmatprep.subr.mxu0 0.0
  %3182 = vmatpush1.msra.mxu0 0.0
  %3183 = vmatprep.mubr.f32.mxu0 0.0
  %3184 = vmatmul.mubr.f32.gmra.mrb[0].mxu0 %v3117
  %v3185 = vpop.f32.mrb[0].mxu0
  %v3186 = vadd.f32 0.0, %v3185
  %v3187 = vpop.f32.mrb[0].mxu0
  %3188 = vdwg.mxu0
  %3190 = vrot.lane.b32.xlu0 %v2955, 32
  %v3191 = vpop.permute.xlu0 %3190
  %3194 = vrot.lane.b32.xlu0 %v3186, 64
  %v3195 = vpop.permute.xlu0 %3194
  %v3197 = vsel %vm217, %v2724, %v3191
  %vm3198 = vcmask 523264
  %v3199 = vsel %vm3198, %v3197, %v3195
  %v3200 = vld [vmem:[%s14] sm:$0xff]
  %v3201 = vld [vmem:[%s15] sm:$0xff]
  %v3202 = vld [vmem:[%s15 + $0x8] sm:$0xff]
  %v3203 = vld [vmem:[%s15 + $0x10] sm:$0xff]
  %v3204 = vld [vmem:[%s15 + $0x18] sm:$0xff]
  %v3205 = vld [vmem:[%s15 + $0x20] sm:$0xff]
  %vm3206 = vcmask 326656
  %v3208 = vsel %vm3206, %v3200, 0
  %3210 = vmatprep.subr.mxu0 0.0
  %3211 = vmatpush1.msra.mxu0 %v3201
  %3212 = vmatprep.subr.mxu0 0.0
  %3213 = vmatpush1.msra.mxu0 %v3202
  %3214 = vmatprep.subr.mxu0 0.0
  %3215 = vmatpush1.msra.mxu0 %v3203
  %3216 = vmatprep.subr.mxu0 0.0
  %3217 = vmatpush1.msra.mxu0 %v3204
  %3218 = vmatprep.subr.mxu0 0.0
  %3219 = vmatpush1.msra.mxu0 %v3205
  %3220 = vmatprep.subr.mxu0 0.0
  %3221 = vmatpush1.msra.mxu0 0.0
  %3222 = vmatprep.subr.mxu0 0.0
  %3223 = vmatpush1.msra.mxu0 0.0
  %3224 = vmatprep.subr.mxu0 0.0
  %3225 = vmatpush1.msra.mxu0 0.0
  %3226 = vmatprep.subr.mxu0 0.0
  %3227 = vmatpush1.msra.mxu0 0.0
  %3228 = vmatprep.subr.mxu0 0.0
  %3229 = vmatpush1.msra.mxu0 0.0
  %3230 = vmatprep.subr.mxu0 0.0
  %3231 = vmatpush1.msra.mxu0 0.0
  %3232 = vmatprep.subr.mxu0 0.0
  %3233 = vmatpush1.msra.mxu0 0.0
  %3234 = vmatprep.subr.mxu0 0.0
  %3235 = vmatpush1.msra.mxu0 0.0
  %3236 = vmatprep.subr.mxu0 0.0
  %3237 = vmatpush1.msra.mxu0 0.0
  %3238 = vmatprep.subr.mxu0 0.0
  %3239 = vmatpush1.msra.mxu0 0.0
  %3240 = vmatprep.subr.mxu0 0.0
  %3241 = vmatpush1.msra.mxu0 0.0
  %3242 = vmatprep.subr.mxu0 0.0
  %3243 = vmatpush1.msra.mxu0 0.0
  %3244 = vmatprep.subr.mxu0 0.0
  %3245 = vmatpush1.msra.mxu0 0.0
  %3246 = vmatprep.subr.mxu0 0.0
  %3247 = vmatpush1.msra.mxu0 0.0
  %3248 = vmatprep.subr.mxu0 0.0
  %3249 = vmatpush1.msra.mxu0 0.0
  %3250 = vmatprep.subr.mxu0 0.0
  %3251 = vmatpush1.msra.mxu0 0.0
  %3252 = vmatprep.subr.mxu0 0.0
  %3253 = vmatpush1.msra.mxu0 0.0
  %3254 = vmatprep.subr.mxu0 0.0
  %3255 = vmatpush1.msra.mxu0 0.0
  %3256 = vmatprep.subr.mxu0 0.0
  %3257 = vmatpush1.msra.mxu0 0.0
  %3258 = vmatprep.subr.mxu0 0.0
  %3259 = vmatpush1.msra.mxu0 0.0
  %3260 = vmatprep.subr.mxu0 0.0
  %3261 = vmatpush1.msra.mxu0 0.0
  %3262 = vmatprep.subr.mxu0 0.0
  %3263 = vmatpush1.msra.mxu0 0.0
  %3264 = vmatprep.subr.mxu0 0.0
  %3265 = vmatpush1.msra.mxu0 0.0
  %3266 = vmatprep.subr.mxu0 0.0
  %3267 = vmatpush1.msra.mxu0 0.0
  %3268 = vmatprep.subr.mxu0 0.0
  %3269 = vmatpush1.msra.mxu0 0.0
  %3270 = vmatprep.subr.mxu0 0.0
  %3271 = vmatpush1.msra.mxu0 0.0
  %3272 = vmatprep.subr.mxu0 0.0
  %3273 = vmatpush1.msra.mxu0 0.0
  %3274 = vmatprep.mubr.f32.mxu0 0.0
  %3275 = vmatmul.mubr.f32.gmra.mrb[0].mxu0 %v3208
  %v3276 = vpop.f32.mrb[0].mxu0
  %v3277 = vadd.f32 0.0, %v3276
  %v3278 = vpop.f32.mrb[0].mxu0
  %3279 = vdwg.mxu0
  %3280 = vrot.lane.b32.xlu0 %v2476, 121
  %v3281 = vpop.permute.xlu0 %3280
  %3283 = vxpose.xlu0.b32.start [1/16] %v3281, 128
  %3284 = vxpose.xlu0.b32.cont [2/16] 0.0, 128
  %3285 = vxpose.xlu0.b32.cont [3/16] 0.0, 128
  %3286 = vxpose.xlu0.b32.cont [4/16] 0.0, 128
  %3287 = vxpose.xlu0.b32.cont [5/16] 0.0, 128
  %3288 = vxpose.xlu0.b32.cont [6/16] 0.0, 128
  %3289 = vxpose.xlu0.b32.cont [7/16] 0.0, 128
  %3290 = vxpose.xlu0.b32.cont [8/16] 0.0, 128
  %3291 = vxpose.xlu0.b32.cont [9/16] 0.0, 128
  %3292 = vxpose.xlu0.b32.cont [10/16] 0.0, 128
  %3293 = vxpose.xlu0.b32.cont [11/16] 0.0, 128
  %3294 = vxpose.xlu0.b32.cont [12/16] 0.0, 128
  %3295 = vxpose.xlu0.b32.cont [13/16] 0.0, 128
  %3296 = vxpose.xlu0.b32.cont [14/16] 0.0, 128
  %3297 = vxpose.xlu0.b32.cont [15/16] 0.0, 128
  %3298 = vxpose.xlu0.b32.end [16/16] 0.0, 128
  %v3299 = vpop.trf.xlu0
  %v3300 = vpop.trf.xlu0
  %v3301 = vpop.trf.xlu0
  %v3302 = vpop.trf.xlu0
  %v3303 = vpop.trf.xlu0
  %v3304 = vpop.trf.xlu0
  %v3305 = vpop.trf.xlu0
  %v3306 = vpop.trf.xlu0
  %v3307 = vpop.trf.xlu0
  %v3308 = vpop.trf.xlu0
  %v3309 = vpop.trf.xlu0
  %v3310 = vpop.trf.xlu0
  %v3311 = vpop.trf.xlu0
  %v3312 = vpop.trf.xlu0
  %v3313 = vpop.trf.xlu0
  %v3314 = vpop.trf.xlu0
  %3315 = vset.pattern.permute.xlu0 6
  %3316 = vperm.xlu0 %3315, %v2476
  %v3317 = vpop.permute.xlu0 %3316
  %v3319 = vlaneseq
  %v3320 = vshrl.u32 %v3319, 7
  %v3321 = vsub.s32 0, %v3320
  %v3322 = vrot.slane %v3299, %v3321
  %v3323 = vadd.f32 %v3317, %v3322
  %v3324 = vadd.f32 %v3323, %v3277
  %v3325 = vld [vmem:[#allocation3] sm:$0x1]
  %v3327 = vlaneseq
  %v3328 = vshrl.u32 %v3327, 7
  %v3329 = vsub.s32 0, %v3328
  %v3330 = vrot.slane %v3325, %v3329
  %3331 = vset.pattern.permute.xlu0 0
  %3332 = vperm.xlu0 %3331, %v3330
  %v3333 = vpop.permute.xlu0 %3332
  %v3335 = vadd.f32 %v3324, %v3333
  %vm3336 = vcmp.gt.f32.partialorder %v3335, 0.0
  %v3337 = vmul.f32 %v3335, 0.01
  %v3338 = vsel %vm3336, %v3335, %v3337
  %vm3339 = vcmp.ne.f32.partialorder %v3277, 0.0
  %v3340 = vsel %vm3339, 1, 0
  %v3341 = vcvt.s32.f32 %v3340
  %3343 = vrot.lane.b32.xlu0 %v3338, 8
  %v3344 = vpop.permute.xlu0 %3343
  %v3346 = vmul.f32 %v3341, %v3344
  %vm3347 = vcmp.eq.f32.partialorder %v3346, 0.0
  %v3348 = vsel %vm3347, -100000.0, %v3346
  %vm3349 = vcmask 130112
  %v3350 = vsel %vm3349, %v3348, -inf
  %3351 = vmax.xlane.f32.xlu0 %v3350
  %v3352 = vpop.xlane.xlu0 %3351
  %v3353 = vsub.f32 %v3348, %v3352
  %v3354 = vmul.f32 %v3353, 1.442695
  %v3355 = vpow.pop %v3354
  %3357 = vrot.lane.b32.xlu0 %v3355, 120
  %v3358 = vpop.permute.xlu0 %3357
  %v3360 = vsel %vm2642, %v3358, 0.0
  %3361 = vadd.xlane.f32.xlu0 %v3360
  %v3362 = vpop.xlane.xlu0 %3361
  %v3363 = vrcp.pop %v3362
  %v3364 = vmul.f32 %v3355, %v3363
  %v3365 = vmul.f32 %v3364, %v3341
  %3367 = vrot.lane.b32.xlu0 %v3365, 120
  %v3368 = vpop.permute.xlu0 %3367
  %v3369 = vsel %vm2642, %v3368, 0
  %3371 = vmatprep.subr.mxu0 0.0
  %3372 = vmatpush1.msra.mxu0 %v2133
  %3373 = vmatprep.subr.mxu0 0.0
  %3374 = vmatpush1.msra.mxu0 0.0
  %3375 = vmatprep.subr.mxu0 0.0
  %3376 = vmatpush1.msra.mxu0 0.0
  %3377 = vmatprep.subr.mxu0 0.0
  %3378 = vmatpush1.msra.mxu0 0.0
  %3379 = vmatprep.subr.mxu0 0.0
  %3380 = vmatpush1.msra.mxu0 0.0
  %3381 = vmatprep.subr.mxu0 0.0
  %3382 = vmatpush1.msra.mxu0 0.0
  %3383 = vmatprep.subr.mxu0 0.0
  %3384 = vmatpush1.msra.mxu0 0.0
  %3385 = vmatprep.subr.mxu0 0.0
  %3386 = vmatpush1.msra.mxu0 0.0
  %3387 = vmatprep.subr.mxu0 0.0
  %3388 = vmatpush1.msra.mxu0 0.0
  %3389 = vmatprep.subr.mxu0 0.0
  %3390 = vmatpush1.msra.mxu0 0.0
  %3391 = vmatprep.subr.mxu0 0.0
  %3392 = vmatpush1.msra.mxu0 0.0
  %3393 = vmatprep.subr.mxu0 0.0
  %3394 = vmatpush1.msra.mxu0 0.0
  %3395 = vmatprep.subr.mxu0 0.0
  %3396 = vmatpush1.msra.mxu0 0.0
  %3397 = vmatprep.subr.mxu0 0.0
  %3398 = vmatpush1.msra.mxu0 0.0
  %3399 = vmatprep.subr.mxu0 0.0
  %3400 = vmatpush1.msra.mxu0 0.0
  %3401 = vmatprep.subr.mxu0 0.0
  %3402 = vmatpush1.msra.mxu0 0.0
  %3403 = vmatprep.subr.mxu0 0.0
  %3404 = vmatpush1.msra.mxu0 0.0
  %3405 = vmatprep.subr.mxu0 0.0
  %3406 = vmatpush1.msra.mxu0 0.0
  %3407 = vmatprep.subr.mxu0 0.0
  %3408 = vmatpush1.msra.mxu0 0.0
  %3409 = vmatprep.subr.mxu0 0.0
  %3410 = vmatpush1.msra.mxu0 0.0
  %3411 = vmatprep.subr.mxu0 0.0
  %3412 = vmatpush1.msra.mxu0 0.0
  %3413 = vmatprep.subr.mxu0 0.0
  %3414 = vmatpush1.msra.mxu0 0.0
  %3415 = vmatprep.subr.mxu0 0.0
  %3416 = vmatpush1.msra.mxu0 0.0
  %3417 = vmatprep.subr.mxu0 0.0
  %3418 = vmatpush1.msra.mxu0 0.0
  %3419 = vmatprep.subr.mxu0 0.0
  %3420 = vmatpush1.msra.mxu0 0.0
  %3421 = vmatprep.subr.mxu0 0.0
  %3422 = vmatpush1.msra.mxu0 0.0
  %3423 = vmatprep.subr.mxu0 0.0
  %3424 = vmatpush1.msra.mxu0 0.0
  %3425 = vmatprep.subr.mxu0 0.0
  %3426 = vmatpush1.msra.mxu0 0.0
  %3427 = vmatprep.subr.mxu0 0.0
  %3428 = vmatpush1.msra.mxu0 0.0
  %3429 = vmatprep.subr.mxu0 0.0
  %3430 = vmatpush1.msra.mxu0 0.0
  %3431 = vmatprep.subr.mxu0 0.0
  %3432 = vmatpush1.msra.mxu0 0.0
  %3433 = vmatprep.subr.mxu0 0.0
  %3434 = vmatpush1.msra.mxu0 0.0
  %3435 = vmatprep.mubr.f32.mxu0 0.0
  %3436 = vmatmul.mubr.f32.gmra.mrb[0].mxu0 %v3369
  %v3437 = vpop.f32.mrb[0].mxu0
  %v3438 = vadd.f32 0.0, %v3437
  %v3439 = vpop.f32.mrb[0].mxu0
  %3440 = vdwg.mxu0
  %3442 = vrot.lane.b32.xlu0 %v2401, 32
  %v3443 = vpop.permute.xlu0 %3442
  %3446 = vrot.lane.b32.xlu0 %v3199, 64
  %v3447 = vpop.permute.xlu0 %3446
  %3450 = vrot.lane.b32.xlu0 %v3438, 32
  %v3451 = vpop.permute.xlu0 %3450
  %v3453 = vsel %vm217, %v2133, %v3443
  %v3454 = vsel %vm3198, %v3453, %v3447
  %v3455 = vsel %vm217, %v3447, %v3451
  %v3456 = vld [vmem:[%s16] sm:$0xff]
  %v3457 = vld [vmem:[%s16 + $0x8] sm:$0xff]
  %v3458 = vld [vmem:[%s16 + $0x10] sm:$0xff]
  %v3459 = vld [vmem:[%s16 + $0x18] sm:$0xff]
  %v3460 = vld [vmem:[%s16 + $0x20] sm:$0xff]
  %v3461 = vld [vmem:[%s16 + $0x28] sm:$0xff]
  %v3462 = vld [vmem:[%s16 + $0x30] sm:$0xff]
  %v3463 = vld [vmem:[%s16 + $0x38] sm:$0xff]
  %v3464 = vld [vmem:[%s16 + $0x40] sm:$0xff]
  %v3465 = vld [vmem:[%s16 + $0x48] sm:$0xff]
  %v3466 = vld [vmem:[%s16 + $0x50] sm:$0xff]
  %v3467 = vld [vmem:[%s16 + $0x58] sm:$0xff]
  %v3468 = vld [vmem:[%s16 + $0x60] sm:$0xff]
  %v3469 = vld [vmem:[%s16 + $0x68] sm:$0xff]
  %v3470 = vld [vmem:[%s16 + $0x70] sm:$0xff]
  %v3471 = vld [vmem:[%s16 + $0x78] sm:$0xff]
  %v3472 = vld [vmem:[%s16 + $0x80] sm:$0xff]
  %v3473 = vld [vmem:[%s16 + $0x88] sm:$0xff]
  %v3474 = vld [vmem:[%s16 + $0x90] sm:$0xff]
  %v3475 = vld [vmem:[%s16 + $0x98] sm:$0xff]
  %v3476 = vld [vmem:[%s16 + $0xa0] sm:$0xff]
  %v3477 = vld [vmem:[%s16 + $0xa8] sm:$0xff]
  %v3478 = vld [vmem:[%s16 + $0xb0] sm:$0xff]
  %v3479 = vld [vmem:[%s16 + $0xb8] sm:$0xff]
  %v3480 = vld [vmem:[#allocation4] sm:$0x1]
  %v3482 = vlaneseq
  %v3483 = vshrl.u32 %v3482, 7
  %v3484 = vsub.s32 0, %v3483
  %v3485 = vrot.slane %v3480, %v3484
  %v3488 = vsel %vm3198, %v3455, 0
  %3490 = vmatprep.subr.mxu0 0.0
  %3491 = vmatpush1.msra.mxu0 %v3456
  %3492 = vmatprep.subr.mxu0 0.0
  %3493 = vmatpush1.msra.mxu0 %v3457
  %3494 = vmatprep.subr.mxu0 0.0
  %3495 = vmatpush1.msra.mxu0 %v3458
  %3496 = vmatprep.subr.mxu0 0.0
  %3497 = vmatpush1.msra.mxu0 %v3459
  %3498 = vmatprep.subr.mxu0 0.0
  %3499 = vmatpush1.msra.mxu0 %v3460
  %3500 = vmatprep.subr.mxu0 0.0
  %3501 = vmatpush1.msra.mxu0 %v3461
  %3502 = vmatprep.subr.mxu0 0.0
  %3503 = vmatpush1.msra.mxu0 %v3462
  %3504 = vmatprep.subr.mxu0 0.0
  %3505 = vmatpush1.msra.mxu0 %v3463
  %3506 = vmatprep.subr.mxu0 0.0
  %3507 = vmatpush1.msra.mxu0 %v3464
  %3508 = vmatprep.subr.mxu0 0.0
  %3509 = vmatpush1.msra.mxu0 %v3465
  %3510 = vmatprep.subr.mxu0 0.0
  %3511 = vmatpush1.msra.mxu0 %v3466
  %3512 = vmatprep.subr.mxu0 0.0
  %3513 = vmatpush1.msra.mxu0 %v3467
  %3514 = vmatprep.subr.mxu0 0.0
  %3515 = vmatpush1.msra.mxu0 %v3468
  %3516 = vmatprep.subr.mxu0 0.0
  %3517 = vmatpush1.msra.mxu0 %v3469
  %3518 = vmatprep.subr.mxu0 0.0
  %3519 = vmatpush1.msra.mxu0 %v3470
  %3520 = vmatprep.subr.mxu0 0.0
  %3521 = vmatpush1.msra.mxu0 %v3471
  %3522 = vmatprep.subr.mxu0 0.0
  %3523 = vmatpush1.msra.mxu0 %v3472
  %3524 = vmatprep.subr.mxu0 0.0
  %3525 = vmatpush1.msra.mxu0 %v3473
  %3526 = vmatprep.subr.mxu0 0.0
  %3527 = vmatpush1.msra.mxu0 %v3474
  %3528 = vmatprep.subr.mxu0 0.0
  %3529 = vmatpush1.msra.mxu0 %v3475
  %3530 = vmatprep.subr.mxu0 0.0
  %3531 = vmatpush1.msra.mxu0 %v3476
  %3532 = vmatprep.subr.mxu0 0.0
  %3533 = vmatpush1.msra.mxu0 %v3477
  %3534 = vmatprep.subr.mxu0 0.0
  %3535 = vmatpush1.msra.mxu0 %v3478
  %3536 = vmatprep.subr.mxu0 0.0
  %3537 = vmatpush1.msra.mxu0 %v3479
  %3538 = vmatprep.subr.mxu0 0.0
  %3539 = vmatpush1.msra.mxu0 0.0
  %3540 = vmatprep.subr.mxu0 0.0
  %3541 = vmatpush1.msra.mxu0 0.0
  %3542 = vmatprep.subr.mxu0 0.0
  %3543 = vmatpush1.msra.mxu0 0.0
  %3544 = vmatprep.subr.mxu0 0.0
  %3545 = vmatpush1.msra.mxu0 0.0
  %3546 = vmatprep.subr.mxu0 0.0
  %3547 = vmatpush1.msra.mxu0 0.0
  %3548 = vmatprep.subr.mxu0 0.0
  %3549 = vmatpush1.msra.mxu0 0.0
  %3550 = vmatprep.subr.mxu0 0.0
  %3551 = vmatpush1.msra.mxu0 0.0
  %3552 = vmatprep.subr.mxu0 0.0
  %3553 = vmatpush1.msra.mxu0 0.0
  %3554 = vmatprep.mubr.f32.mxu0 %v3488
  %3555 = vmatmul.mubr.f32.gmra.mrb[0].mxu0 %v3454
  %v3556 = vpop.f32.mrb[0].mxu0
  %v3557 = vadd.f32 %v3485, %v3556
  %v3558 = vpop.f32.mrb[0].mxu0
  %3559 = vdwg.mxu0
  %vm3560 = vcmask 7168
  %3561 = vst.msk [vmem:[%s18] sm:$0xff] %vm3560, %v3557
  // Predicated region
  $region74: #{kenhance_forward.1} parent=0 // pred_check
    _
  $region75: #{kenhance_forward.1} parent=0 // pred_check_branch
    %3563 = sbr.rel (0) target = $region77
  $region76: #{kenhance_forward.1} parent=0 // pred_region
    _
  $region77: #{kenhance_forward.1} parent=0 // pred_fallthru
    _
  // Predicated region
  $region78: #{kenhance_forward.1} parent=0 // pred_check
    _
  $region79: #{kenhance_forward.1} parent=0 // pred_check_branch
    %3565 = sbr.rel (0) target = $region81
  $region80: #{kenhance_forward.1} parent=0 // pred_region
    _
  $region81: #{kenhance_forward.1} parent=0 // pred_fallthru
    _

</llo_original>
